<compile_context>
chip_gen: v7x
topology: tpu7x:2x2x1
jax: 0.10.0
libtpu: 0.0.40
codegen_flags: <defaults>
</compile_context>

<pallas_src>
import functools
import math

import jax
import jax.numpy as jnp
from jax.experimental import pallas as pl
from jax.experimental.pallas import tpu as pltpu  # noqa: F401  (kept for TPU-specific tuning hooks)


HIDDEN = 128
N_HEADS = 2
HEAD_DIM = HIDDEN // N_HEADS
INTER = 512
N_LAYERS = 2
N_CLASSES = 6
CLS_PAD = 128            # classifier output padded to a full lane row (dense stores)
VOCAB = 100
MAX_POS = 32
LN_EPS = 1e-12


# --------------------------------------------------------------------------- #
# Lazy probe: does this Mosaic build lower erf (needed for exact HF "gelu")?
# --------------------------------------------------------------------------- #
@functools.lru_cache(maxsize=1)
def _has_erf():
    def k(x_ref, o_ref):
        o_ref[...] = jax.lax.erf(x_ref[...])

    try:
        fn = pl.pallas_call(k, out_shape=jax.ShapeDtypeStruct((8, 128), jnp.float32))
        jax.jit(fn).lower(jax.ShapeDtypeStruct((8, 128), jnp.float32)).compile()
        return True
    except Exception:
        return False


# --------------------------------------------------------------------------- #
# The single fused kernel: embeddings-LN -> 2 encoder layers -> pooler -> head
# --------------------------------------------------------------------------- #
def _bert_fused_kernel(
        x_ref, bias_ref,
        emb_g_ref, emb_b_ref,
        wqkv_ref, bqkv_ref, wo_ref, bo_ref, ln1_g_ref, ln1_b_ref,
        w1_ref, b1_ref, w2_ref, b2_ref, ln2_g_ref, ln2_b_ref,
        pool_w_ref, pool_b_ref, l2_w_ref, l2_b_ref, l5_w_ref, l5_b_ref,
        out_ref,
        *, n_layers, n_heads, head_dim, scale, use_erf, eps):
    hidden = n_heads * head_dim

    def layernorm(h, g, b):
        mu = jnp.mean(h, axis=-1, keepdims=True)
        var = jnp.mean(jnp.square(h - mu), axis=-1, keepdims=True)
        return (h - mu) * jax.lax.rsqrt(var + eps) * g + b

    def gelu(y):
        if use_erf:
            # exact erf-GELU (HF BERT "gelu")
            return 0.5 * y * (1.0 + jax.lax.erf(y * 0.7071067811865476))
        # TODO(synk): erf not lowerable on this Mosaic build; tanh-approx GELU used
        # (small documented numeric delta vs HF's exact erf-GELU).
        return jax.nn.gelu(y, approximate=True)

    bias = bias_ref[...]                                   # (BS, BS) additive attention bias
    x = layernorm(x_ref[...], emb_g_ref[...], emb_b_ref[...])

    for l in range(n_layers):                              # static unroll (L = 2)
        # --- fused QKV projection: one (BS, H) @ (H, 3H) matmul ---
        qkv = jnp.dot(x, wqkv_ref[l], preferred_element_type=jnp.float32) + bqkv_ref[l]
        wo = wo_ref[l]                                     # (H, H)

        # --- attention: heads are contiguous 64-lane slices of the fused QKV output ---
        attn = None
        for h in range(n_heads):
            lo = h * head_dim
            q = qkv[:, lo:lo + head_dim]
            k = qkv[:, hidden + lo:hidden + lo + head_dim]
            v = qkv[:, 2 * hidden + lo:2 * hidden + lo + head_dim]
            s = jax.lax.dot_general(q, k, (((1,), (1,)), ((), ())),
                                    preferred_element_type=jnp.float32)   # (BS, BS)
            s = s * scale + bias
            s = s - jnp.max(s, axis=-1, keepdims=True)
            pr = jnp.exp(s)
            pr = pr / jnp.sum(pr, axis=-1, keepdims=True)
            ctx = jnp.dot(pr, v, preferred_element_type=jnp.float32)      # (BS, dh)
            part = jnp.dot(ctx, wo[lo:lo + head_dim, :],
                           preferred_element_type=jnp.float32)            # (BS, H)
            attn = part if attn is None else attn + part
        attn = attn + bo_ref[l]
        x = layernorm(attn + x, ln1_g_ref[l], ln1_b_ref[l])

        # --- feed-forward ---
        ffn = gelu(jnp.dot(x, w1_ref[l], preferred_element_type=jnp.float32) + b1_ref[l])
        ffn = jnp.dot(ffn, w2_ref[l], preferred_element_type=jnp.float32) + b2_ref[l]
        x = layernorm(ffn + x, ln2_g_ref[l], ln2_b_ref[l])

    # --- BERT pooler + classification head (l2 -> ReLU -> l4 dropout(identity) -> l5) ---
    # Computed for every position to keep the output slab sublane/lane dense; the wrapper
    # selects the CLS rows and the real 6 class lanes (per-row computation is independent).
    pooled = jnp.tanh(jnp.dot(x, pool_w_ref[...], preferred_element_type=jnp.float32)
                      + pool_b_ref[...])
    h2 = jnp.maximum(jnp.dot(pooled, l2_w_ref[...], preferred_element_type=jnp.float32)
                     + l2_b_ref[...], 0.0)
    out_ref[...] = (jnp.dot(h2, l5_w_ref[...], preferred_element_type=jnp.float32)
                    + l5_b_ref[...])


# --------------------------------------------------------------------------- #
# Parameter init (matches the previous per-layer layout) + one-time packing
# --------------------------------------------------------------------------- #
def init_params(key):
    keys = iter(jax.random.split(key, 64))

    def w(shape, scale=0.02):
        return (scale * jax.random.normal(next(keys), shape)).astype(jnp.float32)

    def zeros(shape):
        return jnp.zeros(shape, jnp.float32)

    def ones(shape):
        return jnp.ones(shape, jnp.float32)

    layers = []
    for _ in range(N_LAYERS):
        layers.append(dict(
            wq=w((HIDDEN, HIDDEN)), bq=zeros((HIDDEN,)),
            wk=w((HIDDEN, HIDDEN)), bk=zeros((HIDDEN,)),
            wv=w((HIDDEN, HIDDEN)), bv=zeros((HIDDEN,)),
            wo=w((HIDDEN, HIDDEN)), bo=zeros((HIDDEN,)),
            ln1_g=ones((HIDDEN,)), ln1_b=zeros((HIDDEN,)),
            w1=w((HIDDEN, INTER)), b1=zeros((INTER,)),
            w2=w((INTER, HIDDEN)), b2=zeros((HIDDEN,)),
            ln2_g=ones((HIDDEN,)), ln2_b=zeros((HIDDEN,)),
        ))

    return dict(
        word_emb=w((VOCAB, HIDDEN)),
        pos_emb=w((MAX_POS, HIDDEN)),
        type_emb=w((2, HIDDEN)),
        emb_ln_g=ones((HIDDEN,)), emb_ln_b=zeros((HIDDEN,)),
        layers=layers,
        pool_w=w((HIDDEN, HIDDEN)), pool_b=zeros((HIDDEN,)),
        l2_w=w((HIDDEN, HIDDEN)), l2_b=zeros((HIDDEN,)),
        l5_w=w((HIDDEN, N_CLASSES)), l5_b=zeros((N_CLASSES,)),
    )


def pack_params(p):
    """One-time packing (outside jit): fuse QKV weights into (H, 3H), stack per-layer
    params along a leading layer axis, pad the classifier to a 128-lane-dense output,
    and reshape biases / LN params to broadcastable (1, N) rows."""
    def row(v):
        return v.reshape(1, -1)

    layers = p["layers"]
    return dict(
        word_emb=p["word_emb"], pos_emb=p["pos_emb"], type_emb=p["type_emb"],
        emb_ln_g=row(p["emb_ln_g"]), emb_ln_b=row(p["emb_ln_b"]),
        wqkv=jnp.stack([jnp.concatenate([l["wq"], l["wk"], l["wv"]], axis=1) for l in layers]),
        bqkv=jnp.stack([row(jnp.concatenate([l["bq"], l["bk"], l["bv"]])) for l in layers]),
        wo=jnp.stack([l["wo"] for l in layers]),
        bo=jnp.stack([row(l["bo"]) for l in layers]),
        ln1_g=jnp.stack([row(l["ln1_g"]) for l in layers]),
        ln1_b=jnp.stack([row(l["ln1_b"]) for l in layers]),
        w1=jnp.stack([l["w1"] for l in layers]),
        b1=jnp.stack([row(l["b1"]) for l in layers]),
        w2=jnp.stack([l["w2"] for l in layers]),
        b2=jnp.stack([row(l["b2"]) for l in layers]),
        ln2_g=jnp.stack([row(l["ln2_g"]) for l in layers]),
        ln2_b=jnp.stack([row(l["ln2_b"]) for l in layers]),
        pool_w=p["pool_w"], pool_b=row(p["pool_b"]),
        l2_w=p["l2_w"], l2_b=row(p["l2_b"]),
        l5_w=jnp.pad(p["l5_w"], ((0, 0), (0, CLS_PAD - N_CLASSES))),
        l5_b=row(jnp.pad(p["l5_b"], (0, CLS_PAD - N_CLASSES))),
    )


# --------------------------------------------------------------------------- #
# Forward wrapper
# --------------------------------------------------------------------------- #
def bert_class_forward(packed, ids, mask, token_type_ids, *, use_erf=None):
    if use_erf is None:
        use_erf = _has_erf()
    p = packed
    B, S = ids.shape
    BS = B * S

    # --- embeddings (gathers are plain-JAX glue) ---
    pos = jnp.arange(S)
    emb = (p["word_emb"][ids]
           + p["pos_emb"][pos][None, :, :]
           + p["type_emb"][token_type_ids])
    x0 = emb.reshape(BS, HIDDEN).astype(jnp.float32)

    # --- additive attention bias: HF padding bias + block-diagonal cross-batch blocking ---
    batch_of = jnp.arange(BS) // S
    same_batch = batch_of[:, None] == batch_of[None, :]                     # (BS, BS)
    key_pad = ((1.0 - mask.astype(jnp.float32)) * -10000.0).reshape(1, BS)  # per-key bias
    attn_bias = jnp.where(same_batch, key_pad, jnp.float32(-1e9))           # (BS, BS)

    kernel = functools.partial(
        _bert_fused_kernel,
        n_layers=N_LAYERS, n_heads=N_HEADS, head_dim=HEAD_DIM,
        scale=1.0 / math.sqrt(HEAD_DIM), use_erf=use_erf, eps=LN_EPS)

    # No grid: the whole model fits comfortably in VMEM on every TPU generation, so a
    # single invocation with whole-array VMEM blocks (default BlockSpecs) is optimal.
    out = pl.pallas_call(
        kernel,
        out_shape=jax.ShapeDtypeStruct((BS, CLS_PAD), jnp.float32),
    )(x0, attn_bias,
      p["emb_ln_g"], p["emb_ln_b"],
      p["wqkv"], p["bqkv"], p["wo"], p["bo"], p["ln1_g"], p["ln1_b"],
      p["w1"], p["b1"], p["w2"], p["b2"], p["ln2_g"], p["ln2_b"],
      p["pool_w"], p["pool_b"], p["l2_w"], p["l2_b"], p["l5_w"], p["l5_b"])

    # select the CLS row of each sequence and the real class lanes
    return out.reshape(B, S, CLS_PAD)[:, 0, :N_CLASSES]


if __name__ == "__main__":
    key = jax.random.PRNGKey(0)
    pkey, ikey = jax.random.split(key)

    B, S = 2, 8
    params = init_params(pkey)
    packed = pack_params(params)
    ids = jax.random.randint(ikey, (B, S), 0, VOCAB, dtype=jnp.int32)
    mask = jnp.ones((B, S), dtype=jnp.int32)
    token_type_ids = jnp.zeros((B, S), dtype=jnp.int32)

    use_erf = _has_erf()   # lazy probe resolved once, outside the jitted path
    fwd = jax.jit(functools.partial(bert_class_forward, use_erf=use_erf))

    out = fwd(packed, ids, mask, token_type_ids)
    jax.block_until_ready(out)
    assert out.shape == (B, N_CLASSES) and out.dtype == jnp.float32
    print("KERNEL_OK")
</pallas_src>

<mosaic_0001>
module attributes {stable_mosaic.version = 11 : i64} {
  func.func @_bert_fused_kernel(%arg0: memref<16x128xf32, #tpu.memory_space<vmem>>, %arg1: memref<16x16xf32, #tpu.memory_space<vmem>>, %arg2: memref<1x128xf32, #tpu.memory_space<vmem>>, %arg3: memref<1x128xf32, #tpu.memory_space<vmem>>, %arg4: memref<2x128x384xf32, #tpu.memory_space<vmem>>, %arg5: memref<2x1x384xf32, #tpu.memory_space<vmem>>, %arg6: memref<2x128x128xf32, #tpu.memory_space<vmem>>, %arg7: memref<2x1x128xf32, #tpu.memory_space<vmem>>, %arg8: memref<2x1x128xf32, #tpu.memory_space<vmem>>, %arg9: memref<2x1x128xf32, #tpu.memory_space<vmem>>, %arg10: memref<2x128x512xf32, #tpu.memory_space<vmem>>, %arg11: memref<2x1x512xf32, #tpu.memory_space<vmem>>, %arg12: memref<2x512x128xf32, #tpu.memory_space<vmem>>, %arg13: memref<2x1x128xf32, #tpu.memory_space<vmem>>, %arg14: memref<2x1x128xf32, #tpu.memory_space<vmem>>, %arg15: memref<2x1x128xf32, #tpu.memory_space<vmem>>, %arg16: memref<128x128xf32, #tpu.memory_space<vmem>>, %arg17: memref<1x128xf32, #tpu.memory_space<vmem>>, %arg18: memref<128x128xf32, #tpu.memory_space<vmem>>, %arg19: memref<1x128xf32, #tpu.memory_space<vmem>>, %arg20: memref<128x128xf32, #tpu.memory_space<vmem>>, %arg21: memref<1x128xf32, #tpu.memory_space<vmem>>, %arg22: memref<16x128xf32, #tpu.memory_space<vmem>>) attributes {dimension_semantics = [], scalar_prefetch = 0 : i64, scratch_operands = 0 : i64, tpu.core_type = #tpu.core_type<tc>} {
    %c0 = arith.constant 0 : index
    %c0_0 = arith.constant 0 : index
    %0 = vector.load %arg1[%c0, %c0_0] : memref<16x16xf32, #tpu.memory_space<vmem>>, vector<16x16xf32>
    %c0_1 = arith.constant 0 : index
    %c0_2 = arith.constant 0 : index
    %1 = vector.load %arg0[%c0_1, %c0_2] : memref<16x128xf32, #tpu.memory_space<vmem>>, vector<16x128xf32>
    %c0_3 = arith.constant 0 : index
    %c0_4 = arith.constant 0 : index
    %2 = vector.load %arg2[%c0_3, %c0_4] : memref<1x128xf32, #tpu.memory_space<vmem>>, vector<1x128xf32>
    %c0_5 = arith.constant 0 : index
    %c0_6 = arith.constant 0 : index
    %3 = vector.load %arg3[%c0_5, %c0_6] : memref<1x128xf32, #tpu.memory_space<vmem>>, vector<1x128xf32>
    %cst = arith.constant dense<0.000000e+00> : vector<16xf32>
    %4 = vector.multi_reduction <add>, %1, %cst [1] : vector<16x128xf32> to vector<16xf32>
    %5 = vector.shape_cast %4 : vector<16xf32> to vector<16x1xf32>
    %cst_7 = arith.constant 1.280000e+02 : f32
    %6 = vector.broadcast %cst_7 : f32 to vector<16x1xf32>
    %7 = arith.divf %5, %6 : vector<16x1xf32>
    %8 = vector.broadcast %7 : vector<16x1xf32> to vector<16x128xf32>
    %9 = arith.subf %1, %8 : vector<16x128xf32>
    %10 = arith.mulf %9, %9 : vector<16x128xf32>
    %cst_8 = arith.constant dense<0.000000e+00> : vector<16xf32>
    %11 = vector.multi_reduction <add>, %10, %cst_8 [1] : vector<16x128xf32> to vector<16xf32>
    %12 = vector.shape_cast %11 : vector<16xf32> to vector<16x1xf32>
    %cst_9 = arith.constant 1.280000e+02 : f32
    %13 = vector.broadcast %cst_9 : f32 to vector<16x1xf32>
    %14 = arith.divf %12, %13 : vector<16x1xf32>
    %15 = vector.broadcast %7 : vector<16x1xf32> to vector<16x128xf32>
    %16 = arith.subf %1, %15 : vector<16x128xf32>
    %cst_10 = arith.constant 9.99999996E-13 : f32
    %17 = vector.broadcast %cst_10 : f32 to vector<16x1xf32>
    %18 = arith.addf %14, %17 : vector<16x1xf32>
    %19 = math.rsqrt %18 : vector<16x1xf32>
    %20 = vector.broadcast %19 : vector<16x1xf32> to vector<16x128xf32>
    %21 = arith.mulf %16, %20 : vector<16x128xf32>
    %22 = vector.broadcast %2 : vector<1x128xf32> to vector<16x128xf32>
    %23 = arith.mulf %21, %22 : vector<16x128xf32>
    %24 = vector.broadcast %3 : vector<1x128xf32> to vector<16x128xf32>
    %25 = arith.addf %23, %24 : vector<16x128xf32>
    %c0_11 = arith.constant 0 : index
    %c0_12 = arith.constant 0 : index
    %c0_13 = arith.constant 0 : index
    %26 = vector.load %arg4[%c0_11, %c0_12, %c0_13] : memref<2x128x384xf32, #tpu.memory_space<vmem>>, vector<1x128x384xf32>
    %27 = vector.shape_cast %26 : vector<1x128x384xf32> to vector<128x384xf32>
    %cst_14 = arith.constant dense<0.000000e+00> : vector<16x384xf32>
    %28 = tpu.matmul %25, %27, %cst_14 {dimension_numbers = #tpu.dot_dimension_numbers<[1], [0], [0], [1], [0, 0, 1, 1], [], []>} : vector<16x128xf32>, vector<128x384xf32>, vector<16x384xf32> -> vector<16x384xf32>
    %c0_15 = arith.constant 0 : index
    %c0_16 = arith.constant 0 : index
    %c0_17 = arith.constant 0 : index
    %29 = vector.load %arg5[%c0_15, %c0_16, %c0_17] : memref<2x1x384xf32, #tpu.memory_space<vmem>>, vector<1x1x384xf32>
    %30 = vector.shape_cast %29 : vector<1x1x384xf32> to vector<1x384xf32>
    %31 = vector.broadcast %30 : vector<1x384xf32> to vector<16x384xf32>
    %32 = arith.addf %28, %31 : vector<16x384xf32>
    %c0_18 = arith.constant 0 : index
    %c0_19 = arith.constant 0 : index
    %c0_20 = arith.constant 0 : index
    %33 = vector.load %arg6[%c0_18, %c0_19, %c0_20] : memref<2x128x128xf32, #tpu.memory_space<vmem>>, vector<1x128x128xf32>
    %34 = vector.shape_cast %33 : vector<1x128x128xf32> to vector<128x128xf32>
    %35 = vector.extract_strided_slice %32 {offsets = [0, 0], sizes = [16, 64], strides = [1, 1]} : vector<16x384xf32> to vector<16x64xf32>
    %36 = vector.extract_strided_slice %32 {offsets = [0, 128], sizes = [16, 64], strides = [1, 1]} : vector<16x384xf32> to vector<16x64xf32>
    %37 = vector.extract_strided_slice %32 {offsets = [0, 256], sizes = [16, 64], strides = [1, 1]} : vector<16x384xf32> to vector<16x64xf32>
    %cst_21 = arith.constant dense<0.000000e+00> : vector<16x16xf32>
    %38 = tpu.matmul %35, %36, %cst_21 {dimension_numbers = #tpu.dot_dimension_numbers<[1], [1], [0], [0], [0, 0, 1, 0], [], []>} : vector<16x64xf32>, vector<16x64xf32>, vector<16x16xf32> -> vector<16x16xf32>
    %cst_22 = arith.constant 1.250000e-01 : f32
    %39 = vector.broadcast %cst_22 : f32 to vector<16x16xf32>
    %40 = arith.mulf %38, %39 : vector<16x16xf32>
    %41 = arith.addf %40, %0 : vector<16x16xf32>
    %cst_23 = arith.constant dense<0xFF800000> : vector<16xf32>
    %42 = vector.multi_reduction <maximumf>, %41, %cst_23 [1] : vector<16x16xf32> to vector<16xf32>
    %43 = vector.shape_cast %42 : vector<16xf32> to vector<16x1xf32>
    %44 = vector.broadcast %43 : vector<16x1xf32> to vector<16x16xf32>
    %45 = arith.subf %41, %44 : vector<16x16xf32>
    %46 = math.exp %45 : vector<16x16xf32>
    %cst_24 = arith.constant dense<0.000000e+00> : vector<16xf32>
    %47 = vector.multi_reduction <add>, %46, %cst_24 [1] : vector<16x16xf32> to vector<16xf32>
    %48 = vector.shape_cast %47 : vector<16xf32> to vector<16x1xf32>
    %49 = vector.broadcast %48 : vector<16x1xf32> to vector<16x16xf32>
    %50 = arith.divf %46, %49 : vector<16x16xf32>
    %cst_25 = arith.constant dense<0.000000e+00> : vector<16x64xf32>
    %51 = tpu.matmul %50, %37, %cst_25 {dimension_numbers = #tpu.dot_dimension_numbers<[1], [0], [0], [1], [0, 0, 1, 1], [], []>} : vector<16x16xf32>, vector<16x64xf32>, vector<16x64xf32> -> vector<16x64xf32>
    %52 = vector.extract_strided_slice %34 {offsets = [0, 0], sizes = [64, 128], strides = [1, 1]} : vector<128x128xf32> to vector<64x128xf32>
    %cst_26 = arith.constant dense<0.000000e+00> : vector<16x128xf32>
    %53 = tpu.matmul %51, %52, %cst_26 {dimension_numbers = #tpu.dot_dimension_numbers<[1], [0], [0], [1], [0, 0, 1, 1], [], []>} : vector<16x64xf32>, vector<64x128xf32>, vector<16x128xf32> -> vector<16x128xf32>
    %54 = vector.extract_strided_slice %32 {offsets = [0, 64], sizes = [16, 64], strides = [1, 1]} : vector<16x384xf32> to vector<16x64xf32>
    %55 = vector.extract_strided_slice %32 {offsets = [0, 192], sizes = [16, 64], strides = [1, 1]} : vector<16x384xf32> to vector<16x64xf32>
    %56 = vector.extract_strided_slice %32 {offsets = [0, 320], sizes = [16, 64], strides = [1, 1]} : vector<16x384xf32> to vector<16x64xf32>
    %cst_27 = arith.constant dense<0.000000e+00> : vector<16x16xf32>
    %57 = tpu.matmul %54, %55, %cst_27 {dimension_numbers = #tpu.dot_dimension_numbers<[1], [1], [0], [0], [0, 0, 1, 0], [], []>} : vector<16x64xf32>, vector<16x64xf32>, vector<16x16xf32> -> vector<16x16xf32>
    %cst_28 = arith.constant 1.250000e-01 : f32
    %58 = vector.broadcast %cst_28 : f32 to vector<16x16xf32>
    %59 = arith.mulf %57, %58 : vector<16x16xf32>
    %60 = arith.addf %59, %0 : vector<16x16xf32>
    %cst_29 = arith.constant dense<0xFF800000> : vector<16xf32>
    %61 = vector.multi_reduction <maximumf>, %60, %cst_29 [1] : vector<16x16xf32> to vector<16xf32>
    %62 = vector.shape_cast %61 : vector<16xf32> to vector<16x1xf32>
    %63 = vector.broadcast %62 : vector<16x1xf32> to vector<16x16xf32>
    %64 = arith.subf %60, %63 : vector<16x16xf32>
    %65 = math.exp %64 : vector<16x16xf32>
    %cst_30 = arith.constant dense<0.000000e+00> : vector<16xf32>
    %66 = vector.multi_reduction <add>, %65, %cst_30 [1] : vector<16x16xf32> to vector<16xf32>
    %67 = vector.shape_cast %66 : vector<16xf32> to vector<16x1xf32>
    %68 = vector.broadcast %67 : vector<16x1xf32> to vector<16x16xf32>
    %69 = arith.divf %65, %68 : vector<16x16xf32>
    %cst_31 = arith.constant dense<0.000000e+00> : vector<16x64xf32>
    %70 = tpu.matmul %69, %56, %cst_31 {dimension_numbers = #tpu.dot_dimension_numbers<[1], [0], [0], [1], [0, 0, 1, 1], [], []>} : vector<16x16xf32>, vector<16x64xf32>, vector<16x64xf32> -> vector<16x64xf32>
    %71 = vector.extract_strided_slice %34 {offsets = [64, 0], sizes = [64, 128], strides = [1, 1]} : vector<128x128xf32> to vector<64x128xf32>
    %cst_32 = arith.constant dense<0.000000e+00> : vector<16x128xf32>
    %72 = tpu.matmul %70, %71, %cst_32 {dimension_numbers = #tpu.dot_dimension_numbers<[1], [0], [0], [1], [0, 0, 1, 1], [], []>} : vector<16x64xf32>, vector<64x128xf32>, vector<16x128xf32> -> vector<16x128xf32>
    %73 = arith.addf %53, %72 : vector<16x128xf32>
    %c0_33 = arith.constant 0 : index
    %c0_34 = arith.constant 0 : index
    %c0_35 = arith.constant 0 : index
    %74 = vector.load %arg7[%c0_33, %c0_34, %c0_35] : memref<2x1x128xf32, #tpu.memory_space<vmem>>, vector<1x1x128xf32>
    %75 = vector.shape_cast %74 : vector<1x1x128xf32> to vector<1x128xf32>
    %76 = vector.broadcast %75 : vector<1x128xf32> to vector<16x128xf32>
    %77 = arith.addf %73, %76 : vector<16x128xf32>
    %78 = arith.addf %77, %25 : vector<16x128xf32>
    %c0_36 = arith.constant 0 : index
    %c0_37 = arith.constant 0 : index
    %c0_38 = arith.constant 0 : index
    %79 = vector.load %arg8[%c0_36, %c0_37, %c0_38] : memref<2x1x128xf32, #tpu.memory_space<vmem>>, vector<1x1x128xf32>
    %80 = vector.shape_cast %79 : vector<1x1x128xf32> to vector<1x128xf32>
    %c0_39 = arith.constant 0 : index
    %c0_40 = arith.constant 0 : index
    %c0_41 = arith.constant 0 : index
    %81 = vector.load %arg9[%c0_39, %c0_40, %c0_41] : memref<2x1x128xf32, #tpu.memory_space<vmem>>, vector<1x1x128xf32>
    %82 = vector.shape_cast %81 : vector<1x1x128xf32> to vector<1x128xf32>
    %cst_42 = arith.constant dense<0.000000e+00> : vector<16xf32>
    %83 = vector.multi_reduction <add>, %78, %cst_42 [1] : vector<16x128xf32> to vector<16xf32>
    %84 = vector.shape_cast %83 : vector<16xf32> to vector<16x1xf32>
    %cst_43 = arith.constant 1.280000e+02 : f32
    %85 = vector.broadcast %cst_43 : f32 to vector<16x1xf32>
    %86 = arith.divf %84, %85 : vector<16x1xf32>
    %87 = vector.broadcast %86 : vector<16x1xf32> to vector<16x128xf32>
    %88 = arith.subf %78, %87 : vector<16x128xf32>
    %89 = arith.mulf %88, %88 : vector<16x128xf32>
    %cst_44 = arith.constant dense<0.000000e+00> : vector<16xf32>
    %90 = vector.multi_reduction <add>, %89, %cst_44 [1] : vector<16x128xf32> to vector<16xf32>
    %91 = vector.shape_cast %90 : vector<16xf32> to vector<16x1xf32>
    %cst_45 = arith.constant 1.280000e+02 : f32
    %92 = vector.broadcast %cst_45 : f32 to vector<16x1xf32>
    %93 = arith.divf %91, %92 : vector<16x1xf32>
    %94 = vector.broadcast %86 : vector<16x1xf32> to vector<16x128xf32>
    %95 = arith.subf %78, %94 : vector<16x128xf32>
    %cst_46 = arith.constant 9.99999996E-13 : f32
    %96 = vector.broadcast %cst_46 : f32 to vector<16x1xf32>
    %97 = arith.addf %93, %96 : vector<16x1xf32>
    %98 = math.rsqrt %97 : vector<16x1xf32>
    %99 = vector.broadcast %98 : vector<16x1xf32> to vector<16x128xf32>
    %100 = arith.mulf %95, %99 : vector<16x128xf32>
    %101 = vector.broadcast %80 : vector<1x128xf32> to vector<16x128xf32>
    %102 = arith.mulf %100, %101 : vector<16x128xf32>
    %103 = vector.broadcast %82 : vector<1x128xf32> to vector<16x128xf32>
    %104 = arith.addf %102, %103 : vector<16x128xf32>
    %c0_47 = arith.constant 0 : index
    %c0_48 = arith.constant 0 : index
    %c0_49 = arith.constant 0 : index
    %105 = vector.load %arg10[%c0_47, %c0_48, %c0_49] : memref<2x128x512xf32, #tpu.memory_space<vmem>>, vector<1x128x512xf32>
    %106 = vector.shape_cast %105 : vector<1x128x512xf32> to vector<128x512xf32>
    %cst_50 = arith.constant dense<0.000000e+00> : vector<16x512xf32>
    %107 = tpu.matmul %104, %106, %cst_50 {dimension_numbers = #tpu.dot_dimension_numbers<[1], [0], [0], [1], [0, 0, 1, 1], [], []>} : vector<16x128xf32>, vector<128x512xf32>, vector<16x512xf32> -> vector<16x512xf32>
    %c0_51 = arith.constant 0 : index
    %c0_52 = arith.constant 0 : index
    %c0_53 = arith.constant 0 : index
    %108 = vector.load %arg11[%c0_51, %c0_52, %c0_53] : memref<2x1x512xf32, #tpu.memory_space<vmem>>, vector<1x1x512xf32>
    %109 = vector.shape_cast %108 : vector<1x1x512xf32> to vector<1x512xf32>
    %110 = vector.broadcast %109 : vector<1x512xf32> to vector<16x512xf32>
    %111 = arith.addf %107, %110 : vector<16x512xf32>
    %112 = arith.mulf %111, %111 : vector<16x512xf32>
    %113 = arith.mulf %111, %112 : vector<16x512xf32>
    %cst_54 = arith.constant 4.471500e-02 : f32
    %114 = vector.broadcast %cst_54 : f32 to vector<16x512xf32>
    %115 = arith.mulf %114, %113 : vector<16x512xf32>
    %116 = arith.addf %111, %115 : vector<16x512xf32>
    %cst_55 = arith.constant 0.797884583 : f32
    %117 = vector.broadcast %cst_55 : f32 to vector<16x512xf32>
    %118 = arith.mulf %117, %116 : vector<16x512xf32>
    %119 = math.tanh %118 : vector<16x512xf32>
    %cst_56 = arith.constant 1.000000e+00 : f32
    %120 = vector.broadcast %cst_56 : f32 to vector<16x512xf32>
    %121 = arith.addf %120, %119 : vector<16x512xf32>
    %cst_57 = arith.constant 5.000000e-01 : f32
    %122 = vector.broadcast %cst_57 : f32 to vector<16x512xf32>
    %123 = arith.mulf %122, %121 : vector<16x512xf32>
    %124 = arith.mulf %111, %123 : vector<16x512xf32>
    %c0_58 = arith.constant 0 : index
    %c0_59 = arith.constant 0 : index
    %c0_60 = arith.constant 0 : index
    %125 = vector.load %arg12[%c0_58, %c0_59, %c0_60] : memref<2x512x128xf32, #tpu.memory_space<vmem>>, vector<1x512x128xf32>
    %126 = vector.shape_cast %125 : vector<1x512x128xf32> to vector<512x128xf32>
    %cst_61 = arith.constant dense<0.000000e+00> : vector<16x128xf32>
    %127 = tpu.matmul %124, %126, %cst_61 {dimension_numbers = #tpu.dot_dimension_numbers<[1], [0], [0], [1], [0, 0, 1, 1], [], []>} : vector<16x512xf32>, vector<512x128xf32>, vector<16x128xf32> -> vector<16x128xf32>
    %c0_62 = arith.constant 0 : index
    %c0_63 = arith.constant 0 : index
    %c0_64 = arith.constant 0 : index
    %128 = vector.load %arg13[%c0_62, %c0_63, %c0_64] : memref<2x1x128xf32, #tpu.memory_space<vmem>>, vector<1x1x128xf32>
    %129 = vector.shape_cast %128 : vector<1x1x128xf32> to vector<1x128xf32>
    %130 = vector.broadcast %129 : vector<1x128xf32> to vector<16x128xf32>
    %131 = arith.addf %127, %130 : vector<16x128xf32>
    %132 = arith.addf %131, %104 : vector<16x128xf32>
    %c0_65 = arith.constant 0 : index
    %c0_66 = arith.constant 0 : index
    %c0_67 = arith.constant 0 : index
    %133 = vector.load %arg14[%c0_65, %c0_66, %c0_67] : memref<2x1x128xf32, #tpu.memory_space<vmem>>, vector<1x1x128xf32>
    %134 = vector.shape_cast %133 : vector<1x1x128xf32> to vector<1x128xf32>
    %c0_68 = arith.constant 0 : index
    %c0_69 = arith.constant 0 : index
    %c0_70 = arith.constant 0 : index
    %135 = vector.load %arg15[%c0_68, %c0_69, %c0_70] : memref<2x1x128xf32, #tpu.memory_space<vmem>>, vector<1x1x128xf32>
    %136 = vector.shape_cast %135 : vector<1x1x128xf32> to vector<1x128xf32>
    %cst_71 = arith.constant dense<0.000000e+00> : vector<16xf32>
    %137 = vector.multi_reduction <add>, %132, %cst_71 [1] : vector<16x128xf32> to vector<16xf32>
    %138 = vector.shape_cast %137 : vector<16xf32> to vector<16x1xf32>
    %cst_72 = arith.constant 1.280000e+02 : f32
    %139 = vector.broadcast %cst_72 : f32 to vector<16x1xf32>
    %140 = arith.divf %138, %139 : vector<16x1xf32>
    %141 = vector.broadcast %140 : vector<16x1xf32> to vector<16x128xf32>
    %142 = arith.subf %132, %141 : vector<16x128xf32>
    %143 = arith.mulf %142, %142 : vector<16x128xf32>
    %cst_73 = arith.constant dense<0.000000e+00> : vector<16xf32>
    %144 = vector.multi_reduction <add>, %143, %cst_73 [1] : vector<16x128xf32> to vector<16xf32>
    %145 = vector.shape_cast %144 : vector<16xf32> to vector<16x1xf32>
    %cst_74 = arith.constant 1.280000e+02 : f32
    %146 = vector.broadcast %cst_74 : f32 to vector<16x1xf32>
    %147 = arith.divf %145, %146 : vector<16x1xf32>
    %148 = vector.broadcast %140 : vector<16x1xf32> to vector<16x128xf32>
    %149 = arith.subf %132, %148 : vector<16x128xf32>
    %cst_75 = arith.constant 9.99999996E-13 : f32
    %150 = vector.broadcast %cst_75 : f32 to vector<16x1xf32>
    %151 = arith.addf %147, %150 : vector<16x1xf32>
    %152 = math.rsqrt %151 : vector<16x1xf32>
    %153 = vector.broadcast %152 : vector<16x1xf32> to vector<16x128xf32>
    %154 = arith.mulf %149, %153 : vector<16x128xf32>
    %155 = vector.broadcast %134 : vector<1x128xf32> to vector<16x128xf32>
    %156 = arith.mulf %154, %155 : vector<16x128xf32>
    %157 = vector.broadcast %136 : vector<1x128xf32> to vector<16x128xf32>
    %158 = arith.addf %156, %157 : vector<16x128xf32>
    %c1 = arith.constant 1 : index
    %c0_76 = arith.constant 0 : index
    %c0_77 = arith.constant 0 : index
    %159 = vector.load %arg4[%c1, %c0_76, %c0_77] : memref<2x128x384xf32, #tpu.memory_space<vmem>>, vector<1x128x384xf32>
    %160 = vector.shape_cast %159 : vector<1x128x384xf32> to vector<128x384xf32>
    %cst_78 = arith.constant dense<0.000000e+00> : vector<16x384xf32>
    %161 = tpu.matmul %158, %160, %cst_78 {dimension_numbers = #tpu.dot_dimension_numbers<[1], [0], [0], [1], [0, 0, 1, 1], [], []>} : vector<16x128xf32>, vector<128x384xf32>, vector<16x384xf32> -> vector<16x384xf32>
    %c1_79 = arith.constant 1 : index
    %c0_80 = arith.constant 0 : index
    %c0_81 = arith.constant 0 : index
    %162 = vector.load %arg5[%c1_79, %c0_80, %c0_81] : memref<2x1x384xf32, #tpu.memory_space<vmem>>, vector<1x1x384xf32>
    %163 = vector.shape_cast %162 : vector<1x1x384xf32> to vector<1x384xf32>
    %164 = vector.broadcast %163 : vector<1x384xf32> to vector<16x384xf32>
    %165 = arith.addf %161, %164 : vector<16x384xf32>
    %c1_82 = arith.constant 1 : index
    %c0_83 = arith.constant 0 : index
    %c0_84 = arith.constant 0 : index
    %166 = vector.load %arg6[%c1_82, %c0_83, %c0_84] : memref<2x128x128xf32, #tpu.memory_space<vmem>>, vector<1x128x128xf32>
    %167 = vector.shape_cast %166 : vector<1x128x128xf32> to vector<128x128xf32>
    %168 = vector.extract_strided_slice %165 {offsets = [0, 0], sizes = [16, 64], strides = [1, 1]} : vector<16x384xf32> to vector<16x64xf32>
    %169 = vector.extract_strided_slice %165 {offsets = [0, 128], sizes = [16, 64], strides = [1, 1]} : vector<16x384xf32> to vector<16x64xf32>
    %170 = vector.extract_strided_slice %165 {offsets = [0, 256], sizes = [16, 64], strides = [1, 1]} : vector<16x384xf32> to vector<16x64xf32>
    %cst_85 = arith.constant dense<0.000000e+00> : vector<16x16xf32>
    %171 = tpu.matmul %168, %169, %cst_85 {dimension_numbers = #tpu.dot_dimension_numbers<[1], [1], [0], [0], [0, 0, 1, 0], [], []>} : vector<16x64xf32>, vector<16x64xf32>, vector<16x16xf32> -> vector<16x16xf32>
    %cst_86 = arith.constant 1.250000e-01 : f32
    %172 = vector.broadcast %cst_86 : f32 to vector<16x16xf32>
    %173 = arith.mulf %171, %172 : vector<16x16xf32>
    %174 = arith.addf %173, %0 : vector<16x16xf32>
    %cst_87 = arith.constant dense<0xFF800000> : vector<16xf32>
    %175 = vector.multi_reduction <maximumf>, %174, %cst_87 [1] : vector<16x16xf32> to vector<16xf32>
    %176 = vector.shape_cast %175 : vector<16xf32> to vector<16x1xf32>
    %177 = vector.broadcast %176 : vector<16x1xf32> to vector<16x16xf32>
    %178 = arith.subf %174, %177 : vector<16x16xf32>
    %179 = math.exp %178 : vector<16x16xf32>
    %cst_88 = arith.constant dense<0.000000e+00> : vector<16xf32>
    %180 = vector.multi_reduction <add>, %179, %cst_88 [1] : vector<16x16xf32> to vector<16xf32>
    %181 = vector.shape_cast %180 : vector<16xf32> to vector<16x1xf32>
    %182 = vector.broadcast %181 : vector<16x1xf32> to vector<16x16xf32>
    %183 = arith.divf %179, %182 : vector<16x16xf32>
    %cst_89 = arith.constant dense<0.000000e+00> : vector<16x64xf32>
    %184 = tpu.matmul %183, %170, %cst_89 {dimension_numbers = #tpu.dot_dimension_numbers<[1], [0], [0], [1], [0, 0, 1, 1], [], []>} : vector<16x16xf32>, vector<16x64xf32>, vector<16x64xf32> -> vector<16x64xf32>
    %185 = vector.extract_strided_slice %167 {offsets = [0, 0], sizes = [64, 128], strides = [1, 1]} : vector<128x128xf32> to vector<64x128xf32>
    %cst_90 = arith.constant dense<0.000000e+00> : vector<16x128xf32>
    %186 = tpu.matmul %184, %185, %cst_90 {dimension_numbers = #tpu.dot_dimension_numbers<[1], [0], [0], [1], [0, 0, 1, 1], [], []>} : vector<16x64xf32>, vector<64x128xf32>, vector<16x128xf32> -> vector<16x128xf32>
    %187 = vector.extract_strided_slice %165 {offsets = [0, 64], sizes = [16, 64], strides = [1, 1]} : vector<16x384xf32> to vector<16x64xf32>
    %188 = vector.extract_strided_slice %165 {offsets = [0, 192], sizes = [16, 64], strides = [1, 1]} : vector<16x384xf32> to vector<16x64xf32>
    %189 = vector.extract_strided_slice %165 {offsets = [0, 320], sizes = [16, 64], strides = [1, 1]} : vector<16x384xf32> to vector<16x64xf32>
    %cst_91 = arith.constant dense<0.000000e+00> : vector<16x16xf32>
    %190 = tpu.matmul %187, %188, %cst_91 {dimension_numbers = #tpu.dot_dimension_numbers<[1], [1], [0], [0], [0, 0, 1, 0], [], []>} : vector<16x64xf32>, vector<16x64xf32>, vector<16x16xf32> -> vector<16x16xf32>
    %cst_92 = arith.constant 1.250000e-01 : f32
    %191 = vector.broadcast %cst_92 : f32 to vector<16x16xf32>
    %192 = arith.mulf %190, %191 : vector<16x16xf32>
    %193 = arith.addf %192, %0 : vector<16x16xf32>
    %cst_93 = arith.constant dense<0xFF800000> : vector<16xf32>
    %194 = vector.multi_reduction <maximumf>, %193, %cst_93 [1] : vector<16x16xf32> to vector<16xf32>
    %195 = vector.shape_cast %194 : vector<16xf32> to vector<16x1xf32>
    %196 = vector.broadcast %195 : vector<16x1xf32> to vector<16x16xf32>
    %197 = arith.subf %193, %196 : vector<16x16xf32>
    %198 = math.exp %197 : vector<16x16xf32>
    %cst_94 = arith.constant dense<0.000000e+00> : vector<16xf32>
    %199 = vector.multi_reduction <add>, %198, %cst_94 [1] : vector<16x16xf32> to vector<16xf32>
    %200 = vector.shape_cast %199 : vector<16xf32> to vector<16x1xf32>
    %201 = vector.broadcast %200 : vector<16x1xf32> to vector<16x16xf32>
    %202 = arith.divf %198, %201 : vector<16x16xf32>
    %cst_95 = arith.constant dense<0.000000e+00> : vector<16x64xf32>
    %203 = tpu.matmul %202, %189, %cst_95 {dimension_numbers = #tpu.dot_dimension_numbers<[1], [0], [0], [1], [0, 0, 1, 1], [], []>} : vector<16x16xf32>, vector<16x64xf32>, vector<16x64xf32> -> vector<16x64xf32>
    %204 = vector.extract_strided_slice %167 {offsets = [64, 0], sizes = [64, 128], strides = [1, 1]} : vector<128x128xf32> to vector<64x128xf32>
    %cst_96 = arith.constant dense<0.000000e+00> : vector<16x128xf32>
    %205 = tpu.matmul %203, %204, %cst_96 {dimension_numbers = #tpu.dot_dimension_numbers<[1], [0], [0], [1], [0, 0, 1, 1], [], []>} : vector<16x64xf32>, vector<64x128xf32>, vector<16x128xf32> -> vector<16x128xf32>
    %206 = arith.addf %186, %205 : vector<16x128xf32>
    %c1_97 = arith.constant 1 : index
    %c0_98 = arith.constant 0 : index
    %c0_99 = arith.constant 0 : index
    %207 = vector.load %arg7[%c1_97, %c0_98, %c0_99] : memref<2x1x128xf32, #tpu.memory_space<vmem>>, vector<1x1x128xf32>
    %208 = vector.shape_cast %207 : vector<1x1x128xf32> to vector<1x128xf32>
    %209 = vector.broadcast %208 : vector<1x128xf32> to vector<16x128xf32>
    %210 = arith.addf %206, %209 : vector<16x128xf32>
    %211 = arith.addf %210, %158 : vector<16x128xf32>
    %c1_100 = arith.constant 1 : index
    %c0_101 = arith.constant 0 : index
    %c0_102 = arith.constant 0 : index
    %212 = vector.load %arg8[%c1_100, %c0_101, %c0_102] : memref<2x1x128xf32, #tpu.memory_space<vmem>>, vector<1x1x128xf32>
    %213 = vector.shape_cast %212 : vector<1x1x128xf32> to vector<1x128xf32>
    %c1_103 = arith.constant 1 : index
    %c0_104 = arith.constant 0 : index
    %c0_105 = arith.constant 0 : index
    %214 = vector.load %arg9[%c1_103, %c0_104, %c0_105] : memref<2x1x128xf32, #tpu.memory_space<vmem>>, vector<1x1x128xf32>
    %215 = vector.shape_cast %214 : vector<1x1x128xf32> to vector<1x128xf32>
    %cst_106 = arith.constant dense<0.000000e+00> : vector<16xf32>
    %216 = vector.multi_reduction <add>, %211, %cst_106 [1] : vector<16x128xf32> to vector<16xf32>
    %217 = vector.shape_cast %216 : vector<16xf32> to vector<16x1xf32>
    %cst_107 = arith.constant 1.280000e+02 : f32
    %218 = vector.broadcast %cst_107 : f32 to vector<16x1xf32>
    %219 = arith.divf %217, %218 : vector<16x1xf32>
    %220 = vector.broadcast %219 : vector<16x1xf32> to vector<16x128xf32>
    %221 = arith.subf %211, %220 : vector<16x128xf32>
    %222 = arith.mulf %221, %221 : vector<16x128xf32>
    %cst_108 = arith.constant dense<0.000000e+00> : vector<16xf32>
    %223 = vector.multi_reduction <add>, %222, %cst_108 [1] : vector<16x128xf32> to vector<16xf32>
    %224 = vector.shape_cast %223 : vector<16xf32> to vector<16x1xf32>
    %cst_109 = arith.constant 1.280000e+02 : f32
    %225 = vector.broadcast %cst_109 : f32 to vector<16x1xf32>
    %226 = arith.divf %224, %225 : vector<16x1xf32>
    %227 = vector.broadcast %219 : vector<16x1xf32> to vector<16x128xf32>
    %228 = arith.subf %211, %227 : vector<16x128xf32>
    %cst_110 = arith.constant 9.99999996E-13 : f32
    %229 = vector.broadcast %cst_110 : f32 to vector<16x1xf32>
    %230 = arith.addf %226, %229 : vector<16x1xf32>
    %231 = math.rsqrt %230 : vector<16x1xf32>
    %232 = vector.broadcast %231 : vector<16x1xf32> to vector<16x128xf32>
    %233 = arith.mulf %228, %232 : vector<16x128xf32>
    %234 = vector.broadcast %213 : vector<1x128xf32> to vector<16x128xf32>
    %235 = arith.mulf %233, %234 : vector<16x128xf32>
    %236 = vector.broadcast %215 : vector<1x128xf32> to vector<16x128xf32>
    %237 = arith.addf %235, %236 : vector<16x128xf32>
    %c1_111 = arith.constant 1 : index
    %c0_112 = arith.constant 0 : index
    %c0_113 = arith.constant 0 : index
    %238 = vector.load %arg10[%c1_111, %c0_112, %c0_113] : memref<2x128x512xf32, #tpu.memory_space<vmem>>, vector<1x128x512xf32>
    %239 = vector.shape_cast %238 : vector<1x128x512xf32> to vector<128x512xf32>
    %cst_114 = arith.constant dense<0.000000e+00> : vector<16x512xf32>
    %240 = tpu.matmul %237, %239, %cst_114 {dimension_numbers = #tpu.dot_dimension_numbers<[1], [0], [0], [1], [0, 0, 1, 1], [], []>} : vector<16x128xf32>, vector<128x512xf32>, vector<16x512xf32> -> vector<16x512xf32>
    %c1_115 = arith.constant 1 : index
    %c0_116 = arith.constant 0 : index
    %c0_117 = arith.constant 0 : index
    %241 = vector.load %arg11[%c1_115, %c0_116, %c0_117] : memref<2x1x512xf32, #tpu.memory_space<vmem>>, vector<1x1x512xf32>
    %242 = vector.shape_cast %241 : vector<1x1x512xf32> to vector<1x512xf32>
    %243 = vector.broadcast %242 : vector<1x512xf32> to vector<16x512xf32>
    %244 = arith.addf %240, %243 : vector<16x512xf32>
    %245 = arith.mulf %244, %244 : vector<16x512xf32>
    %246 = arith.mulf %244, %245 : vector<16x512xf32>
    %cst_118 = arith.constant 4.471500e-02 : f32
    %247 = vector.broadcast %cst_118 : f32 to vector<16x512xf32>
    %248 = arith.mulf %247, %246 : vector<16x512xf32>
    %249 = arith.addf %244, %248 : vector<16x512xf32>
    %cst_119 = arith.constant 0.797884583 : f32
    %250 = vector.broadcast %cst_119 : f32 to vector<16x512xf32>
    %251 = arith.mulf %250, %249 : vector<16x512xf32>
    %252 = math.tanh %251 : vector<16x512xf32>
    %cst_120 = arith.constant 1.000000e+00 : f32
    %253 = vector.broadcast %cst_120 : f32 to vector<16x512xf32>
    %254 = arith.addf %253, %252 : vector<16x512xf32>
    %cst_121 = arith.constant 5.000000e-01 : f32
    %255 = vector.broadcast %cst_121 : f32 to vector<16x512xf32>
    %256 = arith.mulf %255, %254 : vector<16x512xf32>
    %257 = arith.mulf %244, %256 : vector<16x512xf32>
    %c1_122 = arith.constant 1 : index
    %c0_123 = arith.constant 0 : index
    %c0_124 = arith.constant 0 : index
    %258 = vector.load %arg12[%c1_122, %c0_123, %c0_124] : memref<2x512x128xf32, #tpu.memory_space<vmem>>, vector<1x512x128xf32>
    %259 = vector.shape_cast %258 : vector<1x512x128xf32> to vector<512x128xf32>
    %cst_125 = arith.constant dense<0.000000e+00> : vector<16x128xf32>
    %260 = tpu.matmul %257, %259, %cst_125 {dimension_numbers = #tpu.dot_dimension_numbers<[1], [0], [0], [1], [0, 0, 1, 1], [], []>} : vector<16x512xf32>, vector<512x128xf32>, vector<16x128xf32> -> vector<16x128xf32>
    %c1_126 = arith.constant 1 : index
    %c0_127 = arith.constant 0 : index
    %c0_128 = arith.constant 0 : index
    %261 = vector.load %arg13[%c1_126, %c0_127, %c0_128] : memref<2x1x128xf32, #tpu.memory_space<vmem>>, vector<1x1x128xf32>
    %262 = vector.shape_cast %261 : vector<1x1x128xf32> to vector<1x128xf32>
    %263 = vector.broadcast %262 : vector<1x128xf32> to vector<16x128xf32>
    %264 = arith.addf %260, %263 : vector<16x128xf32>
    %265 = arith.addf %264, %237 : vector<16x128xf32>
    %c1_129 = arith.constant 1 : index
    %c0_130 = arith.constant 0 : index
    %c0_131 = arith.constant 0 : index
    %266 = vector.load %arg14[%c1_129, %c0_130, %c0_131] : memref<2x1x128xf32, #tpu.memory_space<vmem>>, vector<1x1x128xf32>
    %267 = vector.shape_cast %266 : vector<1x1x128xf32> to vector<1x128xf32>
    %c1_132 = arith.constant 1 : index
    %c0_133 = arith.constant 0 : index
    %c0_134 = arith.constant 0 : index
    %268 = vector.load %arg15[%c1_132, %c0_133, %c0_134] : memref<2x1x128xf32, #tpu.memory_space<vmem>>, vector<1x1x128xf32>
    %269 = vector.shape_cast %268 : vector<1x1x128xf32> to vector<1x128xf32>
    %cst_135 = arith.constant dense<0.000000e+00> : vector<16xf32>
    %270 = vector.multi_reduction <add>, %265, %cst_135 [1] : vector<16x128xf32> to vector<16xf32>
    %271 = vector.shape_cast %270 : vector<16xf32> to vector<16x1xf32>
    %cst_136 = arith.constant 1.280000e+02 : f32
    %272 = vector.broadcast %cst_136 : f32 to vector<16x1xf32>
    %273 = arith.divf %271, %272 : vector<16x1xf32>
    %274 = vector.broadcast %273 : vector<16x1xf32> to vector<16x128xf32>
    %275 = arith.subf %265, %274 : vector<16x128xf32>
    %276 = arith.mulf %275, %275 : vector<16x128xf32>
    %cst_137 = arith.constant dense<0.000000e+00> : vector<16xf32>
    %277 = vector.multi_reduction <add>, %276, %cst_137 [1] : vector<16x128xf32> to vector<16xf32>
    %278 = vector.shape_cast %277 : vector<16xf32> to vector<16x1xf32>
    %cst_138 = arith.constant 1.280000e+02 : f32
    %279 = vector.broadcast %cst_138 : f32 to vector<16x1xf32>
    %280 = arith.divf %278, %279 : vector<16x1xf32>
    %281 = vector.broadcast %273 : vector<16x1xf32> to vector<16x128xf32>
    %282 = arith.subf %265, %281 : vector<16x128xf32>
    %cst_139 = arith.constant 9.99999996E-13 : f32
    %283 = vector.broadcast %cst_139 : f32 to vector<16x1xf32>
    %284 = arith.addf %280, %283 : vector<16x1xf32>
    %285 = math.rsqrt %284 : vector<16x1xf32>
    %286 = vector.broadcast %285 : vector<16x1xf32> to vector<16x128xf32>
    %287 = arith.mulf %282, %286 : vector<16x128xf32>
    %288 = vector.broadcast %267 : vector<1x128xf32> to vector<16x128xf32>
    %289 = arith.mulf %287, %288 : vector<16x128xf32>
    %290 = vector.broadcast %269 : vector<1x128xf32> to vector<16x128xf32>
    %291 = arith.addf %289, %290 : vector<16x128xf32>
    %c0_140 = arith.constant 0 : index
    %c0_141 = arith.constant 0 : index
    %292 = vector.load %arg16[%c0_140, %c0_141] : memref<128x128xf32, #tpu.memory_space<vmem>>, vector<128x128xf32>
    %cst_142 = arith.constant dense<0.000000e+00> : vector<16x128xf32>
    %293 = tpu.matmul %291, %292, %cst_142 {dimension_numbers = #tpu.dot_dimension_numbers<[1], [0], [0], [1], [0, 0, 1, 1], [], []>} : vector<16x128xf32>, vector<128x128xf32>, vector<16x128xf32> -> vector<16x128xf32>
    %c0_143 = arith.constant 0 : index
    %c0_144 = arith.constant 0 : index
    %294 = vector.load %arg17[%c0_143, %c0_144] : memref<1x128xf32, #tpu.memory_space<vmem>>, vector<1x128xf32>
    %295 = vector.broadcast %294 : vector<1x128xf32> to vector<16x128xf32>
    %296 = arith.addf %293, %295 : vector<16x128xf32>
    %297 = math.tanh %296 : vector<16x128xf32>
    %c0_145 = arith.constant 0 : index
    %c0_146 = arith.constant 0 : index
    %298 = vector.load %arg18[%c0_145, %c0_146] : memref<128x128xf32, #tpu.memory_space<vmem>>, vector<128x128xf32>
    %cst_147 = arith.constant dense<0.000000e+00> : vector<16x128xf32>
    %299 = tpu.matmul %297, %298, %cst_147 {dimension_numbers = #tpu.dot_dimension_numbers<[1], [0], [0], [1], [0, 0, 1, 1], [], []>} : vector<16x128xf32>, vector<128x128xf32>, vector<16x128xf32> -> vector<16x128xf32>
    %c0_148 = arith.constant 0 : index
    %c0_149 = arith.constant 0 : index
    %300 = vector.load %arg19[%c0_148, %c0_149] : memref<1x128xf32, #tpu.memory_space<vmem>>, vector<1x128xf32>
    %301 = vector.broadcast %300 : vector<1x128xf32> to vector<16x128xf32>
    %302 = arith.addf %299, %301 : vector<16x128xf32>
    %cst_150 = arith.constant 0.000000e+00 : f32
    %303 = vector.broadcast %cst_150 : f32 to vector<16x128xf32>
    %304 = arith.maximumf %302, %303 : vector<16x128xf32>
    %c0_151 = arith.constant 0 : index
    %c0_152 = arith.constant 0 : index
    %305 = vector.load %arg20[%c0_151, %c0_152] : memref<128x128xf32, #tpu.memory_space<vmem>>, vector<128x128xf32>
    %cst_153 = arith.constant dense<0.000000e+00> : vector<16x128xf32>
    %306 = tpu.matmul %304, %305, %cst_153 {dimension_numbers = #tpu.dot_dimension_numbers<[1], [0], [0], [1], [0, 0, 1, 1], [], []>} : vector<16x128xf32>, vector<128x128xf32>, vector<16x128xf32> -> vector<16x128xf32>
    %c0_154 = arith.constant 0 : index
    %c0_155 = arith.constant 0 : index
    %307 = vector.load %arg21[%c0_154, %c0_155] : memref<1x128xf32, #tpu.memory_space<vmem>>, vector<1x128xf32>
    %308 = vector.broadcast %307 : vector<1x128xf32> to vector<16x128xf32>
    %309 = arith.addf %306, %308 : vector<16x128xf32>
    %c0_156 = arith.constant 0 : index
    %c0_157 = arith.constant 0 : index
    %310 = vector.load %arg22[%c0_156, %c0_157] : memref<16x128xf32, #tpu.memory_space<vmem>>, vector<16x128xf32>
    tpu.vector_store %arg22[%c0_156, %c0_157], %309 {strides = array<i32>} : memref<16x128xf32, #tpu.memory_space<vmem>>, vector<16x128xf32>,
    return
  }
}

</mosaic_0001>

<llo_original>
// kernel: bert_class_forward.1
$region0: #{bert_class_forward.1}
  #allocation0 [shape = 'u32[]', space=smem, size = 0x4, offset = 0x4, fixed_abs, tag = 'smem constant byte address 0x4 - core index']
  #allocation1 [shape = 'u32[144,128]{1,0:T(1,128)}', space=vmem, size = 0x12000, scoped, tag = 'internal scratch']
  %s0 = inlined_call_operand.vmem [shape: f32[16,128], index: 0, kind: input, shape index: {}]
  %s1 = inlined_call_operand.vmem [shape: f32[16,16], index: 1, kind: input, shape index: {}]
  %s2 = inlined_call_operand.vmem [shape: f32[1,128], index: 2, kind: input, shape index: {}]
  %s3 = inlined_call_operand.vmem [shape: f32[1,128], index: 3, kind: input, shape index: {}]
  %s4 = inlined_call_operand.hbm [shape: f32[2,128,384], index: 4, kind: input, shape index: {}]
  %s5 = inlined_call_operand.vmem [shape: f32[2,1,384], index: 5, kind: input, shape index: {}]
  %s6 = inlined_call_operand.vmem [shape: f32[2,128,128], index: 6, kind: input, shape index: {}]
  %s7 = inlined_call_operand.vmem [shape: f32[2,1,128], index: 7, kind: input, shape index: {}]
  %s8 = inlined_call_operand.vmem [shape: f32[2,1,128], index: 8, kind: input, shape index: {}]
  %s9 = inlined_call_operand.vmem [shape: f32[2,1,128], index: 9, kind: input, shape index: {}]
  %s10 = inlined_call_operand.hbm [shape: f32[2,128,512], index: 10, kind: input, shape index: {}]
  %s11 = inlined_call_operand.vmem [shape: f32[2,1,512], index: 11, kind: input, shape index: {}]
  %s12 = inlined_call_operand.hbm [shape: f32[2,512,128], index: 12, kind: input, shape index: {}]
  %s13 = inlined_call_operand.vmem [shape: f32[2,1,128], index: 13, kind: input, shape index: {}]
  %s14 = inlined_call_operand.vmem [shape: f32[2,1,128], index: 14, kind: input, shape index: {}]
  %s15 = inlined_call_operand.vmem [shape: f32[2,1,128], index: 15, kind: input, shape index: {}]
  %s16 = inlined_call_operand.vmem [shape: f32[128,128], index: 16, kind: input, shape index: {}]
  %s17 = inlined_call_operand.vmem [shape: f32[1,128], index: 17, kind: input, shape index: {}]
  %s18 = inlined_call_operand.hbm [shape: f32[128,128], index: 18, kind: input, shape index: {}]
  %s19 = inlined_call_operand.vmem [shape: f32[1,128], index: 19, kind: input, shape index: {}]
  %s20 = inlined_call_operand.hbm [shape: f32[128,128], index: 20, kind: input, shape index: {}]
  %s21 = inlined_call_operand.vmem [shape: f32[1,128], index: 21, kind: input, shape index: {}]
  %s22 = inlined_call_operand.vmem [shape: f32[16,128], index: 22, kind: output, shape index: {}]
  %s23 = sld [smem:[#allocation0]]
  $region118: #{bert_class_forward.1} parent=0
    _
  %s25 = ssub.s32 1, %s23
  %s26 = scalar_select 0, %s25, %s23
  $region1: #{bert_class_forward.1} parent=0
    #allocation2 [shape = 'u8[393216]{0}', space=vmem, size = 0x60000, scoped, tag = 'input window, operand 4, single buffered']
    #allocation3 [shape = 's32[1]{0}', space=sflag, size = 0x4, scoped, tag = 'scoped memory for bert_class_forward.1']
    #allocation4 [shape = 'u8[524288]{0}', space=vmem, size = 0x80000, scoped, tag = 'input window, operand 10, single buffered']
    #allocation5 [shape = 's32[1]{0}', space=sflag, size = 0x4, scoped, tag = 'scoped memory for bert_class_forward.1']
    #allocation6 [shape = 'u8[524288]{0}', space=vmem, size = 0x80000, scoped, tag = 'input window, operand 12, single buffered']
    #allocation7 [shape = 'u8[65536]{0}', space=vmem, size = 0x10000, scoped, tag = 'input window, operand 18, single buffered']
    #allocation8 [shape = 's32[1]{0}', space=sflag, size = 0x4, scoped, tag = 'scoped memory for bert_class_forward.1']
    #allocation9 [shape = 'u8[65536]{0}', space=vmem, size = 0x10000, scoped, tag = 'input window, operand 20, single buffered']
    %27 = vsyncpa [#allocation3], 0
    %28 = vsyncpa [#allocation5], 0
    %29 = vsyncpa [#allocation8], 0
    // Predicated region
    $region2: #{bert_class_forward.1} parent=1 // pred_check
      _
    $region3: #{bert_class_forward.1} parent=1 // pred_check_branch
      %31 = sbr.rel (0) target = $region5
    $region4: #{bert_class_forward.1} parent=1 // pred_region
      _
    $region5: #{bert_class_forward.1} parent=1 // pred_fallthru
      _
    // Predicated region
    $region6: #{bert_class_forward.1} parent=1 // pred_check
      _
    $region7: #{bert_class_forward.1} parent=1 // pred_check_branch
      %33 = sbr.rel (0) target = $region9
    $region8: #{bert_class_forward.1} parent=1 // pred_region
      _
    $region9: #{bert_class_forward.1} parent=1 // pred_fallthru
      _
    // Predicated region
    $region10: #{bert_class_forward.1} parent=1 // pred_check
      _
    $region11: #{bert_class_forward.1} parent=1 // pred_check_branch
      %35 = sbr.rel (0) target = $region13
    $region12: #{bert_class_forward.1} parent=1 // pred_region
      _
    $region13: #{bert_class_forward.1} parent=1 // pred_fallthru
      _
    // Predicated region
    $region14: #{bert_class_forward.1} parent=1 // pred_check
      _
    $region15: #{bert_class_forward.1} parent=1 // pred_check_branch
      %37 = sbr.rel (0) target = $region17
    $region16: #{bert_class_forward.1} parent=1 // pred_region
      _
    $region17: #{bert_class_forward.1} parent=1 // pred_fallthru
      _
    // Predicated region
    $region18: #{bert_class_forward.1} parent=1 // pred_check
      _
    $region19: #{bert_class_forward.1} parent=1 // pred_check_branch
      %39 = sbr.rel (0) target = $region21
    $region20: #{bert_class_forward.1} parent=1 // pred_region
      %s41 = ssub.s32 12288, 12288
      %42 = vsyncadd [#allocation3], %s41
      %s43 = sshll.u32 [#allocation2], 4
      %s44 = int_to_ptr.vmem [resolvable:$true] %s43
      %49 = dma.hbm_to_vmem [thread:$0]  %s4, 12288, %s44, [#allocation3], 384, 384, 24
    $region21: #{bert_class_forward.1} parent=1 // pred_fallthru
      _
    // Predicated region
    $region22: #{bert_class_forward.1} parent=1 // pred_check
      _
    $region23: #{bert_class_forward.1} parent=1 // pred_check_branch
      %51 = sbr.rel (0) target = $region25
    $region24: #{bert_class_forward.1} parent=1 // pred_region
      _
    $region25: #{bert_class_forward.1} parent=1 // pred_fallthru
      _
    // Predicated region
    $region26: #{bert_class_forward.1} parent=1 // pred_check
      _
    $region27: #{bert_class_forward.1} parent=1 // pred_check_branch
      %53 = sbr.rel (0) target = $region29
    $region28: #{bert_class_forward.1} parent=1 // pred_region
      _
    $region29: #{bert_class_forward.1} parent=1 // pred_fallthru
      _
    // Predicated region
    $region30: #{bert_class_forward.1} parent=1 // pred_check
      _
    $region31: #{bert_class_forward.1} parent=1 // pred_check_branch
      %55 = sbr.rel (0) target = $region33
    $region32: #{bert_class_forward.1} parent=1 // pred_region
      _
    $region33: #{bert_class_forward.1} parent=1 // pred_fallthru
      _
    // Predicated region
    $region34: #{bert_class_forward.1} parent=1 // pred_check
      _
    $region35: #{bert_class_forward.1} parent=1 // pred_check_branch
      %57 = sbr.rel (0) target = $region37
    $region36: #{bert_class_forward.1} parent=1 // pred_region
      _
    $region37: #{bert_class_forward.1} parent=1 // pred_fallthru
      _
    // Predicated region
    $region38: #{bert_class_forward.1} parent=1 // pred_check
      _
    $region39: #{bert_class_forward.1} parent=1 // pred_check_branch
      %59 = sbr.rel (0) target = $region41
    $region40: #{bert_class_forward.1} parent=1 // pred_region
      _
    $region41: #{bert_class_forward.1} parent=1 // pred_fallthru
      _
    // Predicated region
    $region42: #{bert_class_forward.1} parent=1 // pred_check
      _
    $region43: #{bert_class_forward.1} parent=1 // pred_check_branch
      %61 = sbr.rel (0) target = $region45
    $region44: #{bert_class_forward.1} parent=1 // pred_region
      %s63 = ssub.s32 16384, 16384
      %64 = vsyncadd [#allocation5], %s63
      %s65 = sshll.u32 [#allocation4], 4
      %s66 = int_to_ptr.vmem [resolvable:$true] %s65
      %71 = dma.hbm_to_vmem [thread:$0]  %s10, 16384, %s66, [#allocation5], 512, 512, 32
    $region45: #{bert_class_forward.1} parent=1 // pred_fallthru
      _
    // Predicated region
    $region46: #{bert_class_forward.1} parent=1 // pred_check
      _
    $region47: #{bert_class_forward.1} parent=1 // pred_check_branch
      %73 = sbr.rel (0) target = $region49
    $region48: #{bert_class_forward.1} parent=1 // pred_region
      _
    $region49: #{bert_class_forward.1} parent=1 // pred_fallthru
      _
    // Predicated region
    $region50: #{bert_class_forward.1} parent=1 // pred_check
      _
    $region51: #{bert_class_forward.1} parent=1 // pred_check_branch
      %75 = sbr.rel (0) target = $region53
    $region52: #{bert_class_forward.1} parent=1 // pred_region
      %s77 = ssub.s32 16384, 16384
      %78 = vsyncadd [#allocation5], %s77
      %s79 = sshll.u32 [#allocation6], 4
      %s80 = int_to_ptr.vmem [resolvable:$true] %s79
      %85 = dma.hbm_to_vmem [thread:$0]  %s12, 16384, %s80, [#allocation5], 128, 128, 8
    $region53: #{bert_class_forward.1} parent=1 // pred_fallthru
      _
    // Predicated region
    $region54: #{bert_class_forward.1} parent=1 // pred_check
      _
    $region55: #{bert_class_forward.1} parent=1 // pred_check_branch
      %87 = sbr.rel (0) target = $region57
    $region56: #{bert_class_forward.1} parent=1 // pred_region
      _
    $region57: #{bert_class_forward.1} parent=1 // pred_fallthru
      _
    // Predicated region
    $region58: #{bert_class_forward.1} parent=1 // pred_check
      _
    $region59: #{bert_class_forward.1} parent=1 // pred_check_branch
      %89 = sbr.rel (0) target = $region61
    $region60: #{bert_class_forward.1} parent=1 // pred_region
      _
    $region61: #{bert_class_forward.1} parent=1 // pred_fallthru
      _
    // Predicated region
    $region62: #{bert_class_forward.1} parent=1 // pred_check
      _
    $region63: #{bert_class_forward.1} parent=1 // pred_check_branch
      %91 = sbr.rel (0) target = $region65
    $region64: #{bert_class_forward.1} parent=1 // pred_region
      _
    $region65: #{bert_class_forward.1} parent=1 // pred_fallthru
      _
    // Predicated region
    $region66: #{bert_class_forward.1} parent=1 // pred_check
      _
    $region67: #{bert_class_forward.1} parent=1 // pred_check_branch
      %93 = sbr.rel (0) target = $region69
    $region68: #{bert_class_forward.1} parent=1 // pred_region
      _
    $region69: #{bert_class_forward.1} parent=1 // pred_fallthru
      _
    // Predicated region
    $region70: #{bert_class_forward.1} parent=1 // pred_check
      _
    $region71: #{bert_class_forward.1} parent=1 // pred_check_branch
      %95 = sbr.rel (0) target = $region73
    $region72: #{bert_class_forward.1} parent=1 // pred_region
      _
    $region73: #{bert_class_forward.1} parent=1 // pred_fallthru
      _
    // Predicated region
    $region74: #{bert_class_forward.1} parent=1 // pred_check
      _
    $region75: #{bert_class_forward.1} parent=1 // pred_check_branch
      %97 = sbr.rel (0) target = $region77
    $region76: #{bert_class_forward.1} parent=1 // pred_region
      %s99 = ssub.s32 2048, 2048
      %100 = vsyncadd [#allocation8], %s99
      %s101 = sshll.u32 [#allocation7], 4
      %s102 = int_to_ptr.vmem [resolvable:$true] %s101
      %107 = dma.hbm_to_vmem [thread:$0]  %s18, 2048, %s102, [#allocation8], 128, 128, 8
    $region77: #{bert_class_forward.1} parent=1 // pred_fallthru
      _
    // Predicated region
    $region78: #{bert_class_forward.1} parent=1 // pred_check
      _
    $region79: #{bert_class_forward.1} parent=1 // pred_check_branch
      %109 = sbr.rel (0) target = $region81
    $region80: #{bert_class_forward.1} parent=1 // pred_region
      _
    $region81: #{bert_class_forward.1} parent=1 // pred_fallthru
      _
    // Predicated region
    $region82: #{bert_class_forward.1} parent=1 // pred_check
      _
    $region83: #{bert_class_forward.1} parent=1 // pred_check_branch
      %111 = sbr.rel (0) target = $region85
    $region84: #{bert_class_forward.1} parent=1 // pred_region
      %s113 = ssub.s32 2048, 2048
      %114 = vsyncadd [#allocation8], %s113
      %s115 = sshll.u32 [#allocation9], 4
      %s116 = int_to_ptr.vmem [resolvable:$true] %s115
      %121 = dma.hbm_to_vmem [thread:$0]  %s20, 2048, %s116, [#allocation8], 128, 128, 8
    $region85: #{bert_class_forward.1} parent=1 // pred_fallthru
      _
    // Predicated region
    $region86: #{bert_class_forward.1} parent=1 // pred_check
      _
    $region87: #{bert_class_forward.1} parent=1 // pred_check_branch
      %123 = sbr.rel (0) target = $region89
    $region88: #{bert_class_forward.1} parent=1 // pred_region
      _
    $region89: #{bert_class_forward.1} parent=1 // pred_fallthru
      _
    // Predicated region
    $region90: #{bert_class_forward.1} parent=1 // pred_check
      _
    $region91: #{bert_class_forward.1} parent=1 // pred_check_branch
      %125 = sbr.rel (0) target = $region93
    $region92: #{bert_class_forward.1} parent=1 // pred_region
      %126 = dma.done [#allocation3], 12288
    $region93: #{bert_class_forward.1} parent=1 // pred_fallthru
      _
    // Predicated region
    $region94: #{bert_class_forward.1} parent=1 // pred_check
      _
    $region95: #{bert_class_forward.1} parent=1 // pred_check_branch
      %128 = sbr.rel (0) target = $region97
    $region96: #{bert_class_forward.1} parent=1 // pred_region
      %129 = dma.done [#allocation5], 16384
    $region97: #{bert_class_forward.1} parent=1 // pred_fallthru
      _
    // Predicated region
    $region98: #{bert_class_forward.1} parent=1 // pred_check
      _
    $region99: #{bert_class_forward.1} parent=1 // pred_check_branch
      %131 = sbr.rel (0) target = $region101
    $region100: #{bert_class_forward.1} parent=1 // pred_region
      %132 = dma.done [#allocation5], 16384
    $region101: #{bert_class_forward.1} parent=1 // pred_fallthru
      _
    // Predicated region
    $region102: #{bert_class_forward.1} parent=1 // pred_check
      _
    $region103: #{bert_class_forward.1} parent=1 // pred_check_branch
      %134 = sbr.rel (0) target = $region105
    $region104: #{bert_class_forward.1} parent=1 // pred_region
      %135 = dma.done [#allocation8], 2048
    $region105: #{bert_class_forward.1} parent=1 // pred_fallthru
      _
    // Predicated region
    $region106: #{bert_class_forward.1} parent=1 // pred_check
      _
    $region107: #{bert_class_forward.1} parent=1 // pred_check_branch
      %137 = sbr.rel (0) target = $region109
    $region108: #{bert_class_forward.1} parent=1 // pred_region
      %138 = dma.done [#allocation8], 2048
    $region109: #{bert_class_forward.1} parent=1 // pred_fallthru
      _
    %v139 = vld [vmem:[%s1] sm:$0xff]
    %v140 = vld [vmem:[%s1 + $0x8] sm:$0xff]
    %v141 = vld [vmem:[%s0] sm:$0xff]
    %v142 = vld [vmem:[%s0 + $0x8] sm:$0xff]
    %v143 = vld [vmem:[%s2] sm:$0x1]
    %v144 = vld [vmem:[%s3] sm:$0x1]
    %145 = vadd.xlane.f32.xlu0 %v141
    %v146 = vpop.xlane.xlu0 %145
    %147 = vadd.xlane.f32.xlu0 %v142
    %v148 = vpop.xlane.xlu0 %147
    %v149 = vrcp.pop 128.0
    %v150 = vmul.f32 %v146, %v149
    %v151 = vmul.f32 %v148, %v149
    %v152 = vsub.f32 %v141, %v150
    %v153 = vsub.f32 %v142, %v151
    %v154 = vmul.f32 %v152, %v152
    %v155 = vmul.f32 %v153, %v153
    %156 = vadd.xlane.f32.xlu0 %v154
    %v157 = vpop.xlane.xlu0 %156
    %158 = vadd.xlane.f32.xlu0 %v155
    %v159 = vpop.xlane.xlu0 %158
    %v160 = vmul.f32 %v157, %v149
    %v161 = vmul.f32 %v159, %v149
    %v162 = vadd.f32 %v160, 1e-12
    %v163 = vadd.f32 %v161, 1e-12
    %v164 = vrsqrt.pop %v162
    %v165 = vrsqrt.pop %v163
    %v166 = vmul.f32 %v152, %v164
    %v167 = vmul.f32 %v153, %v165
    %v169 = vlaneseq
    %v170 = vshrl.u32 %v169, 7
    %v171 = vsub.s32 0, %v170
    %v172 = vrot.slane %v143, %v171
    %v174 = vmul.f32 %v166, %v172
    %v175 = vmul.f32 %v167, %v172
    %v177 = vlaneseq
    %v178 = vshrl.u32 %v177, 7
    %v179 = vsub.s32 0, %v178
    %v180 = vrot.slane %v144, %v179
    %v182 = vadd.f32 %v174, %v180
    %v183 = vadd.f32 %v175, %v180
    %v184 = vld [vmem:[#allocation2] sm:$0xff]
    %v185 = vld [vmem:[#allocation2 + $0x8] sm:$0xff]
    %v186 = vld [vmem:[#allocation2 + $0x10] sm:$0xff]
    %v187 = vld [vmem:[#allocation2 + $0x18] sm:$0xff]
    %v188 = vld [vmem:[#allocation2 + $0x20] sm:$0xff]
    %v189 = vld [vmem:[#allocation2 + $0x28] sm:$0xff]
    %v190 = vld [vmem:[#allocation2 + $0x30] sm:$0xff]
    %v191 = vld [vmem:[#allocation2 + $0x38] sm:$0xff]
    %v192 = vld [vmem:[#allocation2 + $0x40] sm:$0xff]
    %v193 = vld [vmem:[#allocation2 + $0x48] sm:$0xff]
    %v194 = vld [vmem:[#allocation2 + $0x50] sm:$0xff]
    %v195 = vld [vmem:[#allocation2 + $0x58] sm:$0xff]
    %v196 = vld [vmem:[#allocation2 + $0x60] sm:$0xff]
    %v197 = vld [vmem:[#allocation2 + $0x68] sm:$0xff]
    %v198 = vld [vmem:[#allocation2 + $0x70] sm:$0xff]
    %v199 = vld [vmem:[#allocation2 + $0x78] sm:$0xff]
    %v200 = vld [vmem:[#allocation2 + $0x80] sm:$0xff]
    %v201 = vld [vmem:[#allocation2 + $0x88] sm:$0xff]
    %v202 = vld [vmem:[#allocation2 + $0x90] sm:$0xff]
    %v203 = vld [vmem:[#allocation2 + $0x98] sm:$0xff]
    %v204 = vld [vmem:[#allocation2 + $0xa0] sm:$0xff]
    %v205 = vld [vmem:[#allocation2 + $0xa8] sm:$0xff]
    %v206 = vld [vmem:[#allocation2 + $0xb0] sm:$0xff]
    %v207 = vld [vmem:[#allocation2 + $0xb8] sm:$0xff]
    %v208 = vld [vmem:[#allocation2 + $0xc0] sm:$0xff]
    %v209 = vld [vmem:[#allocation2 + $0xc8] sm:$0xff]
    %v210 = vld [vmem:[#allocation2 + $0xd0] sm:$0xff]
    %v211 = vld [vmem:[#allocation2 + $0xd8] sm:$0xff]
    %v212 = vld [vmem:[#allocation2 + $0xe0] sm:$0xff]
    %v213 = vld [vmem:[#allocation2 + $0xe8] sm:$0xff]
    %v214 = vld [vmem:[#allocation2 + $0xf0] sm:$0xff]
    %v215 = vld [vmem:[#allocation2 + $0xf8] sm:$0xff]
    %v216 = vld [vmem:[#allocation2 + $0x100] sm:$0xff]
    %v217 = vld [vmem:[#allocation2 + $0x108] sm:$0xff]
    %v218 = vld [vmem:[#allocation2 + $0x110] sm:$0xff]
    %v219 = vld [vmem:[#allocation2 + $0x118] sm:$0xff]
    %v220 = vld [vmem:[#allocation2 + $0x120] sm:$0xff]
    %v221 = vld [vmem:[#allocation2 + $0x128] sm:$0xff]
    %v222 = vld [vmem:[#allocation2 + $0x130] sm:$0xff]
    %v223 = vld [vmem:[#allocation2 + $0x138] sm:$0xff]
    %v224 = vld [vmem:[#allocation2 + $0x140] sm:$0xff]
    %v225 = vld [vmem:[#allocation2 + $0x148] sm:$0xff]
    %v226 = vld [vmem:[#allocation2 + $0x150] sm:$0xff]
    %v227 = vld [vmem:[#allocation2 + $0x158] sm:$0xff]
    %v228 = vld [vmem:[#allocation2 + $0x160] sm:$0xff]
    %v229 = vld [vmem:[#allocation2 + $0x168] sm:$0xff]
    %v230 = vld [vmem:[#allocation2 + $0x170] sm:$0xff]
    %v231 = vld [vmem:[#allocation2 + $0x178] sm:$0xff]
    %v232 = vld [vmem:[%s5] sm:$0x7]
    %v234 = vlaneseq
    %v235 = vshrl.u32 %v234, 7
    %v236 = vsub.s32 0, %v235
    %v237 = vrot.slane %v232, %v236
    %v238 = vlaneseq
    %v239 = vshrl.u32 %v238, 7
    %v240 = vsub.s32 1, %v239
    %v241 = vrot.slane %v232, %v240
    %v242 = vlaneseq
    %v243 = vshrl.u32 %v242, 7
    %v244 = vsub.s32 2, %v243
    %v245 = vrot.slane %v232, %v244
    %249 = vmatprep.subr.mxu0 %v185
    %250 = vmatpush1.msra.mxu0 %v184
    %251 = vmatprep.subr.mxu0 %v188
    %252 = vmatpush1.msra.mxu0 %v187
    %253 = vmatprep.subr.mxu0 %v191
    %254 = vmatpush1.msra.mxu0 %v190
    %255 = vmatprep.subr.mxu0 %v194
    %256 = vmatpush1.msra.mxu0 %v193
    %257 = vmatprep.subr.mxu0 %v197
    %258 = vmatpush1.msra.mxu0 %v196
    %259 = vmatprep.subr.mxu0 %v200
    %260 = vmatpush1.msra.mxu0 %v199
    %261 = vmatprep.subr.mxu0 %v203
    %262 = vmatpush1.msra.mxu0 %v202
    %263 = vmatprep.subr.mxu0 %v206
    %264 = vmatpush1.msra.mxu0 %v205
    %265 = vmatprep.subr.mxu0 %v209
    %266 = vmatpush1.msra.mxu0 %v208
    %267 = vmatprep.subr.mxu0 %v212
    %268 = vmatpush1.msra.mxu0 %v211
    %269 = vmatprep.subr.mxu0 %v215
    %270 = vmatpush1.msra.mxu0 %v214
    %271 = vmatprep.subr.mxu0 %v218
    %272 = vmatpush1.msra.mxu0 %v217
    %273 = vmatprep.subr.mxu0 %v221
    %274 = vmatpush1.msra.mxu0 %v220
    %275 = vmatprep.subr.mxu0 %v224
    %276 = vmatpush1.msra.mxu0 %v223
    %277 = vmatprep.subr.mxu0 %v227
    %278 = vmatpush1.msra.mxu0 %v226
    %279 = vmatprep.subr.mxu0 %v230
    %280 = vmatpush1.msra.mxu0 %v229
    %281 = vmatprep.subr.mxu0 0.0
    %282 = vmatpush1.msra.mxu0 0.0
    %283 = vmatprep.subr.mxu0 0.0
    %284 = vmatpush1.msra.mxu0 0.0
    %285 = vmatprep.subr.mxu0 0.0
    %286 = vmatpush1.msra.mxu0 0.0
    %287 = vmatprep.subr.mxu0 0.0
    %288 = vmatpush1.msra.mxu0 0.0
    %289 = vmatprep.subr.mxu0 0.0
    %290 = vmatpush1.msra.mxu0 0.0
    %291 = vmatprep.subr.mxu0 0.0
    %292 = vmatpush1.msra.mxu0 0.0
    %293 = vmatprep.subr.mxu0 0.0
    %294 = vmatpush1.msra.mxu0 0.0
    %295 = vmatprep.subr.mxu0 0.0
    %296 = vmatpush1.msra.mxu0 0.0
    %297 = vmatprep.subr.mxu0 0.0
    %298 = vmatpush1.msra.mxu0 0.0
    %299 = vmatprep.subr.mxu0 0.0
    %300 = vmatpush1.msra.mxu0 0.0
    %301 = vmatprep.subr.mxu0 0.0
    %302 = vmatpush1.msra.mxu0 0.0
    %303 = vmatprep.subr.mxu0 0.0
    %304 = vmatpush1.msra.mxu0 0.0
    %305 = vmatprep.subr.mxu0 0.0
    %306 = vmatpush1.msra.mxu0 0.0
    %307 = vmatprep.subr.mxu0 0.0
    %308 = vmatpush1.msra.mxu0 0.0
    %309 = vmatprep.subr.mxu0 0.0
    %310 = vmatpush1.msra.mxu0 0.0
    %311 = vmatprep.subr.mxu0 0.0
    %312 = vmatpush1.msra.mxu0 0.0
    %313 = vmatprep.mubr.f32.mxu0 0.0
    %314 = vmatmul.mubr.f32.gmra.mrb[0].mxu0 %v182
    %v315 = vpop.f32.mrb[0].mxu0
    %v316 = vadd.f32 %v237, %v315
    %v317 = vpop.f32.mrb[0].mxu0
    %v318 = vadd.f32 %v241, %v317
    %319 = vmatprep.mubr.f32.mxu0 0.0
    %320 = vmatmul.mubr.f32.gmra.mrb[0].mxu0 %v183
    %v321 = vpop.f32.mrb[0].mxu0
    %v322 = vadd.f32 %v237, %v321
    %v323 = vpop.f32.mrb[0].mxu0
    %v324 = vadd.f32 %v241, %v323
    %325 = vdwg.mxu0
    %326 = vmatprep.subr.mxu0 0.0
    %327 = vmatpush1.msra.mxu0 %v186
    %328 = vmatprep.subr.mxu0 0.0
    %329 = vmatpush1.msra.mxu0 %v189
    %330 = vmatprep.subr.mxu0 0.0
    %331 = vmatpush1.msra.mxu0 %v192
    %332 = vmatprep.subr.mxu0 0.0
    %333 = vmatpush1.msra.mxu0 %v195
    %334 = vmatprep.subr.mxu0 0.0
    %335 = vmatpush1.msra.mxu0 %v198
    %336 = vmatprep.subr.mxu0 0.0
    %337 = vmatpush1.msra.mxu0 %v201
    %338 = vmatprep.subr.mxu0 0.0
    %339 = vmatpush1.msra.mxu0 %v204
    %340 = vmatprep.subr.mxu0 0.0
    %341 = vmatpush1.msra.mxu0 %v207
    %342 = vmatprep.subr.mxu0 0.0
    %343 = vmatpush1.msra.mxu0 %v210
    %344 = vmatprep.subr.mxu0 0.0
    %345 = vmatpush1.msra.mxu0 %v213
    %346 = vmatprep.subr.mxu0 0.0
    %347 = vmatpush1.msra.mxu0 %v216
    %348 = vmatprep.subr.mxu0 0.0
    %349 = vmatpush1.msra.mxu0 %v219
    %350 = vmatprep.subr.mxu0 0.0
    %351 = vmatpush1.msra.mxu0 %v222
    %352 = vmatprep.subr.mxu0 0.0
    %353 = vmatpush1.msra.mxu0 %v225
    %354 = vmatprep.subr.mxu0 0.0
    %355 = vmatpush1.msra.mxu0 %v228
    %356 = vmatprep.subr.mxu0 0.0
    %357 = vmatpush1.msra.mxu0 %v231
    %358 = vmatprep.subr.mxu0 0.0
    %359 = vmatpush1.msra.mxu0 0.0
    %360 = vmatprep.subr.mxu0 0.0
    %361 = vmatpush1.msra.mxu0 0.0
    %362 = vmatprep.subr.mxu0 0.0
    %363 = vmatpush1.msra.mxu0 0.0
    %364 = vmatprep.subr.mxu0 0.0
    %365 = vmatpush1.msra.mxu0 0.0
    %366 = vmatprep.subr.mxu0 0.0
    %367 = vmatpush1.msra.mxu0 0.0
    %368 = vmatprep.subr.mxu0 0.0
    %369 = vmatpush1.msra.mxu0 0.0
    %370 = vmatprep.subr.mxu0 0.0
    %371 = vmatpush1.msra.mxu0 0.0
    %372 = vmatprep.subr.mxu0 0.0
    %373 = vmatpush1.msra.mxu0 0.0
    %374 = vmatprep.subr.mxu0 0.0
    %375 = vmatpush1.msra.mxu0 0.0
    %376 = vmatprep.subr.mxu0 0.0
    %377 = vmatpush1.msra.mxu0 0.0
    %378 = vmatprep.subr.mxu0 0.0
    %379 = vmatpush1.msra.mxu0 0.0
    %380 = vmatprep.subr.mxu0 0.0
    %381 = vmatpush1.msra.mxu0 0.0
    %382 = vmatprep.subr.mxu0 0.0
    %383 = vmatpush1.msra.mxu0 0.0
    %384 = vmatprep.subr.mxu0 0.0
    %385 = vmatpush1.msra.mxu0 0.0
    %386 = vmatprep.subr.mxu0 0.0
    %387 = vmatpush1.msra.mxu0 0.0
    %388 = vmatprep.subr.mxu0 0.0
    %389 = vmatpush1.msra.mxu0 0.0
    %390 = vmatprep.mubr.f32.mxu0 0.0
    %391 = vmatmul.mubr.f32.gmra.mrb[0].mxu0 %v182
    %v392 = vpop.f32.mrb[0].mxu0
    %v393 = vadd.f32 %v245, %v392
    %v394 = vpop.f32.mrb[0].mxu0
    %395 = vmatprep.mubr.f32.mxu0 0.0
    %396 = vmatmul.mubr.f32.gmra.mrb[0].mxu0 %v183
    %v397 = vpop.f32.mrb[0].mxu0
    %v398 = vadd.f32 %v245, %v397
    %v399 = vpop.f32.mrb[0].mxu0
    %400 = vdwg.mxu0
    %v401 = vld [vmem:[%s6] sm:$0xff]
    %v402 = vld [vmem:[%s6 + $0x8] sm:$0xff]
    %v403 = vld [vmem:[%s6 + $0x10] sm:$0xff]
    %v404 = vld [vmem:[%s6 + $0x18] sm:$0xff]
    %v405 = vld [vmem:[%s6 + $0x20] sm:$0xff]
    %v406 = vld [vmem:[%s6 + $0x28] sm:$0xff]
    %v407 = vld [vmem:[%s6 + $0x30] sm:$0xff]
    %v408 = vld [vmem:[%s6 + $0x38] sm:$0xff]
    %v409 = vld [vmem:[%s6 + $0x40] sm:$0xff]
    %v410 = vld [vmem:[%s6 + $0x48] sm:$0xff]
    %v411 = vld [vmem:[%s6 + $0x50] sm:$0xff]
    %v412 = vld [vmem:[%s6 + $0x58] sm:$0xff]
    %v413 = vld [vmem:[%s6 + $0x60] sm:$0xff]
    %v414 = vld [vmem:[%s6 + $0x68] sm:$0xff]
    %v415 = vld [vmem:[%s6 + $0x70] sm:$0xff]
    %v416 = vld [vmem:[%s6 + $0x78] sm:$0xff]
    %vm417 = vcmask 523264
    %v419 = vsel %vm417, %v316, 0
    %v422 = vsel %vm417, %v322, 0
    %v425 = vsel %vm417, %v318, 0
    %v428 = vsel %vm417, %v324, 0
    %430 = vmatprep.subr.mxu0 0.0
    %431 = vmatpush1.xpose.msra.mxu0 %v425
    %432 = vmatprep.subr.mxu0 0.0
    %433 = vmatpush1.xpose.msra.mxu0 %v428
    %434 = vmatprep.subr.mxu0 0.0
    %435 = vmatpush1.xpose.msra.mxu0 0.0
    %436 = vmatprep.subr.mxu0 0.0
    %437 = vmatpush1.xpose.msra.mxu0 0.0
    %438 = vmatprep.subr.mxu0 0.0
    %439 = vmatpush1.xpose.msra.mxu0 0.0
    %440 = vmatprep.subr.mxu0 0.0
    %441 = vmatpush1.xpose.msra.mxu0 0.0
    %442 = vmatprep.subr.mxu0 0.0
    %443 = vmatpush1.xpose.msra.mxu0 0.0
    %444 = vmatprep.subr.mxu0 0.0
    %445 = vmatpush1.xpose.msra.mxu0 0.0
    %446 = vmatprep.subr.mxu0 0.0
    %447 = vmatpush1.xpose.msra.mxu0 0.0
    %448 = vmatprep.subr.mxu0 0.0
    %449 = vmatpush1.xpose.msra.mxu0 0.0
    %450 = vmatprep.subr.mxu0 0.0
    %451 = vmatpush1.xpose.msra.mxu0 0.0
    %452 = vmatprep.subr.mxu0 0.0
    %453 = vmatpush1.xpose.msra.mxu0 0.0
    %454 = vmatprep.subr.mxu0 0.0
    %455 = vmatpush1.xpose.msra.mxu0 0.0
    %456 = vmatprep.subr.mxu0 0.0
    %457 = vmatpush1.xpose.msra.mxu0 0.0
    %458 = vmatprep.subr.mxu0 0.0
    %459 = vmatpush1.xpose.msra.mxu0 0.0
    %460 = vmatprep.subr.mxu0 0.0
    %461 = vmatpush1.xpose.msra.mxu0 0.0
    %462 = vmatprep.subr.mxu0 0.0
    %463 = vmatpush1.xpose.msra.mxu0 0.0
    %464 = vmatprep.subr.mxu0 0.0
    %465 = vmatpush1.xpose.msra.mxu0 0.0
    %466 = vmatprep.subr.mxu0 0.0
    %467 = vmatpush1.xpose.msra.mxu0 0.0
    %468 = vmatprep.subr.mxu0 0.0
    %469 = vmatpush1.xpose.msra.mxu0 0.0
    %470 = vmatprep.subr.mxu0 0.0
    %471 = vmatpush1.xpose.msra.mxu0 0.0
    %472 = vmatprep.subr.mxu0 0.0
    %473 = vmatpush1.xpose.msra.mxu0 0.0
    %474 = vmatprep.subr.mxu0 0.0
    %475 = vmatpush1.xpose.msra.mxu0 0.0
    %476 = vmatprep.subr.mxu0 0.0
    %477 = vmatpush1.xpose.msra.mxu0 0.0
    %478 = vmatprep.subr.mxu0 0.0
    %479 = vmatpush1.xpose.msra.mxu0 0.0
    %480 = vmatprep.subr.mxu0 0.0
    %481 = vmatpush1.xpose.msra.mxu0 0.0
    %482 = vmatprep.subr.mxu0 0.0
    %483 = vmatpush1.xpose.msra.mxu0 0.0
    %484 = vmatprep.subr.mxu0 0.0
    %485 = vmatpush1.xpose.msra.mxu0 0.0
    %486 = vmatprep.subr.mxu0 0.0
    %487 = vmatpush1.xpose.msra.mxu0 0.0
    %488 = vmatprep.subr.mxu0 0.0
    %489 = vmatpush1.xpose.msra.mxu0 0.0
    %490 = vmatprep.subr.mxu0 0.0
    %491 = vmatpush1.xpose.msra.mxu0 0.0
    %492 = vmatprep.subr.mxu0 0.0
    %493 = vmatpush1.xpose.msra.mxu0 0.0
    %494 = vmatprep.mubr.f32.mxu0 0.0
    %495 = vmatmul.mubr.f32.gmra.mrb[0].mxu0 %v419
    %v496 = vpop.f32.mrb[0].mxu0
    %v497 = vadd.f32 0.0, %v496
    %v498 = vpop.f32.mrb[0].mxu0
    %499 = vmatprep.mubr.f32.mxu0 0.0
    %500 = vmatmul.mubr.f32.gmra.mrb[0].mxu0 %v422
    %v501 = vpop.f32.mrb[0].mxu0
    %v502 = vadd.f32 0.0, %v501
    %v503 = vpop.f32.mrb[0].mxu0
    %504 = vdwg.mxu0
    %v505 = vmul.f32 %v497, 0.125
    %v506 = vmul.f32 %v502, 0.125
    %v507 = vadd.f32 %v505, %v139
    %v508 = vadd.f32 %v506, %v140
    %vm509 = vcmask 130048
    %v510 = vsel %vm509, %v507, -inf
    %511 = vmax.xlane.f32.xlu0 %v510
    %v512 = vpop.xlane.xlu0 %511
    %v513 = vsel %vm509, %v508, -inf
    %514 = vmax.xlane.f32.xlu0 %v513
    %v515 = vpop.xlane.xlu0 %514
    %v516 = vsub.f32 %v507, %v512
    %v517 = vsub.f32 %v508, %v515
    %v518 = vmul.f32 %v516, 1.442695
    %v519 = vpow.pop %v518
    %v520 = vmul.f32 %v517, 1.442695
    %v521 = vpow.pop %v520
    %v522 = vsel %vm509, %v519, 0.0
    %523 = vadd.xlane.f32.xlu0 %v522
    %v524 = vpop.xlane.xlu0 %523
    %v525 = vsel %vm509, %v521, 0.0
    %526 = vadd.xlane.f32.xlu0 %v525
    %v527 = vpop.xlane.xlu0 %526
    %v528 = vrcp.pop %v524
    %v529 = vmul.f32 %v519, %v528
    %v530 = vrcp.pop %v527
    %v531 = vmul.f32 %v521, %v530
    %v533 = vsel %vm509, %v529, 0
    %v536 = vsel %vm509, %v531, 0
    %538 = vmatprep.subr.mxu0 0.0
    %539 = vmatpush1.msra.mxu0 %v393
    %540 = vmatprep.subr.mxu0 0.0
    %541 = vmatpush1.msra.mxu0 %v398
    %542 = vmatprep.subr.mxu0 0.0
    %543 = vmatpush1.msra.mxu0 0.0
    %544 = vmatprep.subr.mxu0 0.0
    %545 = vmatpush1.msra.mxu0 0.0
    %546 = vmatprep.subr.mxu0 0.0
    %547 = vmatpush1.msra.mxu0 0.0
    %548 = vmatprep.subr.mxu0 0.0
    %549 = vmatpush1.msra.mxu0 0.0
    %550 = vmatprep.subr.mxu0 0.0
    %551 = vmatpush1.msra.mxu0 0.0
    %552 = vmatprep.subr.mxu0 0.0
    %553 = vmatpush1.msra.mxu0 0.0
    %554 = vmatprep.subr.mxu0 0.0
    %555 = vmatpush1.msra.mxu0 0.0
    %556 = vmatprep.subr.mxu0 0.0
    %557 = vmatpush1.msra.mxu0 0.0
    %558 = vmatprep.subr.mxu0 0.0
    %559 = vmatpush1.msra.mxu0 0.0
    %560 = vmatprep.subr.mxu0 0.0
    %561 = vmatpush1.msra.mxu0 0.0
    %562 = vmatprep.subr.mxu0 0.0
    %563 = vmatpush1.msra.mxu0 0.0
    %564 = vmatprep.subr.mxu0 0.0
    %565 = vmatpush1.msra.mxu0 0.0
    %566 = vmatprep.subr.mxu0 0.0
    %567 = vmatpush1.msra.mxu0 0.0
    %568 = vmatprep.subr.mxu0 0.0
    %569 = vmatpush1.msra.mxu0 0.0
    %570 = vmatprep.subr.mxu0 0.0
    %571 = vmatpush1.msra.mxu0 0.0
    %572 = vmatprep.subr.mxu0 0.0
    %573 = vmatpush1.msra.mxu0 0.0
    %574 = vmatprep.subr.mxu0 0.0
    %575 = vmatpush1.msra.mxu0 0.0
    %576 = vmatprep.subr.mxu0 0.0
    %577 = vmatpush1.msra.mxu0 0.0
    %578 = vmatprep.subr.mxu0 0.0
    %579 = vmatpush1.msra.mxu0 0.0
    %580 = vmatprep.subr.mxu0 0.0
    %581 = vmatpush1.msra.mxu0 0.0
    %582 = vmatprep.subr.mxu0 0.0
    %583 = vmatpush1.msra.mxu0 0.0
    %584 = vmatprep.subr.mxu0 0.0
    %585 = vmatpush1.msra.mxu0 0.0
    %586 = vmatprep.subr.mxu0 0.0
    %587 = vmatpush1.msra.mxu0 0.0
    %588 = vmatprep.subr.mxu0 0.0
    %589 = vmatpush1.msra.mxu0 0.0
    %590 = vmatprep.subr.mxu0 0.0
    %591 = vmatpush1.msra.mxu0 0.0
    %592 = vmatprep.subr.mxu0 0.0
    %593 = vmatpush1.msra.mxu0 0.0
    %594 = vmatprep.subr.mxu0 0.0
    %595 = vmatpush1.msra.mxu0 0.0
    %596 = vmatprep.subr.mxu0 0.0
    %597 = vmatpush1.msra.mxu0 0.0
    %598 = vmatprep.subr.mxu0 0.0
    %599 = vmatpush1.msra.mxu0 0.0
    %600 = vmatprep.subr.mxu0 0.0
    %601 = vmatpush1.msra.mxu0 0.0
    %602 = vmatprep.mubr.f32.mxu0 0.0
    %603 = vmatmul.mubr.f32.gmra.mrb[0].mxu0 %v533
    %v604 = vpop.f32.mrb[0].mxu0
    %v605 = vadd.f32 0.0, %v604
    %v606 = vpop.f32.mrb[0].mxu0
    %607 = vmatprep.mubr.f32.mxu0 0.0
    %608 = vmatmul.mubr.f32.gmra.mrb[0].mxu0 %v536
    %v609 = vpop.f32.mrb[0].mxu0
    %v610 = vadd.f32 0.0, %v609
    %v611 = vpop.f32.mrb[0].mxu0
    %612 = vdwg.mxu0
    %613 = vrot.lane.b32.xlu0 %v316, 64
    %v614 = vpop.permute.xlu0 %613
    %615 = vrot.lane.b32.xlu0 %v322, 64
    %v616 = vpop.permute.xlu0 %615
    %617 = vrot.lane.b32.xlu0 %v318, 64
    %v618 = vpop.permute.xlu0 %617
    %619 = vrot.lane.b32.xlu0 %v324, 64
    %v620 = vpop.permute.xlu0 %619
    %v621 = vsel %vm417, %v614, 0
    %v623 = vsel %vm417, %v616, 0
    %v625 = vsel %vm417, %v618, 0
    %v627 = vsel %vm417, %v620, 0
    %629 = vmatprep.subr.mxu0 0.0
    %630 = vmatpush1.xpose.msra.mxu0 %v625
    %631 = vmatprep.subr.mxu0 0.0
    %632 = vmatpush1.xpose.msra.mxu0 %v627
    %633 = vmatprep.subr.mxu0 0.0
    %634 = vmatpush1.xpose.msra.mxu0 0.0
    %635 = vmatprep.subr.mxu0 0.0
    %636 = vmatpush1.xpose.msra.mxu0 0.0
    %637 = vmatprep.subr.mxu0 0.0
    %638 = vmatpush1.xpose.msra.mxu0 0.0
    %639 = vmatprep.subr.mxu0 0.0
    %640 = vmatpush1.xpose.msra.mxu0 0.0
    %641 = vmatprep.subr.mxu0 0.0
    %642 = vmatpush1.xpose.msra.mxu0 0.0
    %643 = vmatprep.subr.mxu0 0.0
    %644 = vmatpush1.xpose.msra.mxu0 0.0
    %645 = vmatprep.subr.mxu0 0.0
    %646 = vmatpush1.xpose.msra.mxu0 0.0
    %647 = vmatprep.subr.mxu0 0.0
    %648 = vmatpush1.xpose.msra.mxu0 0.0
    %649 = vmatprep.subr.mxu0 0.0
    %650 = vmatpush1.xpose.msra.mxu0 0.0
    %651 = vmatprep.subr.mxu0 0.0
    %652 = vmatpush1.xpose.msra.mxu0 0.0
    %653 = vmatprep.subr.mxu0 0.0
    %654 = vmatpush1.xpose.msra.mxu0 0.0
    %655 = vmatprep.subr.mxu0 0.0
    %656 = vmatpush1.xpose.msra.mxu0 0.0
    %657 = vmatprep.subr.mxu0 0.0
    %658 = vmatpush1.xpose.msra.mxu0 0.0
    %659 = vmatprep.subr.mxu0 0.0
    %660 = vmatpush1.xpose.msra.mxu0 0.0
    %661 = vmatprep.subr.mxu0 0.0
    %662 = vmatpush1.xpose.msra.mxu0 0.0
    %663 = vmatprep.subr.mxu0 0.0
    %664 = vmatpush1.xpose.msra.mxu0 0.0
    %665 = vmatprep.subr.mxu0 0.0
    %666 = vmatpush1.xpose.msra.mxu0 0.0
    %667 = vmatprep.subr.mxu0 0.0
    %668 = vmatpush1.xpose.msra.mxu0 0.0
    %669 = vmatprep.subr.mxu0 0.0
    %670 = vmatpush1.xpose.msra.mxu0 0.0
    %671 = vmatprep.subr.mxu0 0.0
    %672 = vmatpush1.xpose.msra.mxu0 0.0
    %673 = vmatprep.subr.mxu0 0.0
    %674 = vmatpush1.xpose.msra.mxu0 0.0
    %675 = vmatprep.subr.mxu0 0.0
    %676 = vmatpush1.xpose.msra.mxu0 0.0
    %677 = vmatprep.subr.mxu0 0.0
    %678 = vmatpush1.xpose.msra.mxu0 0.0
    %679 = vmatprep.subr.mxu0 0.0
    %680 = vmatpush1.xpose.msra.mxu0 0.0
    %681 = vmatprep.subr.mxu0 0.0
    %682 = vmatpush1.xpose.msra.mxu0 0.0
    %683 = vmatprep.subr.mxu0 0.0
    %684 = vmatpush1.xpose.msra.mxu0 0.0
    %685 = vmatprep.subr.mxu0 0.0
    %686 = vmatpush1.xpose.msra.mxu0 0.0
    %687 = vmatprep.subr.mxu0 0.0
    %688 = vmatpush1.xpose.msra.mxu0 0.0
    %689 = vmatprep.subr.mxu0 0.0
    %690 = vmatpush1.xpose.msra.mxu0 0.0
    %691 = vmatprep.subr.mxu0 0.0
    %692 = vmatpush1.xpose.msra.mxu0 0.0
    %693 = vmatprep.mubr.f32.mxu0 0.0
    %694 = vmatmul.mubr.f32.gmra.mrb[0].mxu0 %v621
    %v695 = vpop.f32.mrb[0].mxu0
    %v696 = vadd.f32 0.0, %v695
    %v697 = vpop.f32.mrb[0].mxu0
    %698 = vmatprep.mubr.f32.mxu0 0.0
    %699 = vmatmul.mubr.f32.gmra.mrb[0].mxu0 %v623
    %v700 = vpop.f32.mrb[0].mxu0
    %v701 = vadd.f32 0.0, %v700
    %v702 = vpop.f32.mrb[0].mxu0
    %703 = vdwg.mxu0
    %v704 = vmul.f32 %v696, 0.125
    %v705 = vmul.f32 %v701, 0.125
    %v706 = vadd.f32 %v704, %v139
    %v707 = vadd.f32 %v705, %v140
    %v708 = vsel %vm509, %v706, -inf
    %709 = vmax.xlane.f32.xlu0 %v708
    %v710 = vpop.xlane.xlu0 %709
    %v711 = vsel %vm509, %v707, -inf
    %712 = vmax.xlane.f32.xlu0 %v711
    %v713 = vpop.xlane.xlu0 %712
    %v714 = vsub.f32 %v706, %v710
    %v715 = vsub.f32 %v707, %v713
    %v716 = vmul.f32 %v714, 1.442695
    %v717 = vpow.pop %v716
    %v718 = vmul.f32 %v715, 1.442695
    %v719 = vpow.pop %v718
    %v720 = vsel %vm509, %v717, 0.0
    %721 = vadd.xlane.f32.xlu0 %v720
    %v722 = vpop.xlane.xlu0 %721
    %v723 = vsel %vm509, %v719, 0.0
    %724 = vadd.xlane.f32.xlu0 %v723
    %v725 = vpop.xlane.xlu0 %724
    %v726 = vrcp.pop %v722
    %v727 = vmul.f32 %v717, %v726
    %v728 = vrcp.pop %v725
    %v729 = vmul.f32 %v719, %v728
    %732 = vrot.lane.b32.xlu0 %v393, 64
    %v733 = vpop.permute.xlu0 %732
    %734 = vrot.lane.b32.xlu0 %v398, 64
    %v735 = vpop.permute.xlu0 %734
    %v739 = vsel %vm509, %v727, 0
    %v742 = vsel %vm509, %v729, 0
    %744 = vmatprep.subr.mxu0 0.0
    %745 = vmatpush1.msra.mxu0 %v733
    %746 = vmatprep.subr.mxu0 0.0
    %747 = vmatpush1.msra.mxu0 %v735
    %748 = vmatprep.subr.mxu0 0.0
    %749 = vmatpush1.msra.mxu0 0.0
    %750 = vmatprep.subr.mxu0 0.0
    %751 = vmatpush1.msra.mxu0 0.0
    %752 = vmatprep.subr.mxu0 0.0
    %753 = vmatpush1.msra.mxu0 0.0
    %754 = vmatprep.subr.mxu0 0.0
    %755 = vmatpush1.msra.mxu0 0.0
    %756 = vmatprep.subr.mxu0 0.0
    %757 = vmatpush1.msra.mxu0 0.0
    %758 = vmatprep.subr.mxu0 0.0
    %759 = vmatpush1.msra.mxu0 0.0
    %760 = vmatprep.subr.mxu0 0.0
    %761 = vmatpush1.msra.mxu0 0.0
    %762 = vmatprep.subr.mxu0 0.0
    %763 = vmatpush1.msra.mxu0 0.0
    %764 = vmatprep.subr.mxu0 0.0
    %765 = vmatpush1.msra.mxu0 0.0
    %766 = vmatprep.subr.mxu0 0.0
    %767 = vmatpush1.msra.mxu0 0.0
    %768 = vmatprep.subr.mxu0 0.0
    %769 = vmatpush1.msra.mxu0 0.0
    %770 = vmatprep.subr.mxu0 0.0
    %771 = vmatpush1.msra.mxu0 0.0
    %772 = vmatprep.subr.mxu0 0.0
    %773 = vmatpush1.msra.mxu0 0.0
    %774 = vmatprep.subr.mxu0 0.0
    %775 = vmatpush1.msra.mxu0 0.0
    %776 = vmatprep.subr.mxu0 0.0
    %777 = vmatpush1.msra.mxu0 0.0
    %778 = vmatprep.subr.mxu0 0.0
    %779 = vmatpush1.msra.mxu0 0.0
    %780 = vmatprep.subr.mxu0 0.0
    %781 = vmatpush1.msra.mxu0 0.0
    %782 = vmatprep.subr.mxu0 0.0
    %783 = vmatpush1.msra.mxu0 0.0
    %784 = vmatprep.subr.mxu0 0.0
    %785 = vmatpush1.msra.mxu0 0.0
    %786 = vmatprep.subr.mxu0 0.0
    %787 = vmatpush1.msra.mxu0 0.0
    %788 = vmatprep.subr.mxu0 0.0
    %789 = vmatpush1.msra.mxu0 0.0
    %790 = vmatprep.subr.mxu0 0.0
    %791 = vmatpush1.msra.mxu0 0.0
    %792 = vmatprep.subr.mxu0 0.0
    %793 = vmatpush1.msra.mxu0 0.0
    %794 = vmatprep.subr.mxu0 0.0
    %795 = vmatpush1.msra.mxu0 0.0
    %796 = vmatprep.subr.mxu0 0.0
    %797 = vmatpush1.msra.mxu0 0.0
    %798 = vmatprep.subr.mxu0 0.0
    %799 = vmatpush1.msra.mxu0 0.0
    %800 = vmatprep.subr.mxu0 0.0
    %801 = vmatpush1.msra.mxu0 0.0
    %802 = vmatprep.subr.mxu0 0.0
    %803 = vmatpush1.msra.mxu0 0.0
    %804 = vmatprep.subr.mxu0 0.0
    %805 = vmatpush1.msra.mxu0 0.0
    %806 = vmatprep.subr.mxu0 0.0
    %807 = vmatpush1.msra.mxu0 0.0
    %808 = vmatprep.mubr.f32.mxu0 0.0
    %809 = vmatmul.mubr.f32.gmra.mrb[0].mxu0 %v739
    %v810 = vpop.f32.mrb[0].mxu0
    %v811 = vadd.f32 0.0, %v810
    %v812 = vpop.f32.mrb[0].mxu0
    %813 = vmatprep.mubr.f32.mxu0 0.0
    %814 = vmatmul.mubr.f32.gmra.mrb[0].mxu0 %v742
    %v815 = vpop.f32.mrb[0].mxu0
    %v816 = vadd.f32 0.0, %v815
    %v817 = vpop.f32.mrb[0].mxu0
    %818 = vdwg.mxu0
    %v820 = vsel %vm417, %v811, 0
    %v823 = vsel %vm417, %v816, 0
    %825 = vmatprep.subr.mxu0 0.0
    %826 = vmatpush1.msra.mxu0 %v409
    %827 = vmatprep.subr.mxu0 0.0
    %828 = vmatpush1.msra.mxu0 %v410
    %829 = vmatprep.subr.mxu0 0.0
    %830 = vmatpush1.msra.mxu0 %v411
    %831 = vmatprep.subr.mxu0 0.0
    %832 = vmatpush1.msra.mxu0 %v412
    %833 = vmatprep.subr.mxu0 0.0
    %834 = vmatpush1.msra.mxu0 %v413
    %835 = vmatprep.subr.mxu0 0.0
    %836 = vmatpush1.msra.mxu0 %v414
    %837 = vmatprep.subr.mxu0 0.0
    %838 = vmatpush1.msra.mxu0 %v415
    %839 = vmatprep.subr.mxu0 0.0
    %840 = vmatpush1.msra.mxu0 %v416
    %841 = vmatprep.subr.mxu0 0.0
    %842 = vmatpush1.msra.mxu0 0.0
    %843 = vmatprep.subr.mxu0 0.0
    %844 = vmatpush1.msra.mxu0 0.0
    %845 = vmatprep.subr.mxu0 0.0
    %846 = vmatpush1.msra.mxu0 0.0
    %847 = vmatprep.subr.mxu0 0.0
    %848 = vmatpush1.msra.mxu0 0.0
    %849 = vmatprep.subr.mxu0 0.0
    %850 = vmatpush1.msra.mxu0 0.0
    %851 = vmatprep.subr.mxu0 0.0
    %852 = vmatpush1.msra.mxu0 0.0
    %853 = vmatprep.subr.mxu0 0.0
    %854 = vmatpush1.msra.mxu0 0.0
    %855 = vmatprep.subr.mxu0 0.0
    %856 = vmatpush1.msra.mxu0 0.0
    %857 = vmatprep.subr.mxu0 0.0
    %858 = vmatpush1.msra.mxu0 0.0
    %859 = vmatprep.subr.mxu0 0.0
    %860 = vmatpush1.msra.mxu0 0.0
    %861 = vmatprep.subr.mxu0 0.0
    %862 = vmatpush1.msra.mxu0 0.0
    %863 = vmatprep.subr.mxu0 0.0
    %864 = vmatpush1.msra.mxu0 0.0
    %865 = vmatprep.subr.mxu0 0.0
    %866 = vmatpush1.msra.mxu0 0.0
    %867 = vmatprep.subr.mxu0 0.0
    %868 = vmatpush1.msra.mxu0 0.0
    %869 = vmatprep.subr.mxu0 0.0
    %870 = vmatpush1.msra.mxu0 0.0
    %871 = vmatprep.subr.mxu0 0.0
    %872 = vmatpush1.msra.mxu0 0.0
    %873 = vmatprep.subr.mxu0 0.0
    %874 = vmatpush1.msra.mxu0 0.0
    %875 = vmatprep.subr.mxu0 0.0
    %876 = vmatpush1.msra.mxu0 0.0
    %877 = vmatprep.subr.mxu0 0.0
    %878 = vmatpush1.msra.mxu0 0.0
    %879 = vmatprep.subr.mxu0 0.0
    %880 = vmatpush1.msra.mxu0 0.0
    %881 = vmatprep.subr.mxu0 0.0
    %882 = vmatpush1.msra.mxu0 0.0
    %883 = vmatprep.subr.mxu0 0.0
    %884 = vmatpush1.msra.mxu0 0.0
    %885 = vmatprep.subr.mxu0 0.0
    %886 = vmatpush1.msra.mxu0 0.0
    %887 = vmatprep.subr.mxu0 0.0
    %888 = vmatpush1.msra.mxu0 0.0
    %889 = vmatprep.mubr.f32.mxu0 0.0
    %890 = vmatmul.mubr.f32.gmra.mrb[0].mxu0 %v820
    %v891 = vpop.f32.mrb[0].mxu0
    %v892 = vadd.f32 0.0, %v891
    %v893 = vpop.f32.mrb[0].mxu0
    %894 = vmatprep.mubr.f32.mxu0 0.0
    %895 = vmatmul.mubr.f32.gmra.mrb[0].mxu0 %v823
    %v896 = vpop.f32.mrb[0].mxu0
    %v897 = vadd.f32 0.0, %v896
    %v898 = vpop.f32.mrb[0].mxu0
    %899 = vdwg.mxu0
    %v901 = vsel %vm417, %v605, 0
    %v904 = vsel %vm417, %v610, 0
    %906 = vmatprep.subr.mxu0 0.0
    %907 = vmatpush1.msra.mxu0 %v401
    %908 = vmatprep.subr.mxu0 0.0
    %909 = vmatpush1.msra.mxu0 %v402
    %910 = vmatprep.subr.mxu0 0.0
    %911 = vmatpush1.msra.mxu0 %v403
    %912 = vmatprep.subr.mxu0 0.0
    %913 = vmatpush1.msra.mxu0 %v404
    %914 = vmatprep.subr.mxu0 0.0
    %915 = vmatpush1.msra.mxu0 %v405
    %916 = vmatprep.subr.mxu0 0.0
    %917 = vmatpush1.msra.mxu0 %v406
    %918 = vmatprep.subr.mxu0 0.0
    %919 = vmatpush1.msra.mxu0 %v407
    %920 = vmatprep.subr.mxu0 0.0
    %921 = vmatpush1.msra.mxu0 %v408
    %922 = vmatprep.subr.mxu0 0.0
    %923 = vmatpush1.msra.mxu0 0.0
    %924 = vmatprep.subr.mxu0 0.0
    %925 = vmatpush1.msra.mxu0 0.0
    %926 = vmatprep.subr.mxu0 0.0
    %927 = vmatpush1.msra.mxu0 0.0
    %928 = vmatprep.subr.mxu0 0.0
    %929 = vmatpush1.msra.mxu0 0.0
    %930 = vmatprep.subr.mxu0 0.0
    %931 = vmatpush1.msra.mxu0 0.0
    %932 = vmatprep.subr.mxu0 0.0
    %933 = vmatpush1.msra.mxu0 0.0
    %934 = vmatprep.subr.mxu0 0.0
    %935 = vmatpush1.msra.mxu0 0.0
    %936 = vmatprep.subr.mxu0 0.0
    %937 = vmatpush1.msra.mxu0 0.0
    %938 = vmatprep.subr.mxu0 0.0
    %939 = vmatpush1.msra.mxu0 0.0
    %940 = vmatprep.subr.mxu0 0.0
    %941 = vmatpush1.msra.mxu0 0.0
    %942 = vmatprep.subr.mxu0 0.0
    %943 = vmatpush1.msra.mxu0 0.0
    %944 = vmatprep.subr.mxu0 0.0
    %945 = vmatpush1.msra.mxu0 0.0
    %946 = vmatprep.subr.mxu0 0.0
    %947 = vmatpush1.msra.mxu0 0.0
    %948 = vmatprep.subr.mxu0 0.0
    %949 = vmatpush1.msra.mxu0 0.0
    %950 = vmatprep.subr.mxu0 0.0
    %951 = vmatpush1.msra.mxu0 0.0
    %952 = vmatprep.subr.mxu0 0.0
    %953 = vmatpush1.msra.mxu0 0.0
    %954 = vmatprep.subr.mxu0 0.0
    %955 = vmatpush1.msra.mxu0 0.0
    %956 = vmatprep.subr.mxu0 0.0
    %957 = vmatpush1.msra.mxu0 0.0
    %958 = vmatprep.subr.mxu0 0.0
    %959 = vmatpush1.msra.mxu0 0.0
    %960 = vmatprep.subr.mxu0 0.0
    %961 = vmatpush1.msra.mxu0 0.0
    %962 = vmatprep.subr.mxu0 0.0
    %963 = vmatpush1.msra.mxu0 0.0
    %964 = vmatprep.subr.mxu0 0.0
    %965 = vmatpush1.msra.mxu0 0.0
    %966 = vmatprep.subr.mxu0 0.0
    %967 = vmatpush1.msra.mxu0 0.0
    %968 = vmatprep.subr.mxu0 0.0
    %969 = vmatpush1.msra.mxu0 0.0
    %970 = vmatprep.mubr.f32.mxu0 0.0
    %971 = vmatmul.mubr.f32.gmra.mrb[0].mxu0 %v901
    %v972 = vpop.f32.mrb[0].mxu0
    %v973 = vadd.f32 %v892, %v972
    %v974 = vpop.f32.mrb[0].mxu0
    %975 = vmatprep.mubr.f32.mxu0 0.0
    %976 = vmatmul.mubr.f32.gmra.mrb[0].mxu0 %v904
    %v977 = vpop.f32.mrb[0].mxu0
    %v978 = vadd.f32 %v897, %v977
    %v979 = vpop.f32.mrb[0].mxu0
    %980 = vdwg.mxu0
    %v981 = vld [vmem:[%s7] sm:$0x1]
    %v983 = vlaneseq
    %v984 = vshrl.u32 %v983, 7
    %v985 = vsub.s32 0, %v984
    %v986 = vrot.slane %v981, %v985
    %v988 = vadd.f32 %v973, %v986
    %v989 = vadd.f32 %v978, %v986
    %v990 = vadd.f32 %v988, %v182
    %v991 = vadd.f32 %v989, %v183
    %v992 = vld [vmem:[%s8] sm:$0x1]
    %v993 = vld [vmem:[%s9] sm:$0x1]
    %994 = vadd.xlane.f32.xlu0 %v990
    %v995 = vpop.xlane.xlu0 %994
    %996 = vadd.xlane.f32.xlu0 %v991
    %v997 = vpop.xlane.xlu0 %996
    %v998 = vmul.f32 %v995, %v149
    %v999 = vmul.f32 %v997, %v149
    %v1000 = vsub.f32 %v990, %v998
    %v1001 = vsub.f32 %v991, %v999
    %v1002 = vmul.f32 %v1000, %v1000
    %v1003 = vmul.f32 %v1001, %v1001
    %1004 = vadd.xlane.f32.xlu0 %v1002
    %v1005 = vpop.xlane.xlu0 %1004
    %1006 = vadd.xlane.f32.xlu0 %v1003
    %v1007 = vpop.xlane.xlu0 %1006
    %v1008 = vmul.f32 %v1005, %v149
    %v1009 = vmul.f32 %v1007, %v149
    %v1010 = vadd.f32 %v1008, 1e-12
    %v1011 = vadd.f32 %v1009, 1e-12
    %v1012 = vrsqrt.pop %v1010
    %v1013 = vrsqrt.pop %v1011
    %v1014 = vmul.f32 %v1000, %v1012
    %v1015 = vmul.f32 %v1001, %v1013
    %v1017 = vlaneseq
    %v1018 = vshrl.u32 %v1017, 7
    %v1019 = vsub.s32 0, %v1018
    %v1020 = vrot.slane %v992, %v1019
    %v1022 = vmul.f32 %v1014, %v1020
    %v1023 = vmul.f32 %v1015, %v1020
    %v1025 = vlaneseq
    %v1026 = vshrl.u32 %v1025, 7
    %v1027 = vsub.s32 0, %v1026
    %v1028 = vrot.slane %v993, %v1027
    %v1030 = vadd.f32 %v1022, %v1028
    %v1031 = vadd.f32 %v1023, %v1028
    %v1032 = vld [vmem:[#allocation4] sm:$0xff]
    %v1033 = vld [vmem:[#allocation4 + $0x8] sm:$0xff]
    %v1034 = vld [vmem:[#allocation4 + $0x10] sm:$0xff]
    %v1035 = vld [vmem:[#allocation4 + $0x18] sm:$0xff]
    %v1036 = vld [vmem:[#allocation4 + $0x20] sm:$0xff]
    %v1037 = vld [vmem:[#allocation4 + $0x28] sm:$0xff]
    %v1038 = vld [vmem:[#allocation4 + $0x30] sm:$0xff]
    %v1039 = vld [vmem:[#allocation4 + $0x38] sm:$0xff]
    %v1040 = vld [vmem:[#allocation4 + $0x40] sm:$0xff]
    %v1041 = vld [vmem:[#allocation4 + $0x48] sm:$0xff]
    %v1042 = vld [vmem:[#allocation4 + $0x50] sm:$0xff]
    %v1043 = vld [vmem:[#allocation4 + $0x58] sm:$0xff]
    %v1044 = vld [vmem:[#allocation4 + $0x60] sm:$0xff]
    %v1045 = vld [vmem:[#allocation4 + $0x68] sm:$0xff]
    %v1046 = vld [vmem:[#allocation4 + $0x70] sm:$0xff]
    %v1047 = vld [vmem:[#allocation4 + $0x78] sm:$0xff]
    %v1048 = vld [vmem:[#allocation4 + $0x80] sm:$0xff]
    %v1049 = vld [vmem:[#allocation4 + $0x88] sm:$0xff]
    %v1050 = vld [vmem:[#allocation4 + $0x90] sm:$0xff]
    %v1051 = vld [vmem:[#allocation4 + $0x98] sm:$0xff]
    %v1052 = vld [vmem:[#allocation4 + $0xa0] sm:$0xff]
    %v1053 = vld [vmem:[#allocation4 + $0xa8] sm:$0xff]
    %v1054 = vld [vmem:[#allocation4 + $0xb0] sm:$0xff]
    %v1055 = vld [vmem:[#allocation4 + $0xb8] sm:$0xff]
    %v1056 = vld [vmem:[#allocation4 + $0xc0] sm:$0xff]
    %v1057 = vld [vmem:[#allocation4 + $0xc8] sm:$0xff]
    %v1058 = vld [vmem:[#allocation4 + $0xd0] sm:$0xff]
    %v1059 = vld [vmem:[#allocation4 + $0xd8] sm:$0xff]
    %v1060 = vld [vmem:[#allocation4 + $0xe0] sm:$0xff]
    %v1061 = vld [vmem:[#allocation4 + $0xe8] sm:$0xff]
    %v1062 = vld [vmem:[#allocation4 + $0xf0] sm:$0xff]
    %v1063 = vld [vmem:[#allocation4 + $0xf8] sm:$0xff]
    %v1064 = vld [vmem:[#allocation4 + $0x100] sm:$0xff]
    %v1065 = vld [vmem:[#allocation4 + $0x108] sm:$0xff]
    %v1066 = vld [vmem:[#allocation4 + $0x110] sm:$0xff]
    %v1067 = vld [vmem:[#allocation4 + $0x118] sm:$0xff]
    %v1068 = vld [vmem:[#allocation4 + $0x120] sm:$0xff]
    %v1069 = vld [vmem:[#allocation4 + $0x128] sm:$0xff]
    %v1070 = vld [vmem:[#allocation4 + $0x130] sm:$0xff]
    %v1071 = vld [vmem:[#allocation4 + $0x138] sm:$0xff]
    %v1072 = vld [vmem:[#allocation4 + $0x140] sm:$0xff]
    %v1073 = vld [vmem:[#allocation4 + $0x148] sm:$0xff]
    %v1074 = vld [vmem:[#allocation4 + $0x150] sm:$0xff]
    %v1075 = vld [vmem:[#allocation4 + $0x158] sm:$0xff]
    %v1076 = vld [vmem:[#allocation4 + $0x160] sm:$0xff]
    %v1077 = vld [vmem:[#allocation4 + $0x168] sm:$0xff]
    %v1078 = vld [vmem:[#allocation4 + $0x170] sm:$0xff]
    %v1079 = vld [vmem:[#allocation4 + $0x178] sm:$0xff]
    %v1080 = vld [vmem:[#allocation4 + $0x180] sm:$0xff]
    %v1081 = vld [vmem:[#allocation4 + $0x188] sm:$0xff]
    %v1082 = vld [vmem:[#allocation4 + $0x190] sm:$0xff]
    %v1083 = vld [vmem:[#allocation4 + $0x198] sm:$0xff]
    %v1084 = vld [vmem:[#allocation4 + $0x1a0] sm:$0xff]
    %v1085 = vld [vmem:[#allocation4 + $0x1a8] sm:$0xff]
    %v1086 = vld [vmem:[#allocation4 + $0x1b0] sm:$0xff]
    %v1087 = vld [vmem:[#allocation4 + $0x1b8] sm:$0xff]
    %v1088 = vld [vmem:[#allocation4 + $0x1c0] sm:$0xff]
    %v1089 = vld [vmem:[#allocation4 + $0x1c8] sm:$0xff]
    %v1090 = vld [vmem:[#allocation4 + $0x1d0] sm:$0xff]
    %v1091 = vld [vmem:[#allocation4 + $0x1d8] sm:$0xff]
    %v1092 = vld [vmem:[#allocation4 + $0x1e0] sm:$0xff]
    %v1093 = vld [vmem:[#allocation4 + $0x1e8] sm:$0xff]
    %v1094 = vld [vmem:[#allocation4 + $0x1f0] sm:$0xff]
    %v1095 = vld [vmem:[#allocation4 + $0x1f8] sm:$0xff]
    %v1096 = vld [vmem:[%s11] sm:$0xf]
    %v1098 = vlaneseq
    %v1099 = vshrl.u32 %v1098, 7
    %v1100 = vsub.s32 0, %v1099
    %v1101 = vrot.slane %v1096, %v1100
    %v1102 = vlaneseq
    %v1103 = vshrl.u32 %v1102, 7
    %v1104 = vsub.s32 1, %v1103
    %v1105 = vrot.slane %v1096, %v1104
    %v1106 = vlaneseq
    %v1107 = vshrl.u32 %v1106, 7
    %v1108 = vsub.s32 2, %v1107
    %v1109 = vrot.slane %v1096, %v1108
    %v1110 = vlaneseq
    %v1111 = vshrl.u32 %v1110, 7
    %v1112 = vsub.s32 3, %v1111
    %v1113 = vrot.slane %v1096, %v1112
    %1118 = vmatprep.subr.mxu0 %v1033
    %1119 = vmatpush1.msra.mxu0 %v1032
    %1120 = vmatprep.subr.mxu0 %v1037
    %1121 = vmatpush1.msra.mxu0 %v1036
    %1122 = vmatprep.subr.mxu0 %v1041
    %1123 = vmatpush1.msra.mxu0 %v1040
    %1124 = vmatprep.subr.mxu0 %v1045
    %1125 = vmatpush1.msra.mxu0 %v1044
    %1126 = vmatprep.subr.mxu0 %v1049
    %1127 = vmatpush1.msra.mxu0 %v1048
    %1128 = vmatprep.subr.mxu0 %v1053
    %1129 = vmatpush1.msra.mxu0 %v1052
    %1130 = vmatprep.subr.mxu0 %v1057
    %1131 = vmatpush1.msra.mxu0 %v1056
    %1132 = vmatprep.subr.mxu0 %v1061
    %1133 = vmatpush1.msra.mxu0 %v1060
    %1134 = vmatprep.subr.mxu0 %v1065
    %1135 = vmatpush1.msra.mxu0 %v1064
    %1136 = vmatprep.subr.mxu0 %v1069
    %1137 = vmatpush1.msra.mxu0 %v1068
    %1138 = vmatprep.subr.mxu0 %v1073
    %1139 = vmatpush1.msra.mxu0 %v1072
    %1140 = vmatprep.subr.mxu0 %v1077
    %1141 = vmatpush1.msra.mxu0 %v1076
    %1142 = vmatprep.subr.mxu0 %v1081
    %1143 = vmatpush1.msra.mxu0 %v1080
    %1144 = vmatprep.subr.mxu0 %v1085
    %1145 = vmatpush1.msra.mxu0 %v1084
    %1146 = vmatprep.subr.mxu0 %v1089
    %1147 = vmatpush1.msra.mxu0 %v1088
    %1148 = vmatprep.subr.mxu0 %v1093
    %1149 = vmatpush1.msra.mxu0 %v1092
    %1150 = vmatprep.subr.mxu0 0.0
    %1151 = vmatpush1.msra.mxu0 0.0
    %1152 = vmatprep.subr.mxu0 0.0
    %1153 = vmatpush1.msra.mxu0 0.0
    %1154 = vmatprep.subr.mxu0 0.0
    %1155 = vmatpush1.msra.mxu0 0.0
    %1156 = vmatprep.subr.mxu0 0.0
    %1157 = vmatpush1.msra.mxu0 0.0
    %1158 = vmatprep.subr.mxu0 0.0
    %1159 = vmatpush1.msra.mxu0 0.0
    %1160 = vmatprep.subr.mxu0 0.0
    %1161 = vmatpush1.msra.mxu0 0.0
    %1162 = vmatprep.subr.mxu0 0.0
    %1163 = vmatpush1.msra.mxu0 0.0
    %1164 = vmatprep.subr.mxu0 0.0
    %1165 = vmatpush1.msra.mxu0 0.0
    %1166 = vmatprep.subr.mxu0 0.0
    %1167 = vmatpush1.msra.mxu0 0.0
    %1168 = vmatprep.subr.mxu0 0.0
    %1169 = vmatpush1.msra.mxu0 0.0
    %1170 = vmatprep.subr.mxu0 0.0
    %1171 = vmatpush1.msra.mxu0 0.0
    %1172 = vmatprep.subr.mxu0 0.0
    %1173 = vmatpush1.msra.mxu0 0.0
    %1174 = vmatprep.subr.mxu0 0.0
    %1175 = vmatpush1.msra.mxu0 0.0
    %1176 = vmatprep.subr.mxu0 0.0
    %1177 = vmatpush1.msra.mxu0 0.0
    %1178 = vmatprep.subr.mxu0 0.0
    %1179 = vmatpush1.msra.mxu0 0.0
    %1180 = vmatprep.subr.mxu0 0.0
    %1181 = vmatpush1.msra.mxu0 0.0
    %1182 = vmatprep.mubr.f32.mxu0 0.0
    %1183 = vmatmul.mubr.f32.gmra.mrb[0].mxu0 %v1030
    %v1184 = vpop.f32.mrb[0].mxu0
    %v1185 = vadd.f32 %v1101, %v1184
    %v1186 = vpop.f32.mrb[0].mxu0
    %v1187 = vadd.f32 %v1105, %v1186
    %1188 = vmatprep.mubr.f32.mxu0 0.0
    %1189 = vmatmul.mubr.f32.gmra.mrb[0].mxu0 %v1031
    %v1190 = vpop.f32.mrb[0].mxu0
    %v1191 = vadd.f32 %v1101, %v1190
    %v1192 = vpop.f32.mrb[0].mxu0
    %v1193 = vadd.f32 %v1105, %v1192
    %1194 = vdwg.mxu0
    %1195 = vmatprep.subr.mxu0 %v1035
    %1196 = vmatpush1.msra.mxu0 %v1034
    %1197 = vmatprep.subr.mxu0 %v1039
    %1198 = vmatpush1.msra.mxu0 %v1038
    %1199 = vmatprep.subr.mxu0 %v1043
    %1200 = vmatpush1.msra.mxu0 %v1042
    %1201 = vmatprep.subr.mxu0 %v1047
    %1202 = vmatpush1.msra.mxu0 %v1046
    %1203 = vmatprep.subr.mxu0 %v1051
    %1204 = vmatpush1.msra.mxu0 %v1050
    %1205 = vmatprep.subr.mxu0 %v1055
    %1206 = vmatpush1.msra.mxu0 %v1054
    %1207 = vmatprep.subr.mxu0 %v1059
    %1208 = vmatpush1.msra.mxu0 %v1058
    %1209 = vmatprep.subr.mxu0 %v1063
    %1210 = vmatpush1.msra.mxu0 %v1062
    %1211 = vmatprep.subr.mxu0 %v1067
    %1212 = vmatpush1.msra.mxu0 %v1066
    %1213 = vmatprep.subr.mxu0 %v1071
    %1214 = vmatpush1.msra.mxu0 %v1070
    %1215 = vmatprep.subr.mxu0 %v1075
    %1216 = vmatpush1.msra.mxu0 %v1074
    %1217 = vmatprep.subr.mxu0 %v1079
    %1218 = vmatpush1.msra.mxu0 %v1078
    %1219 = vmatprep.subr.mxu0 %v1083
    %1220 = vmatpush1.msra.mxu0 %v1082
    %1221 = vmatprep.subr.mxu0 %v1087
    %1222 = vmatpush1.msra.mxu0 %v1086
    %1223 = vmatprep.subr.mxu0 %v1091
    %1224 = vmatpush1.msra.mxu0 %v1090
    %1225 = vmatprep.subr.mxu0 %v1095
    %1226 = vmatpush1.msra.mxu0 %v1094
    %1227 = vmatprep.subr.mxu0 0.0
    %1228 = vmatpush1.msra.mxu0 0.0
    %1229 = vmatprep.subr.mxu0 0.0
    %1230 = vmatpush1.msra.mxu0 0.0
    %1231 = vmatprep.subr.mxu0 0.0
    %1232 = vmatpush1.msra.mxu0 0.0
    %1233 = vmatprep.subr.mxu0 0.0
    %1234 = vmatpush1.msra.mxu0 0.0
    %1235 = vmatprep.subr.mxu0 0.0
    %1236 = vmatpush1.msra.mxu0 0.0
    %1237 = vmatprep.subr.mxu0 0.0
    %1238 = vmatpush1.msra.mxu0 0.0
    %1239 = vmatprep.subr.mxu0 0.0
    %1240 = vmatpush1.msra.mxu0 0.0
    %1241 = vmatprep.subr.mxu0 0.0
    %1242 = vmatpush1.msra.mxu0 0.0
    %1243 = vmatprep.subr.mxu0 0.0
    %1244 = vmatpush1.msra.mxu0 0.0
    %1245 = vmatprep.subr.mxu0 0.0
    %1246 = vmatpush1.msra.mxu0 0.0
    %1247 = vmatprep.subr.mxu0 0.0
    %1248 = vmatpush1.msra.mxu0 0.0
    %1249 = vmatprep.subr.mxu0 0.0
    %1250 = vmatpush1.msra.mxu0 0.0
    %1251 = vmatprep.subr.mxu0 0.0
    %1252 = vmatpush1.msra.mxu0 0.0
    %1253 = vmatprep.subr.mxu0 0.0
    %1254 = vmatpush1.msra.mxu0 0.0
    %1255 = vmatprep.subr.mxu0 0.0
    %1256 = vmatpush1.msra.mxu0 0.0
    %1257 = vmatprep.subr.mxu0 0.0
    %1258 = vmatpush1.msra.mxu0 0.0
    %1259 = vmatprep.mubr.f32.mxu0 0.0
    %1260 = vmatmul.mubr.f32.gmra.mrb[0].mxu0 %v1030
    %v1261 = vpop.f32.mrb[0].mxu0
    %v1262 = vadd.f32 %v1109, %v1261
    %v1263 = vpop.f32.mrb[0].mxu0
    %v1264 = vadd.f32 %v1113, %v1263
    %1265 = vmatprep.mubr.f32.mxu0 0.0
    %1266 = vmatmul.mubr.f32.gmra.mrb[0].mxu0 %v1031
    %v1267 = vpop.f32.mrb[0].mxu0
    %v1268 = vadd.f32 %v1109, %v1267
    %v1269 = vpop.f32.mrb[0].mxu0
    %v1270 = vadd.f32 %v1113, %v1269
    %1271 = vdwg.mxu0
    %v1272 = vmul.f32 %v1185, %v1185
    %v1273 = vmul.f32 %v1187, %v1187
    %v1274 = vmul.f32 %v1262, %v1262
    %v1275 = vmul.f32 %v1264, %v1264
    %v1276 = vmul.f32 %v1191, %v1191
    %v1277 = vmul.f32 %v1193, %v1193
    %v1278 = vmul.f32 %v1268, %v1268
    %v1279 = vmul.f32 %v1270, %v1270
    %v1280 = vmul.f32 %v1185, %v1272
    %v1281 = vmul.f32 %v1187, %v1273
    %v1282 = vmul.f32 %v1262, %v1274
    %v1283 = vmul.f32 %v1264, %v1275
    %v1284 = vmul.f32 %v1191, %v1276
    %v1285 = vmul.f32 %v1193, %v1277
    %v1286 = vmul.f32 %v1268, %v1278
    %v1287 = vmul.f32 %v1270, %v1279
    %v1288 = vmul.f32 %v1280, 0.044715
    %v1289 = vmul.f32 %v1281, 0.044715
    %v1290 = vmul.f32 %v1282, 0.044715
    %v1291 = vmul.f32 %v1283, 0.044715
    %v1292 = vmul.f32 %v1284, 0.044715
    %v1293 = vmul.f32 %v1285, 0.044715
    %v1294 = vmul.f32 %v1286, 0.044715
    %v1295 = vmul.f32 %v1287, 0.044715
    %v1296 = vadd.f32 %v1185, %v1288
    %v1297 = vadd.f32 %v1187, %v1289
    %v1298 = vadd.f32 %v1262, %v1290
    %v1299 = vadd.f32 %v1264, %v1291
    %v1300 = vadd.f32 %v1191, %v1292
    %v1301 = vadd.f32 %v1193, %v1293
    %v1302 = vadd.f32 %v1268, %v1294
    %v1303 = vadd.f32 %v1270, %v1295
    %v1304 = vmul.f32 %v1296, 0.7978846
    %v1305 = vmul.f32 %v1297, 0.7978846
    %v1306 = vmul.f32 %v1298, 0.7978846
    %v1307 = vmul.f32 %v1299, 0.7978846
    %v1308 = vmul.f32 %v1300, 0.7978846
    %v1309 = vmul.f32 %v1301, 0.7978846
    %v1310 = vmul.f32 %v1302, 0.7978846
    %v1311 = vmul.f32 %v1303, 0.7978846
    %v1312 = vtanh.pop %v1304
    %v1313 = vtanh.pop %v1305
    %v1314 = vtanh.pop %v1306
    %v1315 = vtanh.pop %v1307
    %v1316 = vtanh.pop %v1308
    %v1317 = vtanh.pop %v1309
    %v1318 = vtanh.pop %v1310
    %v1319 = vtanh.pop %v1311
    %v1320 = vadd.f32 %v1312, 1.0
    %v1321 = vadd.f32 %v1313, 1.0
    %v1322 = vadd.f32 %v1314, 1.0
    %v1323 = vadd.f32 %v1315, 1.0
    %v1324 = vadd.f32 %v1316, 1.0
    %v1325 = vadd.f32 %v1317, 1.0
    %v1326 = vadd.f32 %v1318, 1.0
    %v1327 = vadd.f32 %v1319, 1.0
    %v1328 = vmul.f32 %v1320, 0.5
    %v1329 = vmul.f32 %v1321, 0.5
    %v1330 = vmul.f32 %v1322, 0.5
    %v1331 = vmul.f32 %v1323, 0.5
    %v1332 = vmul.f32 %v1324, 0.5
    %v1333 = vmul.f32 %v1325, 0.5
    %v1334 = vmul.f32 %v1326, 0.5
    %v1335 = vmul.f32 %v1327, 0.5
    %v1336 = vmul.f32 %v1185, %v1328
    %v1337 = vmul.f32 %v1187, %v1329
    %v1338 = vmul.f32 %v1262, %v1330
    %v1339 = vmul.f32 %v1264, %v1331
    %v1340 = vmul.f32 %v1191, %v1332
    %v1341 = vmul.f32 %v1193, %v1333
    %v1342 = vmul.f32 %v1268, %v1334
    %v1343 = vmul.f32 %v1270, %v1335
    %v1344 = vld [vmem:[#allocation6] sm:$0xff]
    %v1345 = vld [vmem:[#allocation6 + $0x8] sm:$0xff]
    %v1346 = vld [vmem:[#allocation6 + $0x10] sm:$0xff]
    %v1347 = vld [vmem:[#allocation6 + $0x18] sm:$0xff]
    %v1348 = vld [vmem:[#allocation6 + $0x20] sm:$0xff]
    %v1349 = vld [vmem:[#allocation6 + $0x28] sm:$0xff]
    %v1350 = vld [vmem:[#allocation6 + $0x30] sm:$0xff]
    %v1351 = vld [vmem:[#allocation6 + $0x38] sm:$0xff]
    %v1352 = vld [vmem:[#allocation6 + $0x40] sm:$0xff]
    %v1353 = vld [vmem:[#allocation6 + $0x48] sm:$0xff]
    %v1354 = vld [vmem:[#allocation6 + $0x50] sm:$0xff]
    %v1355 = vld [vmem:[#allocation6 + $0x58] sm:$0xff]
    %v1356 = vld [vmem:[#allocation6 + $0x60] sm:$0xff]
    %v1357 = vld [vmem:[#allocation6 + $0x68] sm:$0xff]
    %v1358 = vld [vmem:[#allocation6 + $0x70] sm:$0xff]
    %v1359 = vld [vmem:[#allocation6 + $0x78] sm:$0xff]
    %v1360 = vld [vmem:[#allocation6 + $0x80] sm:$0xff]
    %v1361 = vld [vmem:[#allocation6 + $0x88] sm:$0xff]
    %v1362 = vld [vmem:[#allocation6 + $0x90] sm:$0xff]
    %v1363 = vld [vmem:[#allocation6 + $0x98] sm:$0xff]
    %v1364 = vld [vmem:[#allocation6 + $0xa0] sm:$0xff]
    %v1365 = vld [vmem:[#allocation6 + $0xa8] sm:$0xff]
    %v1366 = vld [vmem:[#allocation6 + $0xb0] sm:$0xff]
    %v1367 = vld [vmem:[#allocation6 + $0xb8] sm:$0xff]
    %v1368 = vld [vmem:[#allocation6 + $0xc0] sm:$0xff]
    %v1369 = vld [vmem:[#allocation6 + $0xc8] sm:$0xff]
    %v1370 = vld [vmem:[#allocation6 + $0xd0] sm:$0xff]
    %v1371 = vld [vmem:[#allocation6 + $0xd8] sm:$0xff]
    %v1372 = vld [vmem:[#allocation6 + $0xe0] sm:$0xff]
    %v1373 = vld [vmem:[#allocation6 + $0xe8] sm:$0xff]
    %v1374 = vld [vmem:[#allocation6 + $0xf0] sm:$0xff]
    %v1375 = vld [vmem:[#allocation6 + $0xf8] sm:$0xff]
    %v1376 = vld [vmem:[#allocation6 + $0x100] sm:$0xff]
    %v1377 = vld [vmem:[#allocation6 + $0x108] sm:$0xff]
    %v1378 = vld [vmem:[#allocation6 + $0x110] sm:$0xff]
    %v1379 = vld [vmem:[#allocation6 + $0x118] sm:$0xff]
    %v1380 = vld [vmem:[#allocation6 + $0x120] sm:$0xff]
    %v1381 = vld [vmem:[#allocation6 + $0x128] sm:$0xff]
    %v1382 = vld [vmem:[#allocation6 + $0x130] sm:$0xff]
    %v1383 = vld [vmem:[#allocation6 + $0x138] sm:$0xff]
    %v1384 = vld [vmem:[#allocation6 + $0x140] sm:$0xff]
    %v1385 = vld [vmem:[#allocation6 + $0x148] sm:$0xff]
    %v1386 = vld [vmem:[#allocation6 + $0x150] sm:$0xff]
    %v1387 = vld [vmem:[#allocation6 + $0x158] sm:$0xff]
    %v1388 = vld [vmem:[#allocation6 + $0x160] sm:$0xff]
    %v1389 = vld [vmem:[#allocation6 + $0x168] sm:$0xff]
    %v1390 = vld [vmem:[#allocation6 + $0x170] sm:$0xff]
    %v1391 = vld [vmem:[#allocation6 + $0x178] sm:$0xff]
    %v1392 = vld [vmem:[#allocation6 + $0x180] sm:$0xff]
    %v1393 = vld [vmem:[#allocation6 + $0x188] sm:$0xff]
    %v1394 = vld [vmem:[#allocation6 + $0x190] sm:$0xff]
    %v1395 = vld [vmem:[#allocation6 + $0x198] sm:$0xff]
    %v1396 = vld [vmem:[#allocation6 + $0x1a0] sm:$0xff]
    %v1397 = vld [vmem:[#allocation6 + $0x1a8] sm:$0xff]
    %v1398 = vld [vmem:[#allocation6 + $0x1b0] sm:$0xff]
    %v1399 = vld [vmem:[#allocation6 + $0x1b8] sm:$0xff]
    %v1400 = vld [vmem:[#allocation6 + $0x1c0] sm:$0xff]
    %v1401 = vld [vmem:[#allocation6 + $0x1c8] sm:$0xff]
    %v1402 = vld [vmem:[#allocation6 + $0x1d0] sm:$0xff]
    %v1403 = vld [vmem:[#allocation6 + $0x1d8] sm:$0xff]
    %v1404 = vld [vmem:[#allocation6 + $0x1e0] sm:$0xff]
    %v1405 = vld [vmem:[#allocation6 + $0x1e8] sm:$0xff]
    %v1406 = vld [vmem:[#allocation6 + $0x1f0] sm:$0xff]
    %v1407 = vld [vmem:[#allocation6 + $0x1f8] sm:$0xff]
    %v1408 = vld [vmem:[%s13] sm:$0x1]
    %v1410 = vlaneseq
    %v1411 = vshrl.u32 %v1410, 7
    %v1412 = vsub.s32 0, %v1411
    %v1413 = vrot.slane %v1408, %v1412
    %1415 = vmatprep.subr.mxu0 0.0
    %1416 = vmatpush1.msra.mxu0 %v1344
    %1417 = vmatprep.subr.mxu0 0.0
    %1418 = vmatpush1.msra.mxu0 %v1345
    %1419 = vmatprep.subr.mxu0 0.0
    %1420 = vmatpush1.msra.mxu0 %v1346
    %1421 = vmatprep.subr.mxu0 0.0
    %1422 = vmatpush1.msra.mxu0 %v1347
    %1423 = vmatprep.subr.mxu0 0.0
    %1424 = vmatpush1.msra.mxu0 %v1348
    %1425 = vmatprep.subr.mxu0 0.0
    %1426 = vmatpush1.msra.mxu0 %v1349
    %1427 = vmatprep.subr.mxu0 0.0
    %1428 = vmatpush1.msra.mxu0 %v1350
    %1429 = vmatprep.subr.mxu0 0.0
    %1430 = vmatpush1.msra.mxu0 %v1351
    %1431 = vmatprep.subr.mxu0 0.0
    %1432 = vmatpush1.msra.mxu0 %v1352
    %1433 = vmatprep.subr.mxu0 0.0
    %1434 = vmatpush1.msra.mxu0 %v1353
    %1435 = vmatprep.subr.mxu0 0.0
    %1436 = vmatpush1.msra.mxu0 %v1354
    %1437 = vmatprep.subr.mxu0 0.0
    %1438 = vmatpush1.msra.mxu0 %v1355
    %1439 = vmatprep.subr.mxu0 0.0
    %1440 = vmatpush1.msra.mxu0 %v1356
    %1441 = vmatprep.subr.mxu0 0.0
    %1442 = vmatpush1.msra.mxu0 %v1357
    %1443 = vmatprep.subr.mxu0 0.0
    %1444 = vmatpush1.msra.mxu0 %v1358
    %1445 = vmatprep.subr.mxu0 0.0
    %1446 = vmatpush1.msra.mxu0 %v1359
    %1447 = vmatprep.subr.mxu0 0.0
    %1448 = vmatpush1.msra.mxu0 %v1360
    %1449 = vmatprep.subr.mxu0 0.0
    %1450 = vmatpush1.msra.mxu0 %v1361
    %1451 = vmatprep.subr.mxu0 0.0
    %1452 = vmatpush1.msra.mxu0 %v1362
    %1453 = vmatprep.subr.mxu0 0.0
    %1454 = vmatpush1.msra.mxu0 %v1363
    %1455 = vmatprep.subr.mxu0 0.0
    %1456 = vmatpush1.msra.mxu0 %v1364
    %1457 = vmatprep.subr.mxu0 0.0
    %1458 = vmatpush1.msra.mxu0 %v1365
    %1459 = vmatprep.subr.mxu0 0.0
    %1460 = vmatpush1.msra.mxu0 %v1366
    %1461 = vmatprep.subr.mxu0 0.0
    %1462 = vmatpush1.msra.mxu0 %v1367
    %1463 = vmatprep.subr.mxu0 0.0
    %1464 = vmatpush1.msra.mxu0 %v1368
    %1465 = vmatprep.subr.mxu0 0.0
    %1466 = vmatpush1.msra.mxu0 %v1369
    %1467 = vmatprep.subr.mxu0 0.0
    %1468 = vmatpush1.msra.mxu0 %v1370
    %1469 = vmatprep.subr.mxu0 0.0
    %1470 = vmatpush1.msra.mxu0 %v1371
    %1471 = vmatprep.subr.mxu0 0.0
    %1472 = vmatpush1.msra.mxu0 %v1372
    %1473 = vmatprep.subr.mxu0 0.0
    %1474 = vmatpush1.msra.mxu0 %v1373
    %1475 = vmatprep.subr.mxu0 0.0
    %1476 = vmatpush1.msra.mxu0 %v1374
    %1477 = vmatprep.subr.mxu0 0.0
    %1478 = vmatpush1.msra.mxu0 %v1375
    %1479 = vmatprep.mubr.f32.mxu0 %v1337
    %1480 = vmatmul.mubr.f32.gmra.mrb[0].mxu0 %v1336
    %v1481 = vpop.f32.mrb[0].mxu0
    %v1482 = vadd.f32 %v1413, %v1481
    %v1483 = vpop.f32.mrb[0].mxu0
    %1484 = vmatprep.mubr.f32.mxu0 %v1341
    %1485 = vmatmul.mubr.f32.gmra.mrb[0].mxu0 %v1340
    %v1486 = vpop.f32.mrb[0].mxu0
    %v1487 = vadd.f32 %v1413, %v1486
    %v1488 = vpop.f32.mrb[0].mxu0
    %1489 = vdwg.mxu0
    %1490 = vmatprep.subr.mxu0 0.0
    %1491 = vmatpush1.msra.mxu0 %v1376
    %1492 = vmatprep.subr.mxu0 0.0
    %1493 = vmatpush1.msra.mxu0 %v1377
    %1494 = vmatprep.subr.mxu0 0.0
    %1495 = vmatpush1.msra.mxu0 %v1378
    %1496 = vmatprep.subr.mxu0 0.0
    %1497 = vmatpush1.msra.mxu0 %v1379
    %1498 = vmatprep.subr.mxu0 0.0
    %1499 = vmatpush1.msra.mxu0 %v1380
    %1500 = vmatprep.subr.mxu0 0.0
    %1501 = vmatpush1.msra.mxu0 %v1381
    %1502 = vmatprep.subr.mxu0 0.0
    %1503 = vmatpush1.msra.mxu0 %v1382
    %1504 = vmatprep.subr.mxu0 0.0
    %1505 = vmatpush1.msra.mxu0 %v1383
    %1506 = vmatprep.subr.mxu0 0.0
    %1507 = vmatpush1.msra.mxu0 %v1384
    %1508 = vmatprep.subr.mxu0 0.0
    %1509 = vmatpush1.msra.mxu0 %v1385
    %1510 = vmatprep.subr.mxu0 0.0
    %1511 = vmatpush1.msra.mxu0 %v1386
    %1512 = vmatprep.subr.mxu0 0.0
    %1513 = vmatpush1.msra.mxu0 %v1387
    %1514 = vmatprep.subr.mxu0 0.0
    %1515 = vmatpush1.msra.mxu0 %v1388
    %1516 = vmatprep.subr.mxu0 0.0
    %1517 = vmatpush1.msra.mxu0 %v1389
    %1518 = vmatprep.subr.mxu0 0.0
    %1519 = vmatpush1.msra.mxu0 %v1390
    %1520 = vmatprep.subr.mxu0 0.0
    %1521 = vmatpush1.msra.mxu0 %v1391
    %1522 = vmatprep.subr.mxu0 0.0
    %1523 = vmatpush1.msra.mxu0 %v1392
    %1524 = vmatprep.subr.mxu0 0.0
    %1525 = vmatpush1.msra.mxu0 %v1393
    %1526 = vmatprep.subr.mxu0 0.0
    %1527 = vmatpush1.msra.mxu0 %v1394
    %1528 = vmatprep.subr.mxu0 0.0
    %1529 = vmatpush1.msra.mxu0 %v1395
    %1530 = vmatprep.subr.mxu0 0.0
    %1531 = vmatpush1.msra.mxu0 %v1396
    %1532 = vmatprep.subr.mxu0 0.0
    %1533 = vmatpush1.msra.mxu0 %v1397
    %1534 = vmatprep.subr.mxu0 0.0
    %1535 = vmatpush1.msra.mxu0 %v1398
    %1536 = vmatprep.subr.mxu0 0.0
    %1537 = vmatpush1.msra.mxu0 %v1399
    %1538 = vmatprep.subr.mxu0 0.0
    %1539 = vmatpush1.msra.mxu0 %v1400
    %1540 = vmatprep.subr.mxu0 0.0
    %1541 = vmatpush1.msra.mxu0 %v1401
    %1542 = vmatprep.subr.mxu0 0.0
    %1543 = vmatpush1.msra.mxu0 %v1402
    %1544 = vmatprep.subr.mxu0 0.0
    %1545 = vmatpush1.msra.mxu0 %v1403
    %1546 = vmatprep.subr.mxu0 0.0
    %1547 = vmatpush1.msra.mxu0 %v1404
    %1548 = vmatprep.subr.mxu0 0.0
    %1549 = vmatpush1.msra.mxu0 %v1405
    %1550 = vmatprep.subr.mxu0 0.0
    %1551 = vmatpush1.msra.mxu0 %v1406
    %1552 = vmatprep.subr.mxu0 0.0
    %1553 = vmatpush1.msra.mxu0 %v1407
    %1554 = vmatprep.mubr.f32.mxu0 %v1339
    %1555 = vmatmul.mubr.f32.gmra.mrb[0].mxu0 %v1338
    %v1556 = vpop.f32.mrb[0].mxu0
    %v1557 = vadd.f32 %v1482, %v1556
    %v1558 = vpop.f32.mrb[0].mxu0
    %1559 = vmatprep.mubr.f32.mxu0 %v1343
    %1560 = vmatmul.mubr.f32.gmra.mrb[0].mxu0 %v1342
    %v1561 = vpop.f32.mrb[0].mxu0
    %v1562 = vadd.f32 %v1487, %v1561
    %v1563 = vpop.f32.mrb[0].mxu0
    %1564 = vdwg.mxu0
    %v1565 = vadd.f32 %v1557, %v1030
    %v1566 = vadd.f32 %v1562, %v1031
    %v1567 = vld [vmem:[%s14] sm:$0x1]
    %v1568 = vld [vmem:[%s15] sm:$0x1]
    %1569 = vadd.xlane.f32.xlu0 %v1565
    %v1570 = vpop.xlane.xlu0 %1569
    %1571 = vadd.xlane.f32.xlu0 %v1566
    %v1572 = vpop.xlane.xlu0 %1571
    %v1573 = vmul.f32 %v1570, %v149
    %v1574 = vmul.f32 %v1572, %v149
    %v1575 = vsub.f32 %v1565, %v1573
    %v1576 = vsub.f32 %v1566, %v1574
    %v1577 = vmul.f32 %v1575, %v1575
    %v1578 = vmul.f32 %v1576, %v1576
    %1579 = vadd.xlane.f32.xlu0 %v1577
    %v1580 = vpop.xlane.xlu0 %1579
    %1581 = vadd.xlane.f32.xlu0 %v1578
    %v1582 = vpop.xlane.xlu0 %1581
    %v1583 = vmul.f32 %v1580, %v149
    %v1584 = vmul.f32 %v1582, %v149
    %v1585 = vadd.f32 %v1583, 1e-12
    %v1586 = vadd.f32 %v1584, 1e-12
    %v1587 = vrsqrt.pop %v1585
    %v1588 = vrsqrt.pop %v1586
    %v1589 = vmul.f32 %v1575, %v1587
    %v1590 = vmul.f32 %v1576, %v1588
    %v1592 = vlaneseq
    %v1593 = vshrl.u32 %v1592, 7
    %v1594 = vsub.s32 0, %v1593
    %v1595 = vrot.slane %v1567, %v1594
    %v1597 = vmul.f32 %v1589, %v1595
    %v1598 = vmul.f32 %v1590, %v1595
    %v1600 = vlaneseq
    %v1601 = vshrl.u32 %v1600, 7
    %v1602 = vsub.s32 0, %v1601
    %v1603 = vrot.slane %v1568, %v1602
    %v1605 = vadd.f32 %v1597, %v1603
    %v1606 = vadd.f32 %v1598, %v1603
    %s1607 = scalar_lea.vmem [#allocation2], 384
    %v1608 = vld [vmem:[%s1607] sm:$0xff]
    %v1609 = vld [vmem:[%s1607 + $0x8] sm:$0xff]
    %v1610 = vld [vmem:[%s1607 + $0x10] sm:$0xff]
    %v1611 = vld [vmem:[%s1607 + $0x18] sm:$0xff]
    %v1612 = vld [vmem:[%s1607 + $0x20] sm:$0xff]
    %v1613 = vld [vmem:[%s1607 + $0x28] sm:$0xff]
    %v1614 = vld [vmem:[%s1607 + $0x30] sm:$0xff]
    %v1615 = vld [vmem:[%s1607 + $0x38] sm:$0xff]
    %v1616 = vld [vmem:[%s1607 + $0x40] sm:$0xff]
    %v1617 = vld [vmem:[%s1607 + $0x48] sm:$0xff]
    %v1618 = vld [vmem:[%s1607 + $0x50] sm:$0xff]
    %v1619 = vld [vmem:[%s1607 + $0x58] sm:$0xff]
    %v1620 = vld [vmem:[%s1607 + $0x60] sm:$0xff]
    %v1621 = vld [vmem:[%s1607 + $0x68] sm:$0xff]
    %v1622 = vld [vmem:[%s1607 + $0x70] sm:$0xff]
    %v1623 = vld [vmem:[%s1607 + $0x78] sm:$0xff]
    %v1624 = vld [vmem:[%s1607 + $0x80] sm:$0xff]
    %v1625 = vld [vmem:[%s1607 + $0x88] sm:$0xff]
    %v1626 = vld [vmem:[%s1607 + $0x90] sm:$0xff]
    %v1627 = vld [vmem:[%s1607 + $0x98] sm:$0xff]
    %v1628 = vld [vmem:[%s1607 + $0xa0] sm:$0xff]
    %v1629 = vld [vmem:[%s1607 + $0xa8] sm:$0xff]
    %v1630 = vld [vmem:[%s1607 + $0xb0] sm:$0xff]
    %v1631 = vld [vmem:[%s1607 + $0xb8] sm:$0xff]
    %v1632 = vld [vmem:[%s1607 + $0xc0] sm:$0xff]
    %v1633 = vld [vmem:[%s1607 + $0xc8] sm:$0xff]
    %v1634 = vld [vmem:[%s1607 + $0xd0] sm:$0xff]
    %v1635 = vld [vmem:[%s1607 + $0xd8] sm:$0xff]
    %v1636 = vld [vmem:[%s1607 + $0xe0] sm:$0xff]
    %v1637 = vld [vmem:[%s1607 + $0xe8] sm:$0xff]
    %v1638 = vld [vmem:[%s1607 + $0xf0] sm:$0xff]
    %v1639 = vld [vmem:[%s1607 + $0xf8] sm:$0xff]
    %v1640 = vld [vmem:[%s1607 + $0x100] sm:$0xff]
    %v1641 = vld [vmem:[%s1607 + $0x108] sm:$0xff]
    %v1642 = vld [vmem:[%s1607 + $0x110] sm:$0xff]
    %v1643 = vld [vmem:[%s1607 + $0x118] sm:$0xff]
    %v1644 = vld [vmem:[%s1607 + $0x120] sm:$0xff]
    %v1645 = vld [vmem:[%s1607 + $0x128] sm:$0xff]
    %v1646 = vld [vmem:[%s1607 + $0x130] sm:$0xff]
    %v1647 = vld [vmem:[%s1607 + $0x138] sm:$0xff]
    %v1648 = vld [vmem:[%s1607 + $0x140] sm:$0xff]
    %v1649 = vld [vmem:[%s1607 + $0x148] sm:$0xff]
    %v1650 = vld [vmem:[%s1607 + $0x150] sm:$0xff]
    %v1651 = vld [vmem:[%s1607 + $0x158] sm:$0xff]
    %v1652 = vld [vmem:[%s1607 + $0x160] sm:$0xff]
    %v1653 = vld [vmem:[%s1607 + $0x168] sm:$0xff]
    %v1654 = vld [vmem:[%s1607 + $0x170] sm:$0xff]
    %v1655 = vld [vmem:[%s1607 + $0x178] sm:$0xff]
    %s1656 = scalar_lea.vmem %s5, 3
    %v1657 = vld [vmem:[%s1656] sm:$0x7]
    %v1659 = vlaneseq
    %v1660 = vshrl.u32 %v1659, 7
    %v1661 = vsub.s32 0, %v1660
    %v1662 = vrot.slane %v1657, %v1661
    %v1663 = vlaneseq
    %v1664 = vshrl.u32 %v1663, 7
    %v1665 = vsub.s32 1, %v1664
    %v1666 = vrot.slane %v1657, %v1665
    %v1667 = vlaneseq
    %v1668 = vshrl.u32 %v1667, 7
    %v1669 = vsub.s32 2, %v1668
    %v1670 = vrot.slane %v1657, %v1669
    %1674 = vmatprep.subr.mxu0 %v1609
    %1675 = vmatpush1.msra.mxu0 %v1608
    %1676 = vmatprep.subr.mxu0 %v1612
    %1677 = vmatpush1.msra.mxu0 %v1611
    %1678 = vmatprep.subr.mxu0 %v1615
    %1679 = vmatpush1.msra.mxu0 %v1614
    %1680 = vmatprep.subr.mxu0 %v1618
    %1681 = vmatpush1.msra.mxu0 %v1617
    %1682 = vmatprep.subr.mxu0 %v1621
    %1683 = vmatpush1.msra.mxu0 %v1620
    %1684 = vmatprep.subr.mxu0 %v1624
    %1685 = vmatpush1.msra.mxu0 %v1623
    %1686 = vmatprep.subr.mxu0 %v1627
    %1687 = vmatpush1.msra.mxu0 %v1626
    %1688 = vmatprep.subr.mxu0 %v1630
    %1689 = vmatpush1.msra.mxu0 %v1629
    %1690 = vmatprep.subr.mxu0 %v1633
    %1691 = vmatpush1.msra.mxu0 %v1632
    %1692 = vmatprep.subr.mxu0 %v1636
    %1693 = vmatpush1.msra.mxu0 %v1635
    %1694 = vmatprep.subr.mxu0 %v1639
    %1695 = vmatpush1.msra.mxu0 %v1638
    %1696 = vmatprep.subr.mxu0 %v1642
    %1697 = vmatpush1.msra.mxu0 %v1641
    %1698 = vmatprep.subr.mxu0 %v1645
    %1699 = vmatpush1.msra.mxu0 %v1644
    %1700 = vmatprep.subr.mxu0 %v1648
    %1701 = vmatpush1.msra.mxu0 %v1647
    %1702 = vmatprep.subr.mxu0 %v1651
    %1703 = vmatpush1.msra.mxu0 %v1650
    %1704 = vmatprep.subr.mxu0 %v1654
    %1705 = vmatpush1.msra.mxu0 %v1653
    %1706 = vmatprep.subr.mxu0 0.0
    %1707 = vmatpush1.msra.mxu0 0.0
    %1708 = vmatprep.subr.mxu0 0.0
    %1709 = vmatpush1.msra.mxu0 0.0
    %1710 = vmatprep.subr.mxu0 0.0
    %1711 = vmatpush1.msra.mxu0 0.0
    %1712 = vmatprep.subr.mxu0 0.0
    %1713 = vmatpush1.msra.mxu0 0.0
    %1714 = vmatprep.subr.mxu0 0.0
    %1715 = vmatpush1.msra.mxu0 0.0
    %1716 = vmatprep.subr.mxu0 0.0
    %1717 = vmatpush1.msra.mxu0 0.0
    %1718 = vmatprep.subr.mxu0 0.0
    %1719 = vmatpush1.msra.mxu0 0.0
    %1720 = vmatprep.subr.mxu0 0.0
    %1721 = vmatpush1.msra.mxu0 0.0
    %1722 = vmatprep.subr.mxu0 0.0
    %1723 = vmatpush1.msra.mxu0 0.0
    %1724 = vmatprep.subr.mxu0 0.0
    %1725 = vmatpush1.msra.mxu0 0.0
    %1726 = vmatprep.subr.mxu0 0.0
    %1727 = vmatpush1.msra.mxu0 0.0
    %1728 = vmatprep.subr.mxu0 0.0
    %1729 = vmatpush1.msra.mxu0 0.0
    %1730 = vmatprep.subr.mxu0 0.0
    %1731 = vmatpush1.msra.mxu0 0.0
    %1732 = vmatprep.subr.mxu0 0.0
    %1733 = vmatpush1.msra.mxu0 0.0
    %1734 = vmatprep.subr.mxu0 0.0
    %1735 = vmatpush1.msra.mxu0 0.0
    %1736 = vmatprep.subr.mxu0 0.0
    %1737 = vmatpush1.msra.mxu0 0.0
    %1738 = vmatprep.mubr.f32.mxu0 0.0
    %1739 = vmatmul.mubr.f32.gmra.mrb[0].mxu0 %v1605
    %v1740 = vpop.f32.mrb[0].mxu0
    %v1741 = vadd.f32 %v1662, %v1740
    %v1742 = vpop.f32.mrb[0].mxu0
    %v1743 = vadd.f32 %v1666, %v1742
    %1744 = vmatprep.mubr.f32.mxu0 0.0
    %1745 = vmatmul.mubr.f32.gmra.mrb[0].mxu0 %v1606
    %v1746 = vpop.f32.mrb[0].mxu0
    %v1747 = vadd.f32 %v1662, %v1746
    %v1748 = vpop.f32.mrb[0].mxu0
    %v1749 = vadd.f32 %v1666, %v1748
    %1750 = vdwg.mxu0
    %1751 = vmatprep.subr.mxu0 0.0
    %1752 = vmatpush1.msra.mxu0 %v1610
    %1753 = vmatprep.subr.mxu0 0.0
    %1754 = vmatpush1.msra.mxu0 %v1613
    %1755 = vmatprep.subr.mxu0 0.0
    %1756 = vmatpush1.msra.mxu0 %v1616
    %1757 = vmatprep.subr.mxu0 0.0
    %1758 = vmatpush1.msra.mxu0 %v1619
    %1759 = vmatprep.subr.mxu0 0.0
    %1760 = vmatpush1.msra.mxu0 %v1622
    %1761 = vmatprep.subr.mxu0 0.0
    %1762 = vmatpush1.msra.mxu0 %v1625
    %1763 = vmatprep.subr.mxu0 0.0
    %1764 = vmatpush1.msra.mxu0 %v1628
    %1765 = vmatprep.subr.mxu0 0.0
    %1766 = vmatpush1.msra.mxu0 %v1631
    %1767 = vmatprep.subr.mxu0 0.0
    %1768 = vmatpush1.msra.mxu0 %v1634
    %1769 = vmatprep.subr.mxu0 0.0
    %1770 = vmatpush1.msra.mxu0 %v1637
    %1771 = vmatprep.subr.mxu0 0.0
    %1772 = vmatpush1.msra.mxu0 %v1640
    %1773 = vmatprep.subr.mxu0 0.0
    %1774 = vmatpush1.msra.mxu0 %v1643
    %1775 = vmatprep.subr.mxu0 0.0
    %1776 = vmatpush1.msra.mxu0 %v1646
    %1777 = vmatprep.subr.mxu0 0.0
    %1778 = vmatpush1.msra.mxu0 %v1649
    %1779 = vmatprep.subr.mxu0 0.0
    %1780 = vmatpush1.msra.mxu0 %v1652
    %1781 = vmatprep.subr.mxu0 0.0
    %1782 = vmatpush1.msra.mxu0 %v1655
    %1783 = vmatprep.subr.mxu0 0.0
    %1784 = vmatpush1.msra.mxu0 0.0
    %1785 = vmatprep.subr.mxu0 0.0
    %1786 = vmatpush1.msra.mxu0 0.0
    %1787 = vmatprep.subr.mxu0 0.0
    %1788 = vmatpush1.msra.mxu0 0.0
    %1789 = vmatprep.subr.mxu0 0.0
    %1790 = vmatpush1.msra.mxu0 0.0
    %1791 = vmatprep.subr.mxu0 0.0
    %1792 = vmatpush1.msra.mxu0 0.0
    %1793 = vmatprep.subr.mxu0 0.0
    %1794 = vmatpush1.msra.mxu0 0.0
    %1795 = vmatprep.subr.mxu0 0.0
    %1796 = vmatpush1.msra.mxu0 0.0
    %1797 = vmatprep.subr.mxu0 0.0
    %1798 = vmatpush1.msra.mxu0 0.0
    %1799 = vmatprep.subr.mxu0 0.0
    %1800 = vmatpush1.msra.mxu0 0.0
    %1801 = vmatprep.subr.mxu0 0.0
    %1802 = vmatpush1.msra.mxu0 0.0
    %1803 = vmatprep.subr.mxu0 0.0
    %1804 = vmatpush1.msra.mxu0 0.0
    %1805 = vmatprep.subr.mxu0 0.0
    %1806 = vmatpush1.msra.mxu0 0.0
    %1807 = vmatprep.subr.mxu0 0.0
    %1808 = vmatpush1.msra.mxu0 0.0
    %1809 = vmatprep.subr.mxu0 0.0
    %1810 = vmatpush1.msra.mxu0 0.0
    %1811 = vmatprep.subr.mxu0 0.0
    %1812 = vmatpush1.msra.mxu0 0.0
    %1813 = vmatprep.subr.mxu0 0.0
    %1814 = vmatpush1.msra.mxu0 0.0
    %1815 = vmatprep.mubr.f32.mxu0 0.0
    %1816 = vmatmul.mubr.f32.gmra.mrb[0].mxu0 %v1605
    %v1817 = vpop.f32.mrb[0].mxu0
    %v1818 = vadd.f32 %v1670, %v1817
    %v1819 = vpop.f32.mrb[0].mxu0
    %1820 = vmatprep.mubr.f32.mxu0 0.0
    %1821 = vmatmul.mubr.f32.gmra.mrb[0].mxu0 %v1606
    %v1822 = vpop.f32.mrb[0].mxu0
    %v1823 = vadd.f32 %v1670, %v1822
    %v1824 = vpop.f32.mrb[0].mxu0
    %1825 = vdwg.mxu0
    %s1826 = scalar_lea.vmem %s6, 128
    %v1827 = vld [vmem:[%s1826] sm:$0xff]
    %v1828 = vld [vmem:[%s1826 + $0x8] sm:$0xff]
    %v1829 = vld [vmem:[%s1826 + $0x10] sm:$0xff]
    %v1830 = vld [vmem:[%s1826 + $0x18] sm:$0xff]
    %v1831 = vld [vmem:[%s1826 + $0x20] sm:$0xff]
    %v1832 = vld [vmem:[%s1826 + $0x28] sm:$0xff]
    %v1833 = vld [vmem:[%s1826 + $0x30] sm:$0xff]
    %v1834 = vld [vmem:[%s1826 + $0x38] sm:$0xff]
    %v1835 = vld [vmem:[%s1826 + $0x40] sm:$0xff]
    %v1836 = vld [vmem:[%s1826 + $0x48] sm:$0xff]
    %v1837 = vld [vmem:[%s1826 + $0x50] sm:$0xff]
    %v1838 = vld [vmem:[%s1826 + $0x58] sm:$0xff]
    %v1839 = vld [vmem:[%s1826 + $0x60] sm:$0xff]
    %v1840 = vld [vmem:[%s1826 + $0x68] sm:$0xff]
    %v1841 = vld [vmem:[%s1826 + $0x70] sm:$0xff]
    %v1842 = vld [vmem:[%s1826 + $0x78] sm:$0xff]
    %v1844 = vsel %vm417, %v1741, 0
    %v1847 = vsel %vm417, %v1747, 0
    %v1850 = vsel %vm417, %v1743, 0
    %v1853 = vsel %vm417, %v1749, 0
    %1855 = vmatprep.subr.mxu0 0.0
    %1856 = vmatpush1.xpose.msra.mxu0 %v1850
    %1857 = vmatprep.subr.mxu0 0.0
    %1858 = vmatpush1.xpose.msra.mxu0 %v1853
    %1859 = vmatprep.subr.mxu0 0.0
    %1860 = vmatpush1.xpose.msra.mxu0 0.0
    %1861 = vmatprep.subr.mxu0 0.0
    %1862 = vmatpush1.xpose.msra.mxu0 0.0
    %1863 = vmatprep.subr.mxu0 0.0
    %1864 = vmatpush1.xpose.msra.mxu0 0.0
    %1865 = vmatprep.subr.mxu0 0.0
    %1866 = vmatpush1.xpose.msra.mxu0 0.0
    %1867 = vmatprep.subr.mxu0 0.0
    %1868 = vmatpush1.xpose.msra.mxu0 0.0
    %1869 = vmatprep.subr.mxu0 0.0
    %1870 = vmatpush1.xpose.msra.mxu0 0.0
    %1871 = vmatprep.subr.mxu0 0.0
    %1872 = vmatpush1.xpose.msra.mxu0 0.0
    %1873 = vmatprep.subr.mxu0 0.0
    %1874 = vmatpush1.xpose.msra.mxu0 0.0
    %1875 = vmatprep.subr.mxu0 0.0
    %1876 = vmatpush1.xpose.msra.mxu0 0.0
    %1877 = vmatprep.subr.mxu0 0.0
    %1878 = vmatpush1.xpose.msra.mxu0 0.0
    %1879 = vmatprep.subr.mxu0 0.0
    %1880 = vmatpush1.xpose.msra.mxu0 0.0
    %1881 = vmatprep.subr.mxu0 0.0
    %1882 = vmatpush1.xpose.msra.mxu0 0.0
    %1883 = vmatprep.subr.mxu0 0.0
    %1884 = vmatpush1.xpose.msra.mxu0 0.0
    %1885 = vmatprep.subr.mxu0 0.0
    %1886 = vmatpush1.xpose.msra.mxu0 0.0
    %1887 = vmatprep.subr.mxu0 0.0
    %1888 = vmatpush1.xpose.msra.mxu0 0.0
    %1889 = vmatprep.subr.mxu0 0.0
    %1890 = vmatpush1.xpose.msra.mxu0 0.0
    %1891 = vmatprep.subr.mxu0 0.0
    %1892 = vmatpush1.xpose.msra.mxu0 0.0
    %1893 = vmatprep.subr.mxu0 0.0
    %1894 = vmatpush1.xpose.msra.mxu0 0.0
    %1895 = vmatprep.subr.mxu0 0.0
    %1896 = vmatpush1.xpose.msra.mxu0 0.0
    %1897 = vmatprep.subr.mxu0 0.0
    %1898 = vmatpush1.xpose.msra.mxu0 0.0
    %1899 = vmatprep.subr.mxu0 0.0
    %1900 = vmatpush1.xpose.msra.mxu0 0.0
    %1901 = vmatprep.subr.mxu0 0.0
    %1902 = vmatpush1.xpose.msra.mxu0 0.0
    %1903 = vmatprep.subr.mxu0 0.0
    %1904 = vmatpush1.xpose.msra.mxu0 0.0
    %1905 = vmatprep.subr.mxu0 0.0
    %1906 = vmatpush1.xpose.msra.mxu0 0.0
    %1907 = vmatprep.subr.mxu0 0.0
    %1908 = vmatpush1.xpose.msra.mxu0 0.0
    %1909 = vmatprep.subr.mxu0 0.0
    %1910 = vmatpush1.xpose.msra.mxu0 0.0
    %1911 = vmatprep.subr.mxu0 0.0
    %1912 = vmatpush1.xpose.msra.mxu0 0.0
    %1913 = vmatprep.subr.mxu0 0.0
    %1914 = vmatpush1.xpose.msra.mxu0 0.0
    %1915 = vmatprep.subr.mxu0 0.0
    %1916 = vmatpush1.xpose.msra.mxu0 0.0
    %1917 = vmatprep.subr.mxu0 0.0
    %1918 = vmatpush1.xpose.msra.mxu0 0.0
    %1919 = vmatprep.mubr.f32.mxu0 0.0
    %1920 = vmatmul.mubr.f32.gmra.mrb[0].mxu0 %v1844
    %v1921 = vpop.f32.mrb[0].mxu0
    %v1922 = vadd.f32 0.0, %v1921
    %v1923 = vpop.f32.mrb[0].mxu0
    %1924 = vmatprep.mubr.f32.mxu0 0.0
    %1925 = vmatmul.mubr.f32.gmra.mrb[0].mxu0 %v1847
    %v1926 = vpop.f32.mrb[0].mxu0
    %v1927 = vadd.f32 0.0, %v1926
    %v1928 = vpop.f32.mrb[0].mxu0
    %1929 = vdwg.mxu0
    %v1930 = vmul.f32 %v1922, 0.125
    %v1931 = vmul.f32 %v1927, 0.125
    %v1932 = vadd.f32 %v1930, %v139
    %v1933 = vadd.f32 %v1931, %v140
    %v1934 = vsel %vm509, %v1932, -inf
    %1935 = vmax.xlane.f32.xlu0 %v1934
    %v1936 = vpop.xlane.xlu0 %1935
    %v1937 = vsel %vm509, %v1933, -inf
    %1938 = vmax.xlane.f32.xlu0 %v1937
    %v1939 = vpop.xlane.xlu0 %1938
    %v1940 = vsub.f32 %v1932, %v1936
    %v1941 = vsub.f32 %v1933, %v1939
    %v1942 = vmul.f32 %v1940, 1.442695
    %v1943 = vpow.pop %v1942
    %v1944 = vmul.f32 %v1941, 1.442695
    %v1945 = vpow.pop %v1944
    %v1946 = vsel %vm509, %v1943, 0.0
    %1947 = vadd.xlane.f32.xlu0 %v1946
    %v1948 = vpop.xlane.xlu0 %1947
    %v1949 = vsel %vm509, %v1945, 0.0
    %1950 = vadd.xlane.f32.xlu0 %v1949
    %v1951 = vpop.xlane.xlu0 %1950
    %v1952 = vrcp.pop %v1948
    %v1953 = vmul.f32 %v1943, %v1952
    %v1954 = vrcp.pop %v1951
    %v1955 = vmul.f32 %v1945, %v1954
    %v1957 = vsel %vm509, %v1953, 0
    %v1960 = vsel %vm509, %v1955, 0
    %1962 = vmatprep.subr.mxu0 0.0
    %1963 = vmatpush1.msra.mxu0 %v1818
    %1964 = vmatprep.subr.mxu0 0.0
    %1965 = vmatpush1.msra.mxu0 %v1823
    %1966 = vmatprep.subr.mxu0 0.0
    %1967 = vmatpush1.msra.mxu0 0.0
    %1968 = vmatprep.subr.mxu0 0.0
    %1969 = vmatpush1.msra.mxu0 0.0
    %1970 = vmatprep.subr.mxu0 0.0
    %1971 = vmatpush1.msra.mxu0 0.0
    %1972 = vmatprep.subr.mxu0 0.0
    %1973 = vmatpush1.msra.mxu0 0.0
    %1974 = vmatprep.subr.mxu0 0.0
    %1975 = vmatpush1.msra.mxu0 0.0
    %1976 = vmatprep.subr.mxu0 0.0
    %1977 = vmatpush1.msra.mxu0 0.0
    %1978 = vmatprep.subr.mxu0 0.0
    %1979 = vmatpush1.msra.mxu0 0.0
    %1980 = vmatprep.subr.mxu0 0.0
    %1981 = vmatpush1.msra.mxu0 0.0
    %1982 = vmatprep.subr.mxu0 0.0
    %1983 = vmatpush1.msra.mxu0 0.0
    %1984 = vmatprep.subr.mxu0 0.0
    %1985 = vmatpush1.msra.mxu0 0.0
    %1986 = vmatprep.subr.mxu0 0.0
    %1987 = vmatpush1.msra.mxu0 0.0
    %1988 = vmatprep.subr.mxu0 0.0
    %1989 = vmatpush1.msra.mxu0 0.0
    %1990 = vmatprep.subr.mxu0 0.0
    %1991 = vmatpush1.msra.mxu0 0.0
    %1992 = vmatprep.subr.mxu0 0.0
    %1993 = vmatpush1.msra.mxu0 0.0
    %1994 = vmatprep.subr.mxu0 0.0
    %1995 = vmatpush1.msra.mxu0 0.0
    %1996 = vmatprep.subr.mxu0 0.0
    %1997 = vmatpush1.msra.mxu0 0.0
    %1998 = vmatprep.subr.mxu0 0.0
    %1999 = vmatpush1.msra.mxu0 0.0
    %2000 = vmatprep.subr.mxu0 0.0
    %2001 = vmatpush1.msra.mxu0 0.0
    %2002 = vmatprep.subr.mxu0 0.0
    %2003 = vmatpush1.msra.mxu0 0.0
    %2004 = vmatprep.subr.mxu0 0.0
    %2005 = vmatpush1.msra.mxu0 0.0
    %2006 = vmatprep.subr.mxu0 0.0
    %2007 = vmatpush1.msra.mxu0 0.0
    %2008 = vmatprep.subr.mxu0 0.0
    %2009 = vmatpush1.msra.mxu0 0.0
    %2010 = vmatprep.subr.mxu0 0.0
    %2011 = vmatpush1.msra.mxu0 0.0
    %2012 = vmatprep.subr.mxu0 0.0
    %2013 = vmatpush1.msra.mxu0 0.0
    %2014 = vmatprep.subr.mxu0 0.0
    %2015 = vmatpush1.msra.mxu0 0.0
    %2016 = vmatprep.subr.mxu0 0.0
    %2017 = vmatpush1.msra.mxu0 0.0
    %2018 = vmatprep.subr.mxu0 0.0
    %2019 = vmatpush1.msra.mxu0 0.0
    %2020 = vmatprep.subr.mxu0 0.0
    %2021 = vmatpush1.msra.mxu0 0.0
    %2022 = vmatprep.subr.mxu0 0.0
    %2023 = vmatpush1.msra.mxu0 0.0
    %2024 = vmatprep.subr.mxu0 0.0
    %2025 = vmatpush1.msra.mxu0 0.0
    %2026 = vmatprep.mubr.f32.mxu0 0.0
    %2027 = vmatmul.mubr.f32.gmra.mrb[0].mxu0 %v1957
    %v2028 = vpop.f32.mrb[0].mxu0
    %v2029 = vadd.f32 0.0, %v2028
    %v2030 = vpop.f32.mrb[0].mxu0
    %2031 = vmatprep.mubr.f32.mxu0 0.0
    %2032 = vmatmul.mubr.f32.gmra.mrb[0].mxu0 %v1960
    %v2033 = vpop.f32.mrb[0].mxu0
    %v2034 = vadd.f32 0.0, %v2033
    %v2035 = vpop.f32.mrb[0].mxu0
    %2036 = vdwg.mxu0
    %2037 = vrot.lane.b32.xlu0 %v1741, 64
    %v2038 = vpop.permute.xlu0 %2037
    %2039 = vrot.lane.b32.xlu0 %v1747, 64
    %v2040 = vpop.permute.xlu0 %2039
    %2041 = vrot.lane.b32.xlu0 %v1743, 64
    %v2042 = vpop.permute.xlu0 %2041
    %2043 = vrot.lane.b32.xlu0 %v1749, 64
    %v2044 = vpop.permute.xlu0 %2043
    %v2045 = vsel %vm417, %v2038, 0
    %v2047 = vsel %vm417, %v2040, 0
    %v2049 = vsel %vm417, %v2042, 0
    %v2051 = vsel %vm417, %v2044, 0
    %2053 = vmatprep.subr.mxu0 0.0
    %2054 = vmatpush1.xpose.msra.mxu0 %v2049
    %2055 = vmatprep.subr.mxu0 0.0
    %2056 = vmatpush1.xpose.msra.mxu0 %v2051
    %2057 = vmatprep.subr.mxu0 0.0
    %2058 = vmatpush1.xpose.msra.mxu0 0.0
    %2059 = vmatprep.subr.mxu0 0.0
    %2060 = vmatpush1.xpose.msra.mxu0 0.0
    %2061 = vmatprep.subr.mxu0 0.0
    %2062 = vmatpush1.xpose.msra.mxu0 0.0
    %2063 = vmatprep.subr.mxu0 0.0
    %2064 = vmatpush1.xpose.msra.mxu0 0.0
    %2065 = vmatprep.subr.mxu0 0.0
    %2066 = vmatpush1.xpose.msra.mxu0 0.0
    %2067 = vmatprep.subr.mxu0 0.0
    %2068 = vmatpush1.xpose.msra.mxu0 0.0
    %2069 = vmatprep.subr.mxu0 0.0
    %2070 = vmatpush1.xpose.msra.mxu0 0.0
    %2071 = vmatprep.subr.mxu0 0.0
    %2072 = vmatpush1.xpose.msra.mxu0 0.0
    %2073 = vmatprep.subr.mxu0 0.0
    %2074 = vmatpush1.xpose.msra.mxu0 0.0
    %2075 = vmatprep.subr.mxu0 0.0
    %2076 = vmatpush1.xpose.msra.mxu0 0.0
    %2077 = vmatprep.subr.mxu0 0.0
    %2078 = vmatpush1.xpose.msra.mxu0 0.0
    %2079 = vmatprep.subr.mxu0 0.0
    %2080 = vmatpush1.xpose.msra.mxu0 0.0
    %2081 = vmatprep.subr.mxu0 0.0
    %2082 = vmatpush1.xpose.msra.mxu0 0.0
    %2083 = vmatprep.subr.mxu0 0.0
    %2084 = vmatpush1.xpose.msra.mxu0 0.0
    %2085 = vmatprep.subr.mxu0 0.0
    %2086 = vmatpush1.xpose.msra.mxu0 0.0
    %2087 = vmatprep.subr.mxu0 0.0
    %2088 = vmatpush1.xpose.msra.mxu0 0.0
    %2089 = vmatprep.subr.mxu0 0.0
    %2090 = vmatpush1.xpose.msra.mxu0 0.0
    %2091 = vmatprep.subr.mxu0 0.0
    %2092 = vmatpush1.xpose.msra.mxu0 0.0
    %2093 = vmatprep.subr.mxu0 0.0
    %2094 = vmatpush1.xpose.msra.mxu0 0.0
    %2095 = vmatprep.subr.mxu0 0.0
    %2096 = vmatpush1.xpose.msra.mxu0 0.0
    %2097 = vmatprep.subr.mxu0 0.0
    %2098 = vmatpush1.xpose.msra.mxu0 0.0
    %2099 = vmatprep.subr.mxu0 0.0
    %2100 = vmatpush1.xpose.msra.mxu0 0.0
    %2101 = vmatprep.subr.mxu0 0.0
    %2102 = vmatpush1.xpose.msra.mxu0 0.0
    %2103 = vmatprep.subr.mxu0 0.0
    %2104 = vmatpush1.xpose.msra.mxu0 0.0
    %2105 = vmatprep.subr.mxu0 0.0
    %2106 = vmatpush1.xpose.msra.mxu0 0.0
    %2107 = vmatprep.subr.mxu0 0.0
    %2108 = vmatpush1.xpose.msra.mxu0 0.0
    %2109 = vmatprep.subr.mxu0 0.0
    %2110 = vmatpush1.xpose.msra.mxu0 0.0
    %2111 = vmatprep.subr.mxu0 0.0
    %2112 = vmatpush1.xpose.msra.mxu0 0.0
    %2113 = vmatprep.subr.mxu0 0.0
    %2114 = vmatpush1.xpose.msra.mxu0 0.0
    %2115 = vmatprep.subr.mxu0 0.0
    %2116 = vmatpush1.xpose.msra.mxu0 0.0
    %2117 = vmatprep.mubr.f32.mxu0 0.0
    %2118 = vmatmul.mubr.f32.gmra.mrb[0].mxu0 %v2045
    %v2119 = vpop.f32.mrb[0].mxu0
    %v2120 = vadd.f32 0.0, %v2119
    %v2121 = vpop.f32.mrb[0].mxu0
    %2122 = vmatprep.mubr.f32.mxu0 0.0
    %2123 = vmatmul.mubr.f32.gmra.mrb[0].mxu0 %v2047
    %v2124 = vpop.f32.mrb[0].mxu0
    %v2125 = vadd.f32 0.0, %v2124
    %v2126 = vpop.f32.mrb[0].mxu0
    %2127 = vdwg.mxu0
    %v2128 = vmul.f32 %v2120, 0.125
    %v2129 = vmul.f32 %v2125, 0.125
    %v2130 = vadd.f32 %v2128, %v139
    %v2131 = vadd.f32 %v2129, %v140
    %v2132 = vsel %vm509, %v2130, -inf
    %2133 = vmax.xlane.f32.xlu0 %v2132
    %v2134 = vpop.xlane.xlu0 %2133
    %v2135 = vsel %vm509, %v2131, -inf
    %2136 = vmax.xlane.f32.xlu0 %v2135
    %v2137 = vpop.xlane.xlu0 %2136
    %v2138 = vsub.f32 %v2130, %v2134
    %v2139 = vsub.f32 %v2131, %v2137
    %v2140 = vmul.f32 %v2138, 1.442695
    %v2141 = vpow.pop %v2140
    %v2142 = vmul.f32 %v2139, 1.442695
    %v2143 = vpow.pop %v2142
    %v2144 = vsel %vm509, %v2141, 0.0
    %2145 = vadd.xlane.f32.xlu0 %v2144
    %v2146 = vpop.xlane.xlu0 %2145
    %v2147 = vsel %vm509, %v2143, 0.0
    %2148 = vadd.xlane.f32.xlu0 %v2147
    %v2149 = vpop.xlane.xlu0 %2148
    %v2150 = vrcp.pop %v2146
    %v2151 = vmul.f32 %v2141, %v2150
    %v2152 = vrcp.pop %v2149
    %v2153 = vmul.f32 %v2143, %v2152
    %2156 = vrot.lane.b32.xlu0 %v1818, 64
    %v2157 = vpop.permute.xlu0 %2156
    %2158 = vrot.lane.b32.xlu0 %v1823, 64
    %v2159 = vpop.permute.xlu0 %2158
    %v2163 = vsel %vm509, %v2151, 0
    %v2166 = vsel %vm509, %v2153, 0
    %2168 = vmatprep.subr.mxu0 0.0
    %2169 = vmatpush1.msra.mxu0 %v2157
    %2170 = vmatprep.subr.mxu0 0.0
    %2171 = vmatpush1.msra.mxu0 %v2159
    %2172 = vmatprep.subr.mxu0 0.0
    %2173 = vmatpush1.msra.mxu0 0.0
    %2174 = vmatprep.subr.mxu0 0.0
    %2175 = vmatpush1.msra.mxu0 0.0
    %2176 = vmatprep.subr.mxu0 0.0
    %2177 = vmatpush1.msra.mxu0 0.0
    %2178 = vmatprep.subr.mxu0 0.0
    %2179 = vmatpush1.msra.mxu0 0.0
    %2180 = vmatprep.subr.mxu0 0.0
    %2181 = vmatpush1.msra.mxu0 0.0
    %2182 = vmatprep.subr.mxu0 0.0
    %2183 = vmatpush1.msra.mxu0 0.0
    %2184 = vmatprep.subr.mxu0 0.0
    %2185 = vmatpush1.msra.mxu0 0.0
    %2186 = vmatprep.subr.mxu0 0.0
    %2187 = vmatpush1.msra.mxu0 0.0
    %2188 = vmatprep.subr.mxu0 0.0
    %2189 = vmatpush1.msra.mxu0 0.0
    %2190 = vmatprep.subr.mxu0 0.0
    %2191 = vmatpush1.msra.mxu0 0.0
    %2192 = vmatprep.subr.mxu0 0.0
    %2193 = vmatpush1.msra.mxu0 0.0
    %2194 = vmatprep.subr.mxu0 0.0
    %2195 = vmatpush1.msra.mxu0 0.0
    %2196 = vmatprep.subr.mxu0 0.0
    %2197 = vmatpush1.msra.mxu0 0.0
    %2198 = vmatprep.subr.mxu0 0.0
    %2199 = vmatpush1.msra.mxu0 0.0
    %2200 = vmatprep.subr.mxu0 0.0
    %2201 = vmatpush1.msra.mxu0 0.0
    %2202 = vmatprep.subr.mxu0 0.0
    %2203 = vmatpush1.msra.mxu0 0.0
    %2204 = vmatprep.subr.mxu0 0.0
    %2205 = vmatpush1.msra.mxu0 0.0
    %2206 = vmatprep.subr.mxu0 0.0
    %2207 = vmatpush1.msra.mxu0 0.0
    %2208 = vmatprep.subr.mxu0 0.0
    %2209 = vmatpush1.msra.mxu0 0.0
    %2210 = vmatprep.subr.mxu0 0.0
    %2211 = vmatpush1.msra.mxu0 0.0
    %2212 = vmatprep.subr.mxu0 0.0
    %2213 = vmatpush1.msra.mxu0 0.0
    %2214 = vmatprep.subr.mxu0 0.0
    %2215 = vmatpush1.msra.mxu0 0.0
    %2216 = vmatprep.subr.mxu0 0.0
    %2217 = vmatpush1.msra.mxu0 0.0
    %2218 = vmatprep.subr.mxu0 0.0
    %2219 = vmatpush1.msra.mxu0 0.0
    %2220 = vmatprep.subr.mxu0 0.0
    %2221 = vmatpush1.msra.mxu0 0.0
    %2222 = vmatprep.subr.mxu0 0.0
    %2223 = vmatpush1.msra.mxu0 0.0
    %2224 = vmatprep.subr.mxu0 0.0
    %2225 = vmatpush1.msra.mxu0 0.0
    %2226 = vmatprep.subr.mxu0 0.0
    %2227 = vmatpush1.msra.mxu0 0.0
    %2228 = vmatprep.subr.mxu0 0.0
    %2229 = vmatpush1.msra.mxu0 0.0
    %2230 = vmatprep.subr.mxu0 0.0
    %2231 = vmatpush1.msra.mxu0 0.0
    %2232 = vmatprep.mubr.f32.mxu0 0.0
    %2233 = vmatmul.mubr.f32.gmra.mrb[0].mxu0 %v2163
    %v2234 = vpop.f32.mrb[0].mxu0
    %v2235 = vadd.f32 0.0, %v2234
    %v2236 = vpop.f32.mrb[0].mxu0
    %2237 = vmatprep.mubr.f32.mxu0 0.0
    %2238 = vmatmul.mubr.f32.gmra.mrb[0].mxu0 %v2166
    %v2239 = vpop.f32.mrb[0].mxu0
    %v2240 = vadd.f32 0.0, %v2239
    %v2241 = vpop.f32.mrb[0].mxu0
    %2242 = vdwg.mxu0
    %v2244 = vsel %vm417, %v2235, 0
    %v2247 = vsel %vm417, %v2240, 0
    %2249 = vmatprep.subr.mxu0 0.0
    %2250 = vmatpush1.msra.mxu0 %v1835
    %2251 = vmatprep.subr.mxu0 0.0
    %2252 = vmatpush1.msra.mxu0 %v1836
    %2253 = vmatprep.subr.mxu0 0.0
    %2254 = vmatpush1.msra.mxu0 %v1837
    %2255 = vmatprep.subr.mxu0 0.0
    %2256 = vmatpush1.msra.mxu0 %v1838
    %2257 = vmatprep.subr.mxu0 0.0
    %2258 = vmatpush1.msra.mxu0 %v1839
    %2259 = vmatprep.subr.mxu0 0.0
    %2260 = vmatpush1.msra.mxu0 %v1840
    %2261 = vmatprep.subr.mxu0 0.0
    %2262 = vmatpush1.msra.mxu0 %v1841
    %2263 = vmatprep.subr.mxu0 0.0
    %2264 = vmatpush1.msra.mxu0 %v1842
    %2265 = vmatprep.subr.mxu0 0.0
    %2266 = vmatpush1.msra.mxu0 0.0
    %2267 = vmatprep.subr.mxu0 0.0
    %2268 = vmatpush1.msra.mxu0 0.0
    %2269 = vmatprep.subr.mxu0 0.0
    %2270 = vmatpush1.msra.mxu0 0.0
    %2271 = vmatprep.subr.mxu0 0.0
    %2272 = vmatpush1.msra.mxu0 0.0
    %2273 = vmatprep.subr.mxu0 0.0
    %2274 = vmatpush1.msra.mxu0 0.0
    %2275 = vmatprep.subr.mxu0 0.0
    %2276 = vmatpush1.msra.mxu0 0.0
    %2277 = vmatprep.subr.mxu0 0.0
    %2278 = vmatpush1.msra.mxu0 0.0
    %2279 = vmatprep.subr.mxu0 0.0
    %2280 = vmatpush1.msra.mxu0 0.0
    %2281 = vmatprep.subr.mxu0 0.0
    %2282 = vmatpush1.msra.mxu0 0.0
    %2283 = vmatprep.subr.mxu0 0.0
    %2284 = vmatpush1.msra.mxu0 0.0
    %2285 = vmatprep.subr.mxu0 0.0
    %2286 = vmatpush1.msra.mxu0 0.0
    %2287 = vmatprep.subr.mxu0 0.0
    %2288 = vmatpush1.msra.mxu0 0.0
    %2289 = vmatprep.subr.mxu0 0.0
    %2290 = vmatpush1.msra.mxu0 0.0
    %2291 = vmatprep.subr.mxu0 0.0
    %2292 = vmatpush1.msra.mxu0 0.0
    %2293 = vmatprep.subr.mxu0 0.0
    %2294 = vmatpush1.msra.mxu0 0.0
    %2295 = vmatprep.subr.mxu0 0.0
    %2296 = vmatpush1.msra.mxu0 0.0
    %2297 = vmatprep.subr.mxu0 0.0
    %2298 = vmatpush1.msra.mxu0 0.0
    %2299 = vmatprep.subr.mxu0 0.0
    %2300 = vmatpush1.msra.mxu0 0.0
    %2301 = vmatprep.subr.mxu0 0.0
    %2302 = vmatpush1.msra.mxu0 0.0
    %2303 = vmatprep.subr.mxu0 0.0
    %2304 = vmatpush1.msra.mxu0 0.0
    %2305 = vmatprep.subr.mxu0 0.0
    %2306 = vmatpush1.msra.mxu0 0.0
    %2307 = vmatprep.subr.mxu0 0.0
    %2308 = vmatpush1.msra.mxu0 0.0
    %2309 = vmatprep.subr.mxu0 0.0
    %2310 = vmatpush1.msra.mxu0 0.0
    %2311 = vmatprep.subr.mxu0 0.0
    %2312 = vmatpush1.msra.mxu0 0.0
    %2313 = vmatprep.mubr.f32.mxu0 0.0
    %2314 = vmatmul.mubr.f32.gmra.mrb[0].mxu0 %v2244
    %v2315 = vpop.f32.mrb[0].mxu0
    %v2316 = vadd.f32 0.0, %v2315
    %v2317 = vpop.f32.mrb[0].mxu0
    %2318 = vmatprep.mubr.f32.mxu0 0.0
    %2319 = vmatmul.mubr.f32.gmra.mrb[0].mxu0 %v2247
    %v2320 = vpop.f32.mrb[0].mxu0
    %v2321 = vadd.f32 0.0, %v2320
    %v2322 = vpop.f32.mrb[0].mxu0
    %2323 = vdwg.mxu0
    %v2325 = vsel %vm417, %v2029, 0
    %v2328 = vsel %vm417, %v2034, 0
    %2330 = vmatprep.subr.mxu0 0.0
    %2331 = vmatpush1.msra.mxu0 %v1827
    %2332 = vmatprep.subr.mxu0 0.0
    %2333 = vmatpush1.msra.mxu0 %v1828
    %2334 = vmatprep.subr.mxu0 0.0
    %2335 = vmatpush1.msra.mxu0 %v1829
    %2336 = vmatprep.subr.mxu0 0.0
    %2337 = vmatpush1.msra.mxu0 %v1830
    %2338 = vmatprep.subr.mxu0 0.0
    %2339 = vmatpush1.msra.mxu0 %v1831
    %2340 = vmatprep.subr.mxu0 0.0
    %2341 = vmatpush1.msra.mxu0 %v1832
    %2342 = vmatprep.subr.mxu0 0.0
    %2343 = vmatpush1.msra.mxu0 %v1833
    %2344 = vmatprep.subr.mxu0 0.0
    %2345 = vmatpush1.msra.mxu0 %v1834
    %2346 = vmatprep.subr.mxu0 0.0
    %2347 = vmatpush1.msra.mxu0 0.0
    %2348 = vmatprep.subr.mxu0 0.0
    %2349 = vmatpush1.msra.mxu0 0.0
    %2350 = vmatprep.subr.mxu0 0.0
    %2351 = vmatpush1.msra.mxu0 0.0
    %2352 = vmatprep.subr.mxu0 0.0
    %2353 = vmatpush1.msra.mxu0 0.0
    %2354 = vmatprep.subr.mxu0 0.0
    %2355 = vmatpush1.msra.mxu0 0.0
    %2356 = vmatprep.subr.mxu0 0.0
    %2357 = vmatpush1.msra.mxu0 0.0
    %2358 = vmatprep.subr.mxu0 0.0
    %2359 = vmatpush1.msra.mxu0 0.0
    %2360 = vmatprep.subr.mxu0 0.0
    %2361 = vmatpush1.msra.mxu0 0.0
    %2362 = vmatprep.subr.mxu0 0.0
    %2363 = vmatpush1.msra.mxu0 0.0
    %2364 = vmatprep.subr.mxu0 0.0
    %2365 = vmatpush1.msra.mxu0 0.0
    %2366 = vmatprep.subr.mxu0 0.0
    %2367 = vmatpush1.msra.mxu0 0.0
    %2368 = vmatprep.subr.mxu0 0.0
    %2369 = vmatpush1.msra.mxu0 0.0
    %2370 = vmatprep.subr.mxu0 0.0
    %2371 = vmatpush1.msra.mxu0 0.0
    %2372 = vmatprep.subr.mxu0 0.0
    %2373 = vmatpush1.msra.mxu0 0.0
    %2374 = vmatprep.subr.mxu0 0.0
    %2375 = vmatpush1.msra.mxu0 0.0
    %2376 = vmatprep.subr.mxu0 0.0
    %2377 = vmatpush1.msra.mxu0 0.0
    %2378 = vmatprep.subr.mxu0 0.0
    %2379 = vmatpush1.msra.mxu0 0.0
    %2380 = vmatprep.subr.mxu0 0.0
    %2381 = vmatpush1.msra.mxu0 0.0
    %2382 = vmatprep.subr.mxu0 0.0
    %2383 = vmatpush1.msra.mxu0 0.0
    %2384 = vmatprep.subr.mxu0 0.0
    %2385 = vmatpush1.msra.mxu0 0.0
    %2386 = vmatprep.subr.mxu0 0.0
    %2387 = vmatpush1.msra.mxu0 0.0
    %2388 = vmatprep.subr.mxu0 0.0
    %2389 = vmatpush1.msra.mxu0 0.0
    %2390 = vmatprep.subr.mxu0 0.0
    %2391 = vmatpush1.msra.mxu0 0.0
    %2392 = vmatprep.subr.mxu0 0.0
    %2393 = vmatpush1.msra.mxu0 0.0
    %2394 = vmatprep.mubr.f32.mxu0 0.0
    %2395 = vmatmul.mubr.f32.gmra.mrb[0].mxu0 %v2325
    %v2396 = vpop.f32.mrb[0].mxu0
    %v2397 = vadd.f32 %v2316, %v2396
    %v2398 = vpop.f32.mrb[0].mxu0
    %2399 = vmatprep.mubr.f32.mxu0 0.0
    %2400 = vmatmul.mubr.f32.gmra.mrb[0].mxu0 %v2328
    %v2401 = vpop.f32.mrb[0].mxu0
    %v2402 = vadd.f32 %v2321, %v2401
    %v2403 = vpop.f32.mrb[0].mxu0
    %2404 = vdwg.mxu0
    %s2405 = scalar_lea.vmem %s7, 1
    %v2406 = vld [vmem:[%s2405] sm:$0x1]
    %v2408 = vlaneseq
    %v2409 = vshrl.u32 %v2408, 7
    %v2410 = vsub.s32 0, %v2409
    %v2411 = vrot.slane %v2406, %v2410
    %v2413 = vadd.f32 %v2397, %v2411
    %v2414 = vadd.f32 %v2402, %v2411
    %v2415 = vadd.f32 %v2413, %v1605
    %v2416 = vadd.f32 %v2414, %v1606
    %s2417 = scalar_lea.vmem %s8, 1
    %v2418 = vld [vmem:[%s2417] sm:$0x1]
    %s2419 = scalar_lea.vmem %s9, 1
    %v2420 = vld [vmem:[%s2419] sm:$0x1]
    %2421 = vadd.xlane.f32.xlu0 %v2415
    %v2422 = vpop.xlane.xlu0 %2421
    %2423 = vadd.xlane.f32.xlu0 %v2416
    %v2424 = vpop.xlane.xlu0 %2423
    %v2425 = vmul.f32 %v2422, %v149
    %v2426 = vmul.f32 %v2424, %v149
    %v2427 = vsub.f32 %v2415, %v2425
    %v2428 = vsub.f32 %v2416, %v2426
    %v2429 = vmul.f32 %v2427, %v2427
    %v2430 = vmul.f32 %v2428, %v2428
    %2431 = vadd.xlane.f32.xlu0 %v2429
    %v2432 = vpop.xlane.xlu0 %2431
    %2433 = vadd.xlane.f32.xlu0 %v2430
    %v2434 = vpop.xlane.xlu0 %2433
    %v2435 = vmul.f32 %v2432, %v149
    %v2436 = vmul.f32 %v2434, %v149
    %v2437 = vadd.f32 %v2435, 1e-12
    %v2438 = vadd.f32 %v2436, 1e-12
    %v2439 = vrsqrt.pop %v2437
    %v2440 = vrsqrt.pop %v2438
    %v2441 = vmul.f32 %v2427, %v2439
    %v2442 = vmul.f32 %v2428, %v2440
    %v2444 = vlaneseq
    %v2445 = vshrl.u32 %v2444, 7
    %v2446 = vsub.s32 0, %v2445
    %v2447 = vrot.slane %v2418, %v2446
    %v2449 = vmul.f32 %v2441, %v2447
    %v2450 = vmul.f32 %v2442, %v2447
    %v2452 = vlaneseq
    %v2453 = vshrl.u32 %v2452, 7
    %v2454 = vsub.s32 0, %v2453
    %v2455 = vrot.slane %v2420, %v2454
    %v2457 = vadd.f32 %v2449, %v2455
    %v2458 = vadd.f32 %v2450, %v2455
    %s2459 = scalar_lea.vmem [#allocation4], 512
    %v2460 = vld [vmem:[%s2459] sm:$0xff]
    %v2461 = vld [vmem:[%s2459 + $0x8] sm:$0xff]
    %v2462 = vld [vmem:[%s2459 + $0x10] sm:$0xff]
    %v2463 = vld [vmem:[%s2459 + $0x18] sm:$0xff]
    %v2464 = vld [vmem:[%s2459 + $0x20] sm:$0xff]
    %v2465 = vld [vmem:[%s2459 + $0x28] sm:$0xff]
    %v2466 = vld [vmem:[%s2459 + $0x30] sm:$0xff]
    %v2467 = vld [vmem:[%s2459 + $0x38] sm:$0xff]
    %v2468 = vld [vmem:[%s2459 + $0x40] sm:$0xff]
    %v2469 = vld [vmem:[%s2459 + $0x48] sm:$0xff]
    %v2470 = vld [vmem:[%s2459 + $0x50] sm:$0xff]
    %v2471 = vld [vmem:[%s2459 + $0x58] sm:$0xff]
    %v2472 = vld [vmem:[%s2459 + $0x60] sm:$0xff]
    %v2473 = vld [vmem:[%s2459 + $0x68] sm:$0xff]
    %v2474 = vld [vmem:[%s2459 + $0x70] sm:$0xff]
    %v2475 = vld [vmem:[%s2459 + $0x78] sm:$0xff]
    %v2476 = vld [vmem:[%s2459 + $0x80] sm:$0xff]
    %v2477 = vld [vmem:[%s2459 + $0x88] sm:$0xff]
    %v2478 = vld [vmem:[%s2459 + $0x90] sm:$0xff]
    %v2479 = vld [vmem:[%s2459 + $0x98] sm:$0xff]
    %v2480 = vld [vmem:[%s2459 + $0xa0] sm:$0xff]
    %v2481 = vld [vmem:[%s2459 + $0xa8] sm:$0xff]
    %v2482 = vld [vmem:[%s2459 + $0xb0] sm:$0xff]
    %v2483 = vld [vmem:[%s2459 + $0xb8] sm:$0xff]
    %v2484 = vld [vmem:[%s2459 + $0xc0] sm:$0xff]
    %v2485 = vld [vmem:[%s2459 + $0xc8] sm:$0xff]
    %v2486 = vld [vmem:[%s2459 + $0xd0] sm:$0xff]
    %v2487 = vld [vmem:[%s2459 + $0xd8] sm:$0xff]
    %v2488 = vld [vmem:[%s2459 + $0xe0] sm:$0xff]
    %v2489 = vld [vmem:[%s2459 + $0xe8] sm:$0xff]
    %v2490 = vld [vmem:[%s2459 + $0xf0] sm:$0xff]
    %v2491 = vld [vmem:[%s2459 + $0xf8] sm:$0xff]
    %v2492 = vld [vmem:[%s2459 + $0x100] sm:$0xff]
    %v2493 = vld [vmem:[%s2459 + $0x108] sm:$0xff]
    %v2494 = vld [vmem:[%s2459 + $0x110] sm:$0xff]
    %v2495 = vld [vmem:[%s2459 + $0x118] sm:$0xff]
    %v2496 = vld [vmem:[%s2459 + $0x120] sm:$0xff]
    %v2497 = vld [vmem:[%s2459 + $0x128] sm:$0xff]
    %v2498 = vld [vmem:[%s2459 + $0x130] sm:$0xff]
    %v2499 = vld [vmem:[%s2459 + $0x138] sm:$0xff]
    %v2500 = vld [vmem:[%s2459 + $0x140] sm:$0xff]
    %v2501 = vld [vmem:[%s2459 + $0x148] sm:$0xff]
    %v2502 = vld [vmem:[%s2459 + $0x150] sm:$0xff]
    %v2503 = vld [vmem:[%s2459 + $0x158] sm:$0xff]
    %v2504 = vld [vmem:[%s2459 + $0x160] sm:$0xff]
    %v2505 = vld [vmem:[%s2459 + $0x168] sm:$0xff]
    %v2506 = vld [vmem:[%s2459 + $0x170] sm:$0xff]
    %v2507 = vld [vmem:[%s2459 + $0x178] sm:$0xff]
    %v2508 = vld [vmem:[%s2459 + $0x180] sm:$0xff]
    %v2509 = vld [vmem:[%s2459 + $0x188] sm:$0xff]
    %v2510 = vld [vmem:[%s2459 + $0x190] sm:$0xff]
    %v2511 = vld [vmem:[%s2459 + $0x198] sm:$0xff]
    %v2512 = vld [vmem:[%s2459 + $0x1a0] sm:$0xff]
    %v2513 = vld [vmem:[%s2459 + $0x1a8] sm:$0xff]
    %v2514 = vld [vmem:[%s2459 + $0x1b0] sm:$0xff]
    %v2515 = vld [vmem:[%s2459 + $0x1b8] sm:$0xff]
    %v2516 = vld [vmem:[%s2459 + $0x1c0] sm:$0xff]
    %v2517 = vld [vmem:[%s2459 + $0x1c8] sm:$0xff]
    %v2518 = vld [vmem:[%s2459 + $0x1d0] sm:$0xff]
    %v2519 = vld [vmem:[%s2459 + $0x1d8] sm:$0xff]
    %v2520 = vld [vmem:[%s2459 + $0x1e0] sm:$0xff]
    %v2521 = vld [vmem:[%s2459 + $0x1e8] sm:$0xff]
    %v2522 = vld [vmem:[%s2459 + $0x1f0] sm:$0xff]
    %v2523 = vld [vmem:[%s2459 + $0x1f8] sm:$0xff]
    %s2524 = scalar_lea.vmem %s11, 4
    %v2525 = vld [vmem:[%s2524] sm:$0xf]
    %v2527 = vlaneseq
    %v2528 = vshrl.u32 %v2527, 7
    %v2529 = vsub.s32 0, %v2528
    %v2530 = vrot.slane %v2525, %v2529
    %v2531 = vlaneseq
    %v2532 = vshrl.u32 %v2531, 7
    %v2533 = vsub.s32 1, %v2532
    %v2534 = vrot.slane %v2525, %v2533
    %v2535 = vlaneseq
    %v2536 = vshrl.u32 %v2535, 7
    %v2537 = vsub.s32 2, %v2536
    %v2538 = vrot.slane %v2525, %v2537
    %v2539 = vlaneseq
    %v2540 = vshrl.u32 %v2539, 7
    %v2541 = vsub.s32 3, %v2540
    %v2542 = vrot.slane %v2525, %v2541
    %2547 = vmatprep.subr.mxu0 %v2461
    %2548 = vmatpush1.msra.mxu0 %v2460
    %2549 = vmatprep.subr.mxu0 %v2465
    %2550 = vmatpush1.msra.mxu0 %v2464
    %2551 = vmatprep.subr.mxu0 %v2469
    %2552 = vmatpush1.msra.mxu0 %v2468
    %2553 = vmatprep.subr.mxu0 %v2473
    %2554 = vmatpush1.msra.mxu0 %v2472
    %2555 = vmatprep.subr.mxu0 %v2477
    %2556 = vmatpush1.msra.mxu0 %v2476
    %2557 = vmatprep.subr.mxu0 %v2481
    %2558 = vmatpush1.msra.mxu0 %v2480
    %2559 = vmatprep.subr.mxu0 %v2485
    %2560 = vmatpush1.msra.mxu0 %v2484
    %2561 = vmatprep.subr.mxu0 %v2489
    %2562 = vmatpush1.msra.mxu0 %v2488
    %2563 = vmatprep.subr.mxu0 %v2493
    %2564 = vmatpush1.msra.mxu0 %v2492
    %2565 = vmatprep.subr.mxu0 %v2497
    %2566 = vmatpush1.msra.mxu0 %v2496
    %2567 = vmatprep.subr.mxu0 %v2501
    %2568 = vmatpush1.msra.mxu0 %v2500
    %2569 = vmatprep.subr.mxu0 %v2505
    %2570 = vmatpush1.msra.mxu0 %v2504
    %2571 = vmatprep.subr.mxu0 %v2509
    %2572 = vmatpush1.msra.mxu0 %v2508
    %2573 = vmatprep.subr.mxu0 %v2513
    %2574 = vmatpush1.msra.mxu0 %v2512
    %2575 = vmatprep.subr.mxu0 %v2517
    %2576 = vmatpush1.msra.mxu0 %v2516
    %2577 = vmatprep.subr.mxu0 %v2521
    %2578 = vmatpush1.msra.mxu0 %v2520
    %2579 = vmatprep.subr.mxu0 0.0
    %2580 = vmatpush1.msra.mxu0 0.0
    %2581 = vmatprep.subr.mxu0 0.0
    %2582 = vmatpush1.msra.mxu0 0.0
    %2583 = vmatprep.subr.mxu0 0.0
    %2584 = vmatpush1.msra.mxu0 0.0
    %2585 = vmatprep.subr.mxu0 0.0
    %2586 = vmatpush1.msra.mxu0 0.0
    %2587 = vmatprep.subr.mxu0 0.0
    %2588 = vmatpush1.msra.mxu0 0.0
    %2589 = vmatprep.subr.mxu0 0.0
    %2590 = vmatpush1.msra.mxu0 0.0
    %2591 = vmatprep.subr.mxu0 0.0
    %2592 = vmatpush1.msra.mxu0 0.0
    %2593 = vmatprep.subr.mxu0 0.0
    %2594 = vmatpush1.msra.mxu0 0.0
    %2595 = vmatprep.subr.mxu0 0.0
    %2596 = vmatpush1.msra.mxu0 0.0
    %2597 = vmatprep.subr.mxu0 0.0
    %2598 = vmatpush1.msra.mxu0 0.0
    %2599 = vmatprep.subr.mxu0 0.0
    %2600 = vmatpush1.msra.mxu0 0.0
    %2601 = vmatprep.subr.mxu0 0.0
    %2602 = vmatpush1.msra.mxu0 0.0
    %2603 = vmatprep.subr.mxu0 0.0
    %2604 = vmatpush1.msra.mxu0 0.0
    %2605 = vmatprep.subr.mxu0 0.0
    %2606 = vmatpush1.msra.mxu0 0.0
    %2607 = vmatprep.subr.mxu0 0.0
    %2608 = vmatpush1.msra.mxu0 0.0
    %2609 = vmatprep.subr.mxu0 0.0
    %2610 = vmatpush1.msra.mxu0 0.0
    %2611 = vmatprep.mubr.f32.mxu0 0.0
    %2612 = vmatmul.mubr.f32.gmra.mrb[0].mxu0 %v2457
    %v2613 = vpop.f32.mrb[0].mxu0
    %v2614 = vadd.f32 %v2530, %v2613
    %v2615 = vpop.f32.mrb[0].mxu0
    %v2616 = vadd.f32 %v2534, %v2615
    %2617 = vmatprep.mubr.f32.mxu0 0.0
    %2618 = vmatmul.mubr.f32.gmra.mrb[0].mxu0 %v2458
    %v2619 = vpop.f32.mrb[0].mxu0
    %v2620 = vadd.f32 %v2530, %v2619
    %v2621 = vpop.f32.mrb[0].mxu0
    %v2622 = vadd.f32 %v2534, %v2621
    %2623 = vdwg.mxu0
    %2624 = vmatprep.subr.mxu0 %v2463
    %2625 = vmatpush1.msra.mxu0 %v2462
    %2626 = vmatprep.subr.mxu0 %v2467
    %2627 = vmatpush1.msra.mxu0 %v2466
    %2628 = vmatprep.subr.mxu0 %v2471
    %2629 = vmatpush1.msra.mxu0 %v2470
    %2630 = vmatprep.subr.mxu0 %v2475
    %2631 = vmatpush1.msra.mxu0 %v2474
    %2632 = vmatprep.subr.mxu0 %v2479
    %2633 = vmatpush1.msra.mxu0 %v2478
    %2634 = vmatprep.subr.mxu0 %v2483
    %2635 = vmatpush1.msra.mxu0 %v2482
    %2636 = vmatprep.subr.mxu0 %v2487
    %2637 = vmatpush1.msra.mxu0 %v2486
    %2638 = vmatprep.subr.mxu0 %v2491
    %2639 = vmatpush1.msra.mxu0 %v2490
    %2640 = vmatprep.subr.mxu0 %v2495
    %2641 = vmatpush1.msra.mxu0 %v2494
    %2642 = vmatprep.subr.mxu0 %v2499
    %2643 = vmatpush1.msra.mxu0 %v2498
    %2644 = vmatprep.subr.mxu0 %v2503
    %2645 = vmatpush1.msra.mxu0 %v2502
    %2646 = vmatprep.subr.mxu0 %v2507
    %2647 = vmatpush1.msra.mxu0 %v2506
    %2648 = vmatprep.subr.mxu0 %v2511
    %2649 = vmatpush1.msra.mxu0 %v2510
    %2650 = vmatprep.subr.mxu0 %v2515
    %2651 = vmatpush1.msra.mxu0 %v2514
    %2652 = vmatprep.subr.mxu0 %v2519
    %2653 = vmatpush1.msra.mxu0 %v2518
    %2654 = vmatprep.subr.mxu0 %v2523
    %2655 = vmatpush1.msra.mxu0 %v2522
    %2656 = vmatprep.subr.mxu0 0.0
    %2657 = vmatpush1.msra.mxu0 0.0
    %2658 = vmatprep.subr.mxu0 0.0
    %2659 = vmatpush1.msra.mxu0 0.0
    %2660 = vmatprep.subr.mxu0 0.0
    %2661 = vmatpush1.msra.mxu0 0.0
    %2662 = vmatprep.subr.mxu0 0.0
    %2663 = vmatpush1.msra.mxu0 0.0
    %2664 = vmatprep.subr.mxu0 0.0
    %2665 = vmatpush1.msra.mxu0 0.0
    %2666 = vmatprep.subr.mxu0 0.0
    %2667 = vmatpush1.msra.mxu0 0.0
    %2668 = vmatprep.subr.mxu0 0.0
    %2669 = vmatpush1.msra.mxu0 0.0
    %2670 = vmatprep.subr.mxu0 0.0
    %2671 = vmatpush1.msra.mxu0 0.0
    %2672 = vmatprep.subr.mxu0 0.0
    %2673 = vmatpush1.msra.mxu0 0.0
    %2674 = vmatprep.subr.mxu0 0.0
    %2675 = vmatpush1.msra.mxu0 0.0
    %2676 = vmatprep.subr.mxu0 0.0
    %2677 = vmatpush1.msra.mxu0 0.0
    %2678 = vmatprep.subr.mxu0 0.0
    %2679 = vmatpush1.msra.mxu0 0.0
    %2680 = vmatprep.subr.mxu0 0.0
    %2681 = vmatpush1.msra.mxu0 0.0
    %2682 = vmatprep.subr.mxu0 0.0
    %2683 = vmatpush1.msra.mxu0 0.0
    %2684 = vmatprep.subr.mxu0 0.0
    %2685 = vmatpush1.msra.mxu0 0.0
    %2686 = vmatprep.subr.mxu0 0.0
    %2687 = vmatpush1.msra.mxu0 0.0
    %2688 = vmatprep.mubr.f32.mxu0 0.0
    %2689 = vmatmul.mubr.f32.gmra.mrb[0].mxu0 %v2457
    %v2690 = vpop.f32.mrb[0].mxu0
    %v2691 = vadd.f32 %v2538, %v2690
    %v2692 = vpop.f32.mrb[0].mxu0
    %v2693 = vadd.f32 %v2542, %v2692
    %2694 = vmatprep.mubr.f32.mxu0 0.0
    %2695 = vmatmul.mubr.f32.gmra.mrb[0].mxu0 %v2458
    %v2696 = vpop.f32.mrb[0].mxu0
    %v2697 = vadd.f32 %v2538, %v2696
    %v2698 = vpop.f32.mrb[0].mxu0
    %v2699 = vadd.f32 %v2542, %v2698
    %2700 = vdwg.mxu0
    %v2701 = vmul.f32 %v2614, %v2614
    %v2702 = vmul.f32 %v2616, %v2616
    %v2703 = vmul.f32 %v2691, %v2691
    %v2704 = vmul.f32 %v2693, %v2693
    %v2705 = vmul.f32 %v2620, %v2620
    %v2706 = vmul.f32 %v2622, %v2622
    %v2707 = vmul.f32 %v2697, %v2697
    %v2708 = vmul.f32 %v2699, %v2699
    %v2709 = vmul.f32 %v2614, %v2701
    %v2710 = vmul.f32 %v2616, %v2702
    %v2711 = vmul.f32 %v2691, %v2703
    %v2712 = vmul.f32 %v2693, %v2704
    %v2713 = vmul.f32 %v2620, %v2705
    %v2714 = vmul.f32 %v2622, %v2706
    %v2715 = vmul.f32 %v2697, %v2707
    %v2716 = vmul.f32 %v2699, %v2708
    %v2717 = vmul.f32 %v2709, 0.044715
    %v2718 = vmul.f32 %v2710, 0.044715
    %v2719 = vmul.f32 %v2711, 0.044715
    %v2720 = vmul.f32 %v2712, 0.044715
    %v2721 = vmul.f32 %v2713, 0.044715
    %v2722 = vmul.f32 %v2714, 0.044715
    %v2723 = vmul.f32 %v2715, 0.044715
    %v2724 = vmul.f32 %v2716, 0.044715
    %v2725 = vadd.f32 %v2614, %v2717
    %v2726 = vadd.f32 %v2616, %v2718
    %v2727 = vadd.f32 %v2691, %v2719
    %v2728 = vadd.f32 %v2693, %v2720
    %v2729 = vadd.f32 %v2620, %v2721
    %v2730 = vadd.f32 %v2622, %v2722
    %v2731 = vadd.f32 %v2697, %v2723
    %v2732 = vadd.f32 %v2699, %v2724
    %v2733 = vmul.f32 %v2725, 0.7978846
    %v2734 = vmul.f32 %v2726, 0.7978846
    %v2735 = vmul.f32 %v2727, 0.7978846
    %v2736 = vmul.f32 %v2728, 0.7978846
    %v2737 = vmul.f32 %v2729, 0.7978846
    %v2738 = vmul.f32 %v2730, 0.7978846
    %v2739 = vmul.f32 %v2731, 0.7978846
    %v2740 = vmul.f32 %v2732, 0.7978846
    %v2741 = vtanh.pop %v2733
    %v2742 = vtanh.pop %v2734
    %v2743 = vtanh.pop %v2735
    %v2744 = vtanh.pop %v2736
    %v2745 = vtanh.pop %v2737
    %v2746 = vtanh.pop %v2738
    %v2747 = vtanh.pop %v2739
    %v2748 = vtanh.pop %v2740
    %v2749 = vadd.f32 %v2741, 1.0
    %v2750 = vadd.f32 %v2742, 1.0
    %v2751 = vadd.f32 %v2743, 1.0
    %v2752 = vadd.f32 %v2744, 1.0
    %v2753 = vadd.f32 %v2745, 1.0
    %v2754 = vadd.f32 %v2746, 1.0
    %v2755 = vadd.f32 %v2747, 1.0
    %v2756 = vadd.f32 %v2748, 1.0
    %v2757 = vmul.f32 %v2749, 0.5
    %v2758 = vmul.f32 %v2750, 0.5
    %v2759 = vmul.f32 %v2751, 0.5
    %v2760 = vmul.f32 %v2752, 0.5
    %v2761 = vmul.f32 %v2753, 0.5
    %v2762 = vmul.f32 %v2754, 0.5
    %v2763 = vmul.f32 %v2755, 0.5
    %v2764 = vmul.f32 %v2756, 0.5
    %v2765 = vmul.f32 %v2614, %v2757
    %v2766 = vmul.f32 %v2616, %v2758
    %v2767 = vmul.f32 %v2691, %v2759
    %v2768 = vmul.f32 %v2693, %v2760
    %v2769 = vmul.f32 %v2620, %v2761
    %v2770 = vmul.f32 %v2622, %v2762
    %v2771 = vmul.f32 %v2697, %v2763
    %v2772 = vmul.f32 %v2699, %v2764
    %s2773 = scalar_lea.vmem [#allocation6], 512
    %v2774 = vld [vmem:[%s2773] sm:$0xff]
    %v2775 = vld [vmem:[%s2773 + $0x8] sm:$0xff]
    %v2776 = vld [vmem:[%s2773 + $0x10] sm:$0xff]
    %v2777 = vld [vmem:[%s2773 + $0x18] sm:$0xff]
    %v2778 = vld [vmem:[%s2773 + $0x20] sm:$0xff]
    %v2779 = vld [vmem:[%s2773 + $0x28] sm:$0xff]
    %v2780 = vld [vmem:[%s2773 + $0x30] sm:$0xff]
    %v2781 = vld [vmem:[%s2773 + $0x38] sm:$0xff]
    %v2782 = vld [vmem:[%s2773 + $0x40] sm:$0xff]
    %v2783 = vld [vmem:[%s2773 + $0x48] sm:$0xff]
    %v2784 = vld [vmem:[%s2773 + $0x50] sm:$0xff]
    %v2785 = vld [vmem:[%s2773 + $0x58] sm:$0xff]
    %v2786 = vld [vmem:[%s2773 + $0x60] sm:$0xff]
    %v2787 = vld [vmem:[%s2773 + $0x68] sm:$0xff]
    %v2788 = vld [vmem:[%s2773 + $0x70] sm:$0xff]
    %v2789 = vld [vmem:[%s2773 + $0x78] sm:$0xff]
    %v2790 = vld [vmem:[%s2773 + $0x80] sm:$0xff]
    %v2791 = vld [vmem:[%s2773 + $0x88] sm:$0xff]
    %v2792 = vld [vmem:[%s2773 + $0x90] sm:$0xff]
    %v2793 = vld [vmem:[%s2773 + $0x98] sm:$0xff]
    %v2794 = vld [vmem:[%s2773 + $0xa0] sm:$0xff]
    %v2795 = vld [vmem:[%s2773 + $0xa8] sm:$0xff]
    %v2796 = vld [vmem:[%s2773 + $0xb0] sm:$0xff]
    %v2797 = vld [vmem:[%s2773 + $0xb8] sm:$0xff]
    %v2798 = vld [vmem:[%s2773 + $0xc0] sm:$0xff]
    %v2799 = vld [vmem:[%s2773 + $0xc8] sm:$0xff]
    %v2800 = vld [vmem:[%s2773 + $0xd0] sm:$0xff]
    %v2801 = vld [vmem:[%s2773 + $0xd8] sm:$0xff]
    %v2802 = vld [vmem:[%s2773 + $0xe0] sm:$0xff]
    %v2803 = vld [vmem:[%s2773 + $0xe8] sm:$0xff]
    %v2804 = vld [vmem:[%s2773 + $0xf0] sm:$0xff]
    %v2805 = vld [vmem:[%s2773 + $0xf8] sm:$0xff]
    %v2806 = vld [vmem:[%s2773 + $0x100] sm:$0xff]
    %v2807 = vld [vmem:[%s2773 + $0x108] sm:$0xff]
    %v2808 = vld [vmem:[%s2773 + $0x110] sm:$0xff]
    %v2809 = vld [vmem:[%s2773 + $0x118] sm:$0xff]
    %v2810 = vld [vmem:[%s2773 + $0x120] sm:$0xff]
    %v2811 = vld [vmem:[%s2773 + $0x128] sm:$0xff]
    %v2812 = vld [vmem:[%s2773 + $0x130] sm:$0xff]
    %v2813 = vld [vmem:[%s2773 + $0x138] sm:$0xff]
    %v2814 = vld [vmem:[%s2773 + $0x140] sm:$0xff]
    %v2815 = vld [vmem:[%s2773 + $0x148] sm:$0xff]
    %v2816 = vld [vmem:[%s2773 + $0x150] sm:$0xff]
    %v2817 = vld [vmem:[%s2773 + $0x158] sm:$0xff]
    %v2818 = vld [vmem:[%s2773 + $0x160] sm:$0xff]
    %v2819 = vld [vmem:[%s2773 + $0x168] sm:$0xff]
    %v2820 = vld [vmem:[%s2773 + $0x170] sm:$0xff]
    %v2821 = vld [vmem:[%s2773 + $0x178] sm:$0xff]
    %v2822 = vld [vmem:[%s2773 + $0x180] sm:$0xff]
    %v2823 = vld [vmem:[%s2773 + $0x188] sm:$0xff]
    %v2824 = vld [vmem:[%s2773 + $0x190] sm:$0xff]
    %v2825 = vld [vmem:[%s2773 + $0x198] sm:$0xff]
    %v2826 = vld [vmem:[%s2773 + $0x1a0] sm:$0xff]
    %v2827 = vld [vmem:[%s2773 + $0x1a8] sm:$0xff]
    %v2828 = vld [vmem:[%s2773 + $0x1b0] sm:$0xff]
    %v2829 = vld [vmem:[%s2773 + $0x1b8] sm:$0xff]
    %v2830 = vld [vmem:[%s2773 + $0x1c0] sm:$0xff]
    %v2831 = vld [vmem:[%s2773 + $0x1c8] sm:$0xff]
    %v2832 = vld [vmem:[%s2773 + $0x1d0] sm:$0xff]
    %v2833 = vld [vmem:[%s2773 + $0x1d8] sm:$0xff]
    %v2834 = vld [vmem:[%s2773 + $0x1e0] sm:$0xff]
    %v2835 = vld [vmem:[%s2773 + $0x1e8] sm:$0xff]
    %v2836 = vld [vmem:[%s2773 + $0x1f0] sm:$0xff]
    %v2837 = vld [vmem:[%s2773 + $0x1f8] sm:$0xff]
    %s2838 = scalar_lea.vmem %s13, 1
    %v2839 = vld [vmem:[%s2838] sm:$0x1]
    %v2841 = vlaneseq
    %v2842 = vshrl.u32 %v2841, 7
    %v2843 = vsub.s32 0, %v2842
    %v2844 = vrot.slane %v2839, %v2843
    %2846 = vmatprep.subr.mxu0 0.0
    %2847 = vmatpush1.msra.mxu0 %v2774
    %2848 = vmatprep.subr.mxu0 0.0
    %2849 = vmatpush1.msra.mxu0 %v2775
    %2850 = vmatprep.subr.mxu0 0.0
    %2851 = vmatpush1.msra.mxu0 %v2776
    %2852 = vmatprep.subr.mxu0 0.0
    %2853 = vmatpush1.msra.mxu0 %v2777
    %2854 = vmatprep.subr.mxu0 0.0
    %2855 = vmatpush1.msra.mxu0 %v2778
    %2856 = vmatprep.subr.mxu0 0.0
    %2857 = vmatpush1.msra.mxu0 %v2779
    %2858 = vmatprep.subr.mxu0 0.0
    %2859 = vmatpush1.msra.mxu0 %v2780
    %2860 = vmatprep.subr.mxu0 0.0
    %2861 = vmatpush1.msra.mxu0 %v2781
    %2862 = vmatprep.subr.mxu0 0.0
    %2863 = vmatpush1.msra.mxu0 %v2782
    %2864 = vmatprep.subr.mxu0 0.0
    %2865 = vmatpush1.msra.mxu0 %v2783
    %2866 = vmatprep.subr.mxu0 0.0
    %2867 = vmatpush1.msra.mxu0 %v2784
    %2868 = vmatprep.subr.mxu0 0.0
    %2869 = vmatpush1.msra.mxu0 %v2785
    %2870 = vmatprep.subr.mxu0 0.0
    %2871 = vmatpush1.msra.mxu0 %v2786
    %2872 = vmatprep.subr.mxu0 0.0
    %2873 = vmatpush1.msra.mxu0 %v2787
    %2874 = vmatprep.subr.mxu0 0.0
    %2875 = vmatpush1.msra.mxu0 %v2788
    %2876 = vmatprep.subr.mxu0 0.0
    %2877 = vmatpush1.msra.mxu0 %v2789
    %2878 = vmatprep.subr.mxu0 0.0
    %2879 = vmatpush1.msra.mxu0 %v2790
    %2880 = vmatprep.subr.mxu0 0.0
    %2881 = vmatpush1.msra.mxu0 %v2791
    %2882 = vmatprep.subr.mxu0 0.0
    %2883 = vmatpush1.msra.mxu0 %v2792
    %2884 = vmatprep.subr.mxu0 0.0
    %2885 = vmatpush1.msra.mxu0 %v2793
    %2886 = vmatprep.subr.mxu0 0.0
    %2887 = vmatpush1.msra.mxu0 %v2794
    %2888 = vmatprep.subr.mxu0 0.0
    %2889 = vmatpush1.msra.mxu0 %v2795
    %2890 = vmatprep.subr.mxu0 0.0
    %2891 = vmatpush1.msra.mxu0 %v2796
    %2892 = vmatprep.subr.mxu0 0.0
    %2893 = vmatpush1.msra.mxu0 %v2797
    %2894 = vmatprep.subr.mxu0 0.0
    %2895 = vmatpush1.msra.mxu0 %v2798
    %2896 = vmatprep.subr.mxu0 0.0
    %2897 = vmatpush1.msra.mxu0 %v2799
    %2898 = vmatprep.subr.mxu0 0.0
    %2899 = vmatpush1.msra.mxu0 %v2800
    %2900 = vmatprep.subr.mxu0 0.0
    %2901 = vmatpush1.msra.mxu0 %v2801
    %2902 = vmatprep.subr.mxu0 0.0
    %2903 = vmatpush1.msra.mxu0 %v2802
    %2904 = vmatprep.subr.mxu0 0.0
    %2905 = vmatpush1.msra.mxu0 %v2803
    %2906 = vmatprep.subr.mxu0 0.0
    %2907 = vmatpush1.msra.mxu0 %v2804
    %2908 = vmatprep.subr.mxu0 0.0
    %2909 = vmatpush1.msra.mxu0 %v2805
    %2910 = vmatprep.mubr.f32.mxu0 %v2766
    %2911 = vmatmul.mubr.f32.gmra.mrb[0].mxu0 %v2765
    %v2912 = vpop.f32.mrb[0].mxu0
    %v2913 = vadd.f32 %v2844, %v2912
    %v2914 = vpop.f32.mrb[0].mxu0
    %2915 = vmatprep.mubr.f32.mxu0 %v2770
    %2916 = vmatmul.mubr.f32.gmra.mrb[0].mxu0 %v2769
    %v2917 = vpop.f32.mrb[0].mxu0
    %v2918 = vadd.f32 %v2844, %v2917
    %v2919 = vpop.f32.mrb[0].mxu0
    %2920 = vdwg.mxu0
    %2921 = vmatprep.subr.mxu0 0.0
    %2922 = vmatpush1.msra.mxu0 %v2806
    %2923 = vmatprep.subr.mxu0 0.0
    %2924 = vmatpush1.msra.mxu0 %v2807
    %2925 = vmatprep.subr.mxu0 0.0
    %2926 = vmatpush1.msra.mxu0 %v2808
    %2927 = vmatprep.subr.mxu0 0.0
    %2928 = vmatpush1.msra.mxu0 %v2809
    %2929 = vmatprep.subr.mxu0 0.0
    %2930 = vmatpush1.msra.mxu0 %v2810
    %2931 = vmatprep.subr.mxu0 0.0
    %2932 = vmatpush1.msra.mxu0 %v2811
    %2933 = vmatprep.subr.mxu0 0.0
    %2934 = vmatpush1.msra.mxu0 %v2812
    %2935 = vmatprep.subr.mxu0 0.0
    %2936 = vmatpush1.msra.mxu0 %v2813
    %2937 = vmatprep.subr.mxu0 0.0
    %2938 = vmatpush1.msra.mxu0 %v2814
    %2939 = vmatprep.subr.mxu0 0.0
    %2940 = vmatpush1.msra.mxu0 %v2815
    %2941 = vmatprep.subr.mxu0 0.0
    %2942 = vmatpush1.msra.mxu0 %v2816
    %2943 = vmatprep.subr.mxu0 0.0
    %2944 = vmatpush1.msra.mxu0 %v2817
    %2945 = vmatprep.subr.mxu0 0.0
    %2946 = vmatpush1.msra.mxu0 %v2818
    %2947 = vmatprep.subr.mxu0 0.0
    %2948 = vmatpush1.msra.mxu0 %v2819
    %2949 = vmatprep.subr.mxu0 0.0
    %2950 = vmatpush1.msra.mxu0 %v2820
    %2951 = vmatprep.subr.mxu0 0.0
    %2952 = vmatpush1.msra.mxu0 %v2821
    %2953 = vmatprep.subr.mxu0 0.0
    %2954 = vmatpush1.msra.mxu0 %v2822
    %2955 = vmatprep.subr.mxu0 0.0
    %2956 = vmatpush1.msra.mxu0 %v2823
    %2957 = vmatprep.subr.mxu0 0.0
    %2958 = vmatpush1.msra.mxu0 %v2824
    %2959 = vmatprep.subr.mxu0 0.0
    %2960 = vmatpush1.msra.mxu0 %v2825
    %2961 = vmatprep.subr.mxu0 0.0
    %2962 = vmatpush1.msra.mxu0 %v2826
    %2963 = vmatprep.subr.mxu0 0.0
    %2964 = vmatpush1.msra.mxu0 %v2827
    %2965 = vmatprep.subr.mxu0 0.0
    %2966 = vmatpush1.msra.mxu0 %v2828
    %2967 = vmatprep.subr.mxu0 0.0
    %2968 = vmatpush1.msra.mxu0 %v2829
    %2969 = vmatprep.subr.mxu0 0.0
    %2970 = vmatpush1.msra.mxu0 %v2830
    %2971 = vmatprep.subr.mxu0 0.0
    %2972 = vmatpush1.msra.mxu0 %v2831
    %2973 = vmatprep.subr.mxu0 0.0
    %2974 = vmatpush1.msra.mxu0 %v2832
    %2975 = vmatprep.subr.mxu0 0.0
    %2976 = vmatpush1.msra.mxu0 %v2833
    %2977 = vmatprep.subr.mxu0 0.0
    %2978 = vmatpush1.msra.mxu0 %v2834
    %2979 = vmatprep.subr.mxu0 0.0
    %2980 = vmatpush1.msra.mxu0 %v2835
    %2981 = vmatprep.subr.mxu0 0.0
    %2982 = vmatpush1.msra.mxu0 %v2836
    %2983 = vmatprep.subr.mxu0 0.0
    %2984 = vmatpush1.msra.mxu0 %v2837
    %2985 = vmatprep.mubr.f32.mxu0 %v2768
    %2986 = vmatmul.mubr.f32.gmra.mrb[0].mxu0 %v2767
    %v2987 = vpop.f32.mrb[0].mxu0
    %v2988 = vadd.f32 %v2913, %v2987
    %v2989 = vpop.f32.mrb[0].mxu0
    %2990 = vmatprep.mubr.f32.mxu0 %v2772
    %2991 = vmatmul.mubr.f32.gmra.mrb[0].mxu0 %v2771
    %v2992 = vpop.f32.mrb[0].mxu0
    %v2993 = vadd.f32 %v2918, %v2992
    %v2994 = vpop.f32.mrb[0].mxu0
    %2995 = vdwg.mxu0
    %v2996 = vadd.f32 %v2988, %v2457
    %v2997 = vadd.f32 %v2993, %v2458
    %s2998 = scalar_lea.vmem %s14, 1
    %v2999 = vld [vmem:[%s2998] sm:$0x1]
    %s3000 = scalar_lea.vmem %s15, 1
    %v3001 = vld [vmem:[%s3000] sm:$0x1]
    %3002 = vadd.xlane.f32.xlu0 %v2996
    %v3003 = vpop.xlane.xlu0 %3002
    %3004 = vadd.xlane.f32.xlu0 %v2997
    %v3005 = vpop.xlane.xlu0 %3004
    %v3006 = vmul.f32 %v3003, %v149
    %v3007 = vmul.f32 %v3005, %v149
    %v3008 = vsub.f32 %v2996, %v3006
    %v3009 = vsub.f32 %v2997, %v3007
    %v3010 = vmul.f32 %v3008, %v3008
    %v3011 = vmul.f32 %v3009, %v3009
    %3012 = vadd.xlane.f32.xlu0 %v3010
    %v3013 = vpop.xlane.xlu0 %3012
    %3014 = vadd.xlane.f32.xlu0 %v3011
    %v3015 = vpop.xlane.xlu0 %3014
    %v3016 = vmul.f32 %v3013, %v149
    %v3017 = vmul.f32 %v3015, %v149
    %v3018 = vadd.f32 %v3016, 1e-12
    %v3019 = vadd.f32 %v3017, 1e-12
    %v3020 = vrsqrt.pop %v3018
    %v3021 = vrsqrt.pop %v3019
    %v3022 = vmul.f32 %v3008, %v3020
    %v3023 = vmul.f32 %v3009, %v3021
    %v3025 = vlaneseq
    %v3026 = vshrl.u32 %v3025, 7
    %v3027 = vsub.s32 0, %v3026
    %v3028 = vrot.slane %v2999, %v3027
    %v3030 = vmul.f32 %v3022, %v3028
    %v3031 = vmul.f32 %v3023, %v3028
    %v3033 = vlaneseq
    %v3034 = vshrl.u32 %v3033, 7
    %v3035 = vsub.s32 0, %v3034
    %v3036 = vrot.slane %v3001, %v3035
    %v3038 = vadd.f32 %v3030, %v3036
    %v3039 = vadd.f32 %v3031, %v3036
    %v3040 = vld [vmem:[%s16] sm:$0xff]
    %v3041 = vld [vmem:[%s16 + $0x8] sm:$0xff]
    %v3042 = vld [vmem:[%s16 + $0x10] sm:$0xff]
    %v3043 = vld [vmem:[%s16 + $0x18] sm:$0xff]
    %v3044 = vld [vmem:[%s16 + $0x20] sm:$0xff]
    %v3045 = vld [vmem:[%s16 + $0x28] sm:$0xff]
    %v3046 = vld [vmem:[%s16 + $0x30] sm:$0xff]
    %v3047 = vld [vmem:[%s16 + $0x38] sm:$0xff]
    %v3048 = vld [vmem:[%s16 + $0x40] sm:$0xff]
    %v3049 = vld [vmem:[%s16 + $0x48] sm:$0xff]
    %v3050 = vld [vmem:[%s16 + $0x50] sm:$0xff]
    %v3051 = vld [vmem:[%s16 + $0x58] sm:$0xff]
    %v3052 = vld [vmem:[%s16 + $0x60] sm:$0xff]
    %v3053 = vld [vmem:[%s16 + $0x68] sm:$0xff]
    %v3054 = vld [vmem:[%s16 + $0x70] sm:$0xff]
    %v3055 = vld [vmem:[%s16 + $0x78] sm:$0xff]
    %v3056 = vld [vmem:[%s17] sm:$0x1]
    %v3058 = vlaneseq
    %v3059 = vshrl.u32 %v3058, 7
    %v3060 = vsub.s32 0, %v3059
    %v3061 = vrot.slane %v3056, %v3060
    %3063 = vmatprep.subr.mxu0 0.0
    %3064 = vmatpush1.msra.mxu0 %v3040
    %3065 = vmatprep.subr.mxu0 0.0
    %3066 = vmatpush1.msra.mxu0 %v3041
    %3067 = vmatprep.subr.mxu0 0.0
    %3068 = vmatpush1.msra.mxu0 %v3042
    %3069 = vmatprep.subr.mxu0 0.0
    %3070 = vmatpush1.msra.mxu0 %v3043
    %3071 = vmatprep.subr.mxu0 0.0
    %3072 = vmatpush1.msra.mxu0 %v3044
    %3073 = vmatprep.subr.mxu0 0.0
    %3074 = vmatpush1.msra.mxu0 %v3045
    %3075 = vmatprep.subr.mxu0 0.0
    %3076 = vmatpush1.msra.mxu0 %v3046
    %3077 = vmatprep.subr.mxu0 0.0
    %3078 = vmatpush1.msra.mxu0 %v3047
    %3079 = vmatprep.subr.mxu0 0.0
    %3080 = vmatpush1.msra.mxu0 %v3048
    %3081 = vmatprep.subr.mxu0 0.0
    %3082 = vmatpush1.msra.mxu0 %v3049
    %3083 = vmatprep.subr.mxu0 0.0
    %3084 = vmatpush1.msra.mxu0 %v3050
    %3085 = vmatprep.subr.mxu0 0.0
    %3086 = vmatpush1.msra.mxu0 %v3051
    %3087 = vmatprep.subr.mxu0 0.0
    %3088 = vmatpush1.msra.mxu0 %v3052
    %3089 = vmatprep.subr.mxu0 0.0
    %3090 = vmatpush1.msra.mxu0 %v3053
    %3091 = vmatprep.subr.mxu0 0.0
    %3092 = vmatpush1.msra.mxu0 %v3054
    %3093 = vmatprep.subr.mxu0 0.0
    %3094 = vmatpush1.msra.mxu0 %v3055
    %3095 = vmatprep.subr.mxu0 0.0
    %3096 = vmatpush1.msra.mxu0 0.0
    %3097 = vmatprep.subr.mxu0 0.0
    %3098 = vmatpush1.msra.mxu0 0.0
    %3099 = vmatprep.subr.mxu0 0.0
    %3100 = vmatpush1.msra.mxu0 0.0
    %3101 = vmatprep.subr.mxu0 0.0
    %3102 = vmatpush1.msra.mxu0 0.0
    %3103 = vmatprep.subr.mxu0 0.0
    %3104 = vmatpush1.msra.mxu0 0.0
    %3105 = vmatprep.subr.mxu0 0.0
    %3106 = vmatpush1.msra.mxu0 0.0
    %3107 = vmatprep.subr.mxu0 0.0
    %3108 = vmatpush1.msra.mxu0 0.0
    %3109 = vmatprep.subr.mxu0 0.0
    %3110 = vmatpush1.msra.mxu0 0.0
    %3111 = vmatprep.subr.mxu0 0.0
    %3112 = vmatpush1.msra.mxu0 0.0
    %3113 = vmatprep.subr.mxu0 0.0
    %3114 = vmatpush1.msra.mxu0 0.0
    %3115 = vmatprep.subr.mxu0 0.0
    %3116 = vmatpush1.msra.mxu0 0.0
    %3117 = vmatprep.subr.mxu0 0.0
    %3118 = vmatpush1.msra.mxu0 0.0
    %3119 = vmatprep.subr.mxu0 0.0
    %3120 = vmatpush1.msra.mxu0 0.0
    %3121 = vmatprep.subr.mxu0 0.0
    %3122 = vmatpush1.msra.mxu0 0.0
    %3123 = vmatprep.subr.mxu0 0.0
    %3124 = vmatpush1.msra.mxu0 0.0
    %3125 = vmatprep.subr.mxu0 0.0
    %3126 = vmatpush1.msra.mxu0 0.0
    %3127 = vmatprep.mubr.f32.mxu0 0.0
    %3128 = vmatmul.mubr.f32.gmra.mrb[0].mxu0 %v3038
    %v3129 = vpop.f32.mrb[0].mxu0
    %v3130 = vadd.f32 %v3061, %v3129
    %v3131 = vpop.f32.mrb[0].mxu0
    %3132 = vmatprep.mubr.f32.mxu0 0.0
    %3133 = vmatmul.mubr.f32.gmra.mrb[0].mxu0 %v3039
    %v3134 = vpop.f32.mrb[0].mxu0
    %v3135 = vadd.f32 %v3061, %v3134
    %v3136 = vpop.f32.mrb[0].mxu0
    %3137 = vdwg.mxu0
    %v3138 = vtanh.pop %v3130
    %v3139 = vtanh.pop %v3135
    %v3140 = vld [vmem:[#allocation7] sm:$0xff]
    %v3141 = vld [vmem:[#allocation7 + $0x8] sm:$0xff]
    %v3142 = vld [vmem:[#allocation7 + $0x10] sm:$0xff]
    %v3143 = vld [vmem:[#allocation7 + $0x18] sm:$0xff]
    %v3144 = vld [vmem:[#allocation7 + $0x20] sm:$0xff]
    %v3145 = vld [vmem:[#allocation7 + $0x28] sm:$0xff]
    %v3146 = vld [vmem:[#allocation7 + $0x30] sm:$0xff]
    %v3147 = vld [vmem:[#allocation7 + $0x38] sm:$0xff]
    %v3148 = vld [vmem:[#allocation7 + $0x40] sm:$0xff]
    %v3149 = vld [vmem:[#allocation7 + $0x48] sm:$0xff]
    %v3150 = vld [vmem:[#allocation7 + $0x50] sm:$0xff]
    %v3151 = vld [vmem:[#allocation7 + $0x58] sm:$0xff]
    %v3152 = vld [vmem:[#allocation7 + $0x60] sm:$0xff]
    %v3153 = vld [vmem:[#allocation7 + $0x68] sm:$0xff]
    %v3154 = vld [vmem:[#allocation7 + $0x70] sm:$0xff]
    %v3155 = vld [vmem:[#allocation7 + $0x78] sm:$0xff]
    %v3156 = vld [vmem:[%s19] sm:$0x1]
    %v3158 = vlaneseq
    %v3159 = vshrl.u32 %v3158, 7
    %v3160 = vsub.s32 0, %v3159
    %v3161 = vrot.slane %v3156, %v3160
    %3163 = vmatprep.subr.mxu0 0.0
    %3164 = vmatpush1.msra.mxu0 %v3140
    %3165 = vmatprep.subr.mxu0 0.0
    %3166 = vmatpush1.msra.mxu0 %v3141
    %3167 = vmatprep.subr.mxu0 0.0
    %3168 = vmatpush1.msra.mxu0 %v3142
    %3169 = vmatprep.subr.mxu0 0.0
    %3170 = vmatpush1.msra.mxu0 %v3143
    %3171 = vmatprep.subr.mxu0 0.0
    %3172 = vmatpush1.msra.mxu0 %v3144
    %3173 = vmatprep.subr.mxu0 0.0
    %3174 = vmatpush1.msra.mxu0 %v3145
    %3175 = vmatprep.subr.mxu0 0.0
    %3176 = vmatpush1.msra.mxu0 %v3146
    %3177 = vmatprep.subr.mxu0 0.0
    %3178 = vmatpush1.msra.mxu0 %v3147
    %3179 = vmatprep.subr.mxu0 0.0
    %3180 = vmatpush1.msra.mxu0 %v3148
    %3181 = vmatprep.subr.mxu0 0.0
    %3182 = vmatpush1.msra.mxu0 %v3149
    %3183 = vmatprep.subr.mxu0 0.0
    %3184 = vmatpush1.msra.mxu0 %v3150
    %3185 = vmatprep.subr.mxu0 0.0
    %3186 = vmatpush1.msra.mxu0 %v3151
    %3187 = vmatprep.subr.mxu0 0.0
    %3188 = vmatpush1.msra.mxu0 %v3152
    %3189 = vmatprep.subr.mxu0 0.0
    %3190 = vmatpush1.msra.mxu0 %v3153
    %3191 = vmatprep.subr.mxu0 0.0
    %3192 = vmatpush1.msra.mxu0 %v3154
    %3193 = vmatprep.subr.mxu0 0.0
    %3194 = vmatpush1.msra.mxu0 %v3155
    %3195 = vmatprep.subr.mxu0 0.0
    %3196 = vmatpush1.msra.mxu0 0.0
    %3197 = vmatprep.subr.mxu0 0.0
    %3198 = vmatpush1.msra.mxu0 0.0
    %3199 = vmatprep.subr.mxu0 0.0
    %3200 = vmatpush1.msra.mxu0 0.0
    %3201 = vmatprep.subr.mxu0 0.0
    %3202 = vmatpush1.msra.mxu0 0.0
    %3203 = vmatprep.subr.mxu0 0.0
    %3204 = vmatpush1.msra.mxu0 0.0
    %3205 = vmatprep.subr.mxu0 0.0
    %3206 = vmatpush1.msra.mxu0 0.0
    %3207 = vmatprep.subr.mxu0 0.0
    %3208 = vmatpush1.msra.mxu0 0.0
    %3209 = vmatprep.subr.mxu0 0.0
    %3210 = vmatpush1.msra.mxu0 0.0
    %3211 = vmatprep.subr.mxu0 0.0
    %3212 = vmatpush1.msra.mxu0 0.0
    %3213 = vmatprep.subr.mxu0 0.0
    %3214 = vmatpush1.msra.mxu0 0.0
    %3215 = vmatprep.subr.mxu0 0.0
    %3216 = vmatpush1.msra.mxu0 0.0
    %3217 = vmatprep.subr.mxu0 0.0
    %3218 = vmatpush1.msra.mxu0 0.0
    %3219 = vmatprep.subr.mxu0 0.0
    %3220 = vmatpush1.msra.mxu0 0.0
    %3221 = vmatprep.subr.mxu0 0.0
    %3222 = vmatpush1.msra.mxu0 0.0
    %3223 = vmatprep.subr.mxu0 0.0
    %3224 = vmatpush1.msra.mxu0 0.0
    %3225 = vmatprep.subr.mxu0 0.0
    %3226 = vmatpush1.msra.mxu0 0.0
    %3227 = vmatprep.mubr.f32.mxu0 0.0
    %3228 = vmatmul.mubr.f32.gmra.mrb[0].mxu0 %v3138
    %v3229 = vpop.f32.mrb[0].mxu0
    %v3230 = vadd.f32 %v3161, %v3229
    %v3231 = vpop.f32.mrb[0].mxu0
    %3232 = vmatprep.mubr.f32.mxu0 0.0
    %3233 = vmatmul.mubr.f32.gmra.mrb[0].mxu0 %v3139
    %v3234 = vpop.f32.mrb[0].mxu0
    %v3235 = vadd.f32 %v3161, %v3234
    %v3236 = vpop.f32.mrb[0].mxu0
    %3237 = vdwg.mxu0
    %v3238 = vmax.f32 %v3230, 0.0
    %v3239 = vmax.f32 %v3235, 0.0
    %v3240 = vld [vmem:[#allocation9] sm:$0xff]
    %v3241 = vld [vmem:[#allocation9 + $0x8] sm:$0xff]
    %v3242 = vld [vmem:[#allocation9 + $0x10] sm:$0xff]
    %v3243 = vld [vmem:[#allocation9 + $0x18] sm:$0xff]
    %v3244 = vld [vmem:[#allocation9 + $0x20] sm:$0xff]
    %v3245 = vld [vmem:[#allocation9 + $0x28] sm:$0xff]
    %v3246 = vld [vmem:[#allocation9 + $0x30] sm:$0xff]
    %v3247 = vld [vmem:[#allocation9 + $0x38] sm:$0xff]
    %v3248 = vld [vmem:[#allocation9 + $0x40] sm:$0xff]
    %v3249 = vld [vmem:[#allocation9 + $0x48] sm:$0xff]
    %v3250 = vld [vmem:[#allocation9 + $0x50] sm:$0xff]
    %v3251 = vld [vmem:[#allocation9 + $0x58] sm:$0xff]
    %v3252 = vld [vmem:[#allocation9 + $0x60] sm:$0xff]
    %v3253 = vld [vmem:[#allocation9 + $0x68] sm:$0xff]
    %v3254 = vld [vmem:[#allocation9 + $0x70] sm:$0xff]
    %v3255 = vld [vmem:[#allocation9 + $0x78] sm:$0xff]
    %v3256 = vld [vmem:[%s21] sm:$0x1]
    %v3258 = vlaneseq
    %v3259 = vshrl.u32 %v3258, 7
    %v3260 = vsub.s32 0, %v3259
    %v3261 = vrot.slane %v3256, %v3260
    %3263 = vmatprep.subr.mxu0 0.0
    %3264 = vmatpush1.msra.mxu0 %v3240
    %3265 = vmatprep.subr.mxu0 0.0
    %3266 = vmatpush1.msra.mxu0 %v3241
    %3267 = vmatprep.subr.mxu0 0.0
    %3268 = vmatpush1.msra.mxu0 %v3242
    %3269 = vmatprep.subr.mxu0 0.0
    %3270 = vmatpush1.msra.mxu0 %v3243
    %3271 = vmatprep.subr.mxu0 0.0
    %3272 = vmatpush1.msra.mxu0 %v3244
    %3273 = vmatprep.subr.mxu0 0.0
    %3274 = vmatpush1.msra.mxu0 %v3245
    %3275 = vmatprep.subr.mxu0 0.0
    %3276 = vmatpush1.msra.mxu0 %v3246
    %3277 = vmatprep.subr.mxu0 0.0
    %3278 = vmatpush1.msra.mxu0 %v3247
    %3279 = vmatprep.subr.mxu0 0.0
    %3280 = vmatpush1.msra.mxu0 %v3248
    %3281 = vmatprep.subr.mxu0 0.0
    %3282 = vmatpush1.msra.mxu0 %v3249
    %3283 = vmatprep.subr.mxu0 0.0
    %3284 = vmatpush1.msra.mxu0 %v3250
    %3285 = vmatprep.subr.mxu0 0.0
    %3286 = vmatpush1.msra.mxu0 %v3251
    %3287 = vmatprep.subr.mxu0 0.0
    %3288 = vmatpush1.msra.mxu0 %v3252
    %3289 = vmatprep.subr.mxu0 0.0
    %3290 = vmatpush1.msra.mxu0 %v3253
    %3291 = vmatprep.subr.mxu0 0.0
    %3292 = vmatpush1.msra.mxu0 %v3254
    %3293 = vmatprep.subr.mxu0 0.0
    %3294 = vmatpush1.msra.mxu0 %v3255
    %3295 = vmatprep.subr.mxu0 0.0
    %3296 = vmatpush1.msra.mxu0 0.0
    %3297 = vmatprep.subr.mxu0 0.0
    %3298 = vmatpush1.msra.mxu0 0.0
    %3299 = vmatprep.subr.mxu0 0.0
    %3300 = vmatpush1.msra.mxu0 0.0
    %3301 = vmatprep.subr.mxu0 0.0
    %3302 = vmatpush1.msra.mxu0 0.0
    %3303 = vmatprep.subr.mxu0 0.0
    %3304 = vmatpush1.msra.mxu0 0.0
    %3305 = vmatprep.subr.mxu0 0.0
    %3306 = vmatpush1.msra.mxu0 0.0
    %3307 = vmatprep.subr.mxu0 0.0
    %3308 = vmatpush1.msra.mxu0 0.0
    %3309 = vmatprep.subr.mxu0 0.0
    %3310 = vmatpush1.msra.mxu0 0.0
    %3311 = vmatprep.subr.mxu0 0.0
    %3312 = vmatpush1.msra.mxu0 0.0
    %3313 = vmatprep.subr.mxu0 0.0
    %3314 = vmatpush1.msra.mxu0 0.0
    %3315 = vmatprep.subr.mxu0 0.0
    %3316 = vmatpush1.msra.mxu0 0.0
    %3317 = vmatprep.subr.mxu0 0.0
    %3318 = vmatpush1.msra.mxu0 0.0
    %3319 = vmatprep.subr.mxu0 0.0
    %3320 = vmatpush1.msra.mxu0 0.0
    %3321 = vmatprep.subr.mxu0 0.0
    %3322 = vmatpush1.msra.mxu0 0.0
    %3323 = vmatprep.subr.mxu0 0.0
    %3324 = vmatpush1.msra.mxu0 0.0
    %3325 = vmatprep.subr.mxu0 0.0
    %3326 = vmatpush1.msra.mxu0 0.0
    %3327 = vmatprep.mubr.f32.mxu0 0.0
    %3328 = vmatmul.mubr.f32.gmra.mrb[0].mxu0 %v3238
    %v3329 = vpop.f32.mrb[0].mxu0
    %v3330 = vadd.f32 %v3261, %v3329
    %v3331 = vpop.f32.mrb[0].mxu0
    %3332 = vmatprep.mubr.f32.mxu0 0.0
    %3333 = vmatmul.mubr.f32.gmra.mrb[0].mxu0 %v3239
    %v3334 = vpop.f32.mrb[0].mxu0
    %v3335 = vadd.f32 %v3261, %v3334
    %v3336 = vpop.f32.mrb[0].mxu0
    %3337 = vdwg.mxu0
    %3338 = vst [vmem:[%s22] sm:$0xff] %v3330
    %3339 = vst [vmem:[%s22 + $0x8] sm:$0xff] %v3335
    // Predicated region
    $region110: #{bert_class_forward.1} parent=1 // pred_check
      _
    $region111: #{bert_class_forward.1} parent=1 // pred_check_branch
      %3341 = sbr.rel (0) target = $region113
    $region112: #{bert_class_forward.1} parent=1 // pred_region
      _
    $region113: #{bert_class_forward.1} parent=1 // pred_fallthru
      _
    // Predicated region
    $region114: #{bert_class_forward.1} parent=1 // pred_check
      _
    $region115: #{bert_class_forward.1} parent=1 // pred_check_branch
      %3343 = sbr.rel (0) target = $region117
    $region116: #{bert_class_forward.1} parent=1 // pred_region
      _
    $region117: #{bert_class_forward.1} parent=1 // pred_fallthru
      _
    %3344 = vsyncpa [#allocation3], 1
    %3345 = vsyncpa [#allocation5], 1
    %3346 = vsyncpa [#allocation8], 1

</llo_original>
